<compile_context>
chip_gen: v7x
topology: tpu7x:2x2x1
jax: 0.10.0
libtpu: 0.0.40
codegen_flags: <defaults>
</compile_context>

<pallas_src>
import functools
import math

import jax
import jax.numpy as jnp
import numpy as np
from jax.experimental import pallas as pl
from jax.experimental.pallas import tpu as pltpu

INF = 1000000000000.0


# ----------------------------------------------------------------------------
# Kernel: one grid step = one batch element x one tile of GB entity-type groups
# of a single GlobalPointer head.  Projection weight column layout per group:
#   [ q(D) | k(D) ]      (q/k features reordered to [even | odd] iff rope)
# The 1/sqrt(D) scale is folded into the q weights/bias on the host, so all
# penalties use INF/sqrt(D).
# ----------------------------------------------------------------------------
def _gp_head_kernel(*refs, GB, D, Dh, rope, tril):
    it = iter(refs)
    h_ref = next(it)                        # (1, Sp, H)    bf16
    mcol_ref = next(it)                     # (1, Sp, 1)    f32  key-axis mask
    pen_ref = next(it)                      # (1, 1, Sp)    f32  (1-mask)*INF/sqrt(D)
    w_ref = next(it)                        # (H, GB*2D)    bf16
    b_ref = next(it)                        # (1, GB*2D)    f32
    cos_ref = next(it) if rope else None    # (Sp, D)       f32  [cos | cos]
    sin_ref = next(it) if rope else None    # (Sp, D)       f32  [-sin | +sin]
    tri_ref = next(it) if tril else None    # (Sp, Sp)      f32  tril(.,-1)*INF/sqrt(D)
    o_ref = next(it)                        # (1, GB, Sp, Sp) out_dtype

    # One wide bf16 MXU matmul for the whole group tile, f32 accumulation.
    proj = jnp.dot(h_ref[0], w_ref[...], preferred_element_type=jnp.float32)
    proj = proj + b_ref[...]                               # (Sp, GB*2D) f32

    mask_col = mcol_ref[0]                                 # (Sp, 1) -> folded into k
    pen = pen_ref[0]                                       # (1, Sp) padding penalty
    if tril:
        pen = pen + tri_ref[...]                           # (Sp, Sp), once per step
    if rope:
        cos = cos_ref[...]
        sin = sin_ref[...]

    dn = (((1,), (1,)), ((), ()))                          # q @ k^T
    for j in range(GB):                                    # static unroll, GB <= 8
        base = j * 2 * D
        q = proj[:, base:base + D]
        k = proj[:, base + D:base + 2 * D]
        if rope:
            # q/k are laid out [even | odd]; a half-swap plus the signed sin
            # table yields [e*cos - o*sin | o*cos + e*sin] with full-width FMAs.
            q = q * cos + jnp.concatenate([q[:, Dh:], q[:, :Dh]], axis=1) * sin
            k = k * cos + jnp.concatenate([k[:, Dh:], k[:, :Dh]], axis=1) * sin
        k = k * mask_col                                   # key-axis mask folded in
        s = jax.lax.dot_general(q.astype(jnp.bfloat16), k.astype(jnp.bfloat16),
                                dn, preferred_element_type=jnp.float32)
        o_ref[0, j] = (s - pen).astype(o_ref.dtype)


# ----------------------------------------------------------------------------
# Host-side parameter plumbing / tiling heuristics
# ----------------------------------------------------------------------------
def _prep_head_params(W, b, ent_type_size, head_size, rope, scale):
    """Reorder one head's dense params into the kernel layout.

    Input  W: (H, E*2*D) with the torch dense layout [q(D) | k(D)] per entity
    type, b: (E*2*D,).  Output: W (H, E*2*D) bf16 with q/k features reordered
    to [even | odd] iff rope and 1/sqrt(D) folded into q; b (1, E*2*D) f32.
    """
    H = W.shape[0]
    E, D = ent_type_size, head_size
    W4 = W.reshape(H, E, 2, D)
    b3 = b.reshape(E, 2, D)
    Wq, Wk = W4[:, :, 0, :], W4[:, :, 1, :]
    bq, bk = b3[:, 0, :], b3[:, 1, :]
    if rope:
        eo = lambda x: jnp.concatenate([x[..., 0::2], x[..., 1::2]], axis=-1)
        Wq, Wk, bq, bk = eo(Wq), eo(Wk), eo(bq), eo(bk)
    Wq = Wq * scale
    bq = bq * scale
    Wf = jnp.stack([Wq, Wk], axis=2).reshape(H, E * 2 * D).astype(jnp.bfloat16)
    bf = jnp.stack([bq, bk], axis=1).reshape(1, E * 2 * D).astype(jnp.float32)
    return Wf, bf


def _vmem_capacity_bytes():
    try:
        cap = getattr(pltpu.get_tpu_info(), "vmem_capacity_bytes", None)
        if cap:
            return int(cap)
    except Exception:
        pass
    return 64 * 1024 * 1024          # conservative fallback (v7x per-TC size)


def _estimate_vmem_bytes(GB, Sp, H, D, out_itemsize, rope, tril):
    """Per-grid-step VMEM demand, including x2 double buffering on pipelined
    blocks plus the live f32 intermediates inside the kernel body."""
    w2 = 2 * D
    total = 2 * Sp * H * 2                        # hidden block (bf16)
    total += 2 * (Sp * 4 + Sp * 4)                # mask column + penalty row
    total += 2 * (H * GB * w2 * 2 + GB * w2 * 4)  # weights (bf16) + bias (f32)
    if rope:
        total += 2 * 2 * Sp * D * 4               # cos / sin tables
    if tril:
        total += 2 * Sp * Sp * 4                  # resident tril penalty slab
    total += 2 * GB * Sp * Sp * out_itemsize      # output block
    total += Sp * GB * w2 * 4                     # live: f32 projection
    total += 2 * Sp * Sp * 4                      # live: score + penalty temps
    if rope:
        total += 4 * Sp * D * 4                   # live: rotated q/k + swaps
    return total


def _pick_group_block(E, Sp, H, D, out_itemsize, rope, tril, budget_bytes, cap=8):
    """Largest divisor of E (<= cap, so the static unroll stays small) whose
    per-step working set fits the budget."""
    best = 1
    for gb in range(1, min(E, cap) + 1):
        if E % gb == 0 and _estimate_vmem_bytes(
                gb, Sp, H, D, out_itemsize, rope, tril) <= budget_bytes:
            best = gb
    return best
    # TODO(synk): for very large Sp even GB=1 may exceed VMEM; query-axis
    # tiling would be needed in that regime.


def _global_pointer_head(h_pad, m_col, pen_row, W, b, cos_t, sin_t, tri_pen, *,
                         ent_type_size, head_size, rope, tril, scale, out_dtype,
                         group_block=None):
    B, Sp, H = h_pad.shape
    E, D = ent_type_size, head_size
    Dh = D // 2
    Wf, bf = _prep_head_params(W, b, E, D, rope, scale)

    out_itemsize = np.dtype(out_dtype).itemsize
    vmem_cap = _vmem_capacity_bytes()
    GB = group_block if group_block is not None else _pick_group_block(
        E, Sp, H, D, out_itemsize, rope, tril, budget_bytes=vmem_cap // 2)
    assert E % GB == 0
    n_gt = E // GB

    kernel = functools.partial(_gp_head_kernel, GB=GB, D=D, Dh=Dh,
                               rope=rope, tril=tril)

    in_specs = [
        pl.BlockSpec((1, Sp, H), lambda bi, gi: (bi, 0, 0)),        # hidden
        pl.BlockSpec((1, Sp, 1), lambda bi, gi: (bi, 0, 0)),        # key mask col
        pl.BlockSpec((1, 1, Sp), lambda bi, gi: (bi, 0, 0)),        # pad penalty row
        pl.BlockSpec((H, GB * 2 * D), lambda bi, gi: (0, gi)),      # weights
        pl.BlockSpec((1, GB * 2 * D), lambda bi, gi: (0, gi)),      # bias
    ]
    args = [h_pad, m_col, pen_row, Wf, bf]
    if rope:
        in_specs += [pl.BlockSpec((Sp, D), lambda bi, gi: (0, 0)),  # cos table
                     pl.BlockSpec((Sp, D), lambda bi, gi: (0, 0))]  # sin table
        args += [cos_t, sin_t]
    if tril:
        in_specs += [pl.BlockSpec((Sp, Sp), lambda bi, gi: (0, 0))]  # tril slab
        args += [tri_pen]

    grid_spec = pltpu.PrefetchScalarGridSpec(
        num_scalar_prefetch=0,
        grid=(B, n_gt),
        in_specs=in_specs,
        out_specs=pl.BlockSpec((1, GB, Sp, Sp), lambda bi, gi: (bi, gi, 0, 0)),
    )

    return pl.pallas_call(
        kernel,
        out_shape=jax.ShapeDtypeStruct((B, E, Sp, Sp), out_dtype),
        grid_spec=grid_spec,
        compiler_params=pltpu.CompilerParams(
            dimension_semantics=("parallel", "parallel"),
            vmem_limit_bytes=min(int(vmem_cap * 0.625), 96 * 1024 * 1024)),
    )(*args)


def gplinker_pallas(hidden, attn_mask, gp_params, len_schema, *, head_size=64,
                    out_dtype=jnp.float32, group_block=None):
    """Fused GPLinker forward (mention / so_head / so_tail GlobalPointer heads).

    gp_params[name] = (W, b) with W pre-transposed to (H, E*2*D), columns
    ordered like the torch dense output ([q(D) | k(D)] per entity type).
    Returns (mention (B,2,S,S), so_head (B,L,S,S), so_tail (B,L,S,S)) in
    `out_dtype` (f32 matches the torch module; bf16 halves HBM writeback).
    """
    B, S, H = hidden.shape
    D = head_size
    Dh = D // 2
    scale = 1.0 / math.sqrt(D)
    Sp = ((S + 127) // 128) * 128               # lane-dense sequence padding

    h_pad = jnp.zeros((B, Sp, H), jnp.bfloat16)
    h_pad = h_pad.at[:, :S, :].set(hidden.astype(jnp.bfloat16))
    mask_f = attn_mask.astype(jnp.float32)
    m_col = jnp.zeros((B, Sp, 1), jnp.float32)                  # key-axis mask
    m_col = m_col.at[:, :S, 0].set(mask_f)
    pen_row = jnp.full((B, 1, Sp), INF * scale, jnp.float32)    # padding penalty
    pen_row = pen_row.at[:, 0, :S].set((1.0 - mask_f) * (INF * scale))

    # RoPE tables, full-width (Sp, D): [cos|cos] and [-sin|+sin] for the
    # in-kernel half-swap rotation.  Shared across batch; mention head only.
    pos = jnp.arange(Sp, dtype=jnp.float32)[:, None]
    theta = pos * (10000.0 ** (-2.0 * jnp.arange(Dh, dtype=jnp.float32) / D))
    cos_t = jnp.concatenate([jnp.cos(theta), jnp.cos(theta)], axis=1)
    sin_t = jnp.concatenate([-jnp.sin(theta), jnp.sin(theta)], axis=1)

    # Pre-scaled lower-triangular penalty slab (VMEM-resident via constant
    # index_map) — avoids rebuilding iota/compare/select every grid step.
    row = jnp.arange(Sp, dtype=jnp.int32)[:, None]
    col = jnp.arange(Sp, dtype=jnp.int32)[None, :]
    tri_pen = jnp.where(row > col, jnp.float32(INF * scale), jnp.float32(0.0))

    def run(name, E, rope, tril):
        Wh, bh = gp_params[name]
        return _global_pointer_head(
            h_pad, m_col, pen_row, Wh, bh, cos_t, sin_t, tri_pen,
            ent_type_size=E, head_size=D, rope=rope, tril=tril, scale=scale,
            out_dtype=out_dtype, group_block=group_block)

    mention = run('mention', 2, True, True)
    so_head = run('head', len_schema, False, False)
    so_tail = run('tail', len_schema, False, False)

    if Sp != S:   # crop lane padding (no-op when S is already a multiple of 128)
        mention = mention[:, :, :S, :S]
        so_head = so_head[:, :, :S, :S]
        so_tail = so_tail[:, :, :S, :S]
    return mention, so_head, so_tail


# ----------------------------------------------------------------------------
# Pure-JAX reference (mirrors the PyTorch GlobalPointer forward exactly)
# ----------------------------------------------------------------------------
def global_pointer_ref(hidden, attn_mask, params, *, ent_type_size, head_size,
                       rope=True, tril_mask=True):
    B, S, H = hidden.shape
    E, D = ent_type_size, head_size
    W, b = params
    out = jnp.einsum('bsh,ho->bso', hidden, W,
                     precision=jax.lax.Precision.HIGHEST) + b
    out = out.reshape(B, S, E, 2 * D)
    qw, kw = out[..., :D], out[..., D:]
    if rope:
        pos = jnp.arange(S, dtype=jnp.float32)[:, None]
        theta = pos * (10000.0 ** (-2.0 * jnp.arange(D // 2, dtype=jnp.float32) / D))
        cos_pos = jnp.repeat(jnp.cos(theta), 2, axis=-1)[None, :, None, :]
        sin_pos = jnp.repeat(jnp.sin(theta), 2, axis=-1)[None, :, None, :]

        def rot(x):
            x2 = jnp.stack([-x[..., 1::2], x[..., ::2]], axis=-1).reshape(x.shape)
            return x * cos_pos + x2 * sin_pos

        qw, kw = rot(qw), rot(kw)
    logits = jnp.einsum('bmhd,bnhd->bhmn', qw, kw,
                        precision=jax.lax.Precision.HIGHEST)
    pad = attn_mask.astype(jnp.float32)[:, None, None, :]
    logits = logits * pad - (1.0 - pad) * INF
    if tril_mask:
        tri = jnp.tril(jnp.ones((S, S), jnp.float32), k=-1)
        logits = logits - tri * INF
    return logits / D ** 0.5


if __name__ == "__main__":
    B, S, H, D = 2, 8, 1024, 64
    LEN_SCHEMA = 3
    VOCAB = 50

    root = jax.random.PRNGKey(0)
    k_emb, k_tok, kw1, kb1, kw2, kb2, kw3, kb3 = jax.random.split(root, 8)

    enc_emb = jax.random.normal(k_emb, (VOCAB, H), dtype=jnp.float32)
    token_ids = jax.random.randint(k_tok, (B, S), 0, VOCAB)
    mask_ids = jnp.array([[1, 1, 1, 1, 1, 1, 1, 1],
                          [1, 1, 1, 1, 1, 0, 0, 0]], dtype=jnp.float32)

    def make_params(kw, kb, E):
        bound = 1.0 / math.sqrt(H)
        W = jax.random.uniform(kw, (H, E * 2 * D), jnp.float32, -bound, bound)
        b = jax.random.uniform(kb, (E * 2 * D,), jnp.float32, -bound, bound)
        return W, b

    gp_params = {
        'mention': make_params(kw1, kb1, 2),
        'head': make_params(kw2, kb2, LEN_SCHEMA),
        'tail': make_params(kw3, kb3, LEN_SCHEMA),
    }

    # TODO(synk): real pretrained transformer encoder not implemented; using a
    # deterministic embedding-lookup stub (plain JAX glue) as the encoder.
    last_hidden = enc_emb[token_ids]                      # (B, S, H)

    mention, so_head, so_tail = gplinker_pallas(
        last_hidden, mask_ids, gp_params, LEN_SCHEMA)
    jax.block_until_ready((mention, so_head, so_tail))

    # Sanity check against the pure-JAX (f32) reference of the torch forward.
    # Kernel matmuls run in bf16 with f32 accumulation -> slightly looser tol.
    ref_mention = global_pointer_ref(last_hidden, mask_ids, gp_params['mention'],
                                     ent_type_size=2, head_size=D,
                                     rope=True, tril_mask=True)
    ref_head = global_pointer_ref(last_hidden, mask_ids, gp_params['head'],
                                  ent_type_size=LEN_SCHEMA, head_size=D,
                                  rope=False, tril_mask=False)
    ref_tail = global_pointer_ref(last_hidden, mask_ids, gp_params['tail'],
                                  ent_type_size=LEN_SCHEMA, head_size=D,
                                  rope=False, tril_mask=False)

    np.testing.assert_allclose(np.asarray(mention), np.asarray(ref_mention),
                               rtol=2e-2, atol=2e-2)
    np.testing.assert_allclose(np.asarray(so_head), np.asarray(ref_head),
                               rtol=2e-2, atol=2e-2)
    np.testing.assert_allclose(np.asarray(so_tail), np.asarray(ref_tail),
                               rtol=2e-2, atol=2e-2)

    assert mention.shape == (B, 2, S, S)
    assert so_head.shape == (B, LEN_SCHEMA, S, S)
    assert so_tail.shape == (B, LEN_SCHEMA, S, S)

    # Exercise the half-writeback (bf16 scores) path as well (looser tolerance:
    # the only extra error is the final f32 -> bf16 cast of the logits).
    m16, h16, t16 = gplinker_pallas(last_hidden, mask_ids, gp_params, LEN_SCHEMA,
                                    out_dtype=jnp.bfloat16)
    jax.block_until_ready((m16, h16, t16))
    np.testing.assert_allclose(np.asarray(m16.astype(jnp.float32)),
                               np.asarray(ref_mention), rtol=5e-2, atol=5e-2)
    np.testing.assert_allclose(np.asarray(h16.astype(jnp.float32)),
                               np.asarray(ref_head), rtol=5e-2, atol=5e-2)
    np.testing.assert_allclose(np.asarray(t16.astype(jnp.float32)),
                               np.asarray(ref_tail), rtol=5e-2, atol=5e-2)

    print("KERNEL_OK")
</pallas_src>

<mosaic_0001>
module attributes {stable_mosaic.version = 11 : i64} {
  func.func @_gp_head_kernel(%arg0: i32, %arg1: i32, %arg2: memref<1x128x1024xbf16, #tpu.memory_space<vmem>>, %arg3: memref<1x128x1xf32, #tpu.memory_space<vmem>>, %arg4: memref<1x1x128xf32, #tpu.memory_space<vmem>>, %arg5: memref<1024x256xbf16, #tpu.memory_space<vmem>>, %arg6: memref<1x256xf32, #tpu.memory_space<vmem>>, %arg7: memref<128x64xf32, #tpu.memory_space<vmem>>, %arg8: memref<128x64xf32, #tpu.memory_space<vmem>>, %arg9: memref<128x128xf32, #tpu.memory_space<vmem>>, %arg10: memref<1x2x128x128xf32, #tpu.memory_space<vmem>>) attributes {dimension_semantics = [#tpu.dimension_semantics<parallel>, #tpu.dimension_semantics<parallel>], iteration_bounds = array<i64: 2, 1>, scalar_prefetch = 0 : i64, scratch_operands = 0 : i64, tpu.core_type = #tpu.core_type<tc>, window_params = [{transform_indices = @transform_0, window_bounds = array<i64: 1, 128, 1024>}, {transform_indices = @transform_1, window_bounds = array<i64: 1, 128, 1>}, {transform_indices = @transform_2, window_bounds = array<i64: 1, 1, 128>}, {transform_indices = @transform_3, window_bounds = array<i64: 1024, 256>}, {transform_indices = @transform_4, window_bounds = array<i64: 1, 256>}, {pipeline_mode = #tpu.pipeline_mode<synchronous>, transform_indices = @transform_5, window_bounds = array<i64: 128, 64>}, {pipeline_mode = #tpu.pipeline_mode<synchronous>, transform_indices = @transform_6, window_bounds = array<i64: 128, 64>}, {pipeline_mode = #tpu.pipeline_mode<synchronous>, transform_indices = @transform_7, window_bounds = array<i64: 128, 128>}, {transform_indices = @transform_8, window_bounds = array<i64: 1, 2, 128, 128>}]} {
    %c0 = arith.constant 0 : index
    %c0_0 = arith.constant 0 : index
    %c0_1 = arith.constant 0 : index
    %0 = vector.load %arg2[%c0, %c0_0, %c0_1] : memref<1x128x1024xbf16, #tpu.memory_space<vmem>>, vector<1x128x1024xbf16>
    %1 = vector.shape_cast %0 : vector<1x128x1024xbf16> to vector<128x1024xbf16>
    %c0_2 = arith.constant 0 : index
    %c0_3 = arith.constant 0 : index
    %2 = vector.load %arg5[%c0_2, %c0_3] : memref<1024x256xbf16, #tpu.memory_space<vmem>>, vector<1024x256xbf16>
    %cst = arith.constant dense<0.000000e+00> : vector<128x256xf32>
    %3 = tpu.matmul %1, %2, %cst {dimension_numbers = #tpu.dot_dimension_numbers<[1], [0], [0], [1], [0, 0, 1, 1], [], []>} : vector<128x1024xbf16>, vector<1024x256xbf16>, vector<128x256xf32> -> vector<128x256xf32>
    %c0_4 = arith.constant 0 : index
    %c0_5 = arith.constant 0 : index
    %4 = vector.load %arg6[%c0_4, %c0_5] : memref<1x256xf32, #tpu.memory_space<vmem>>, vector<1x256xf32>
    %5 = vector.broadcast %4 : vector<1x256xf32> to vector<128x256xf32>
    %6 = arith.addf %3, %5 : vector<128x256xf32>
    %c0_6 = arith.constant 0 : index
    %c0_7 = arith.constant 0 : index
    %c0_8 = arith.constant 0 : index
    %7 = vector.load %arg3[%c0_6, %c0_7, %c0_8] : memref<1x128x1xf32, #tpu.memory_space<vmem>>, vector<1x128x1xf32>
    %8 = vector.shape_cast %7 : vector<1x128x1xf32> to vector<128x1xf32>
    %c0_9 = arith.constant 0 : index
    %c0_10 = arith.constant 0 : index
    %c0_11 = arith.constant 0 : index
    %9 = vector.load %arg4[%c0_9, %c0_10, %c0_11] : memref<1x1x128xf32, #tpu.memory_space<vmem>>, vector<1x1x128xf32>
    %10 = vector.shape_cast %9 : vector<1x1x128xf32> to vector<1x128xf32>
    %c0_12 = arith.constant 0 : index
    %c0_13 = arith.constant 0 : index
    %11 = vector.load %arg9[%c0_12, %c0_13] : memref<128x128xf32, #tpu.memory_space<vmem>>, vector<128x128xf32>
    %12 = vector.broadcast %10 : vector<1x128xf32> to vector<128x128xf32>
    %13 = arith.addf %12, %11 : vector<128x128xf32>
    %c0_14 = arith.constant 0 : index
    %c0_15 = arith.constant 0 : index
    %14 = vector.load %arg7[%c0_14, %c0_15] : memref<128x64xf32, #tpu.memory_space<vmem>>, vector<128x64xf32>
    %c0_16 = arith.constant 0 : index
    %c0_17 = arith.constant 0 : index
    %15 = vector.load %arg8[%c0_16, %c0_17] : memref<128x64xf32, #tpu.memory_space<vmem>>, vector<128x64xf32>
    %16 = vector.extract_strided_slice %6 {offsets = [0, 0], sizes = [128, 64], strides = [1, 1]} : vector<128x256xf32> to vector<128x64xf32>
    %17 = vector.extract_strided_slice %6 {offsets = [0, 64], sizes = [128, 64], strides = [1, 1]} : vector<128x256xf32> to vector<128x64xf32>
    %18 = arith.mulf %16, %14 : vector<128x64xf32>
    %19 = vector.extract_strided_slice %16 {offsets = [0, 32], sizes = [128, 32], strides = [1, 1]} : vector<128x64xf32> to vector<128x32xf32>
    %20 = vector.extract_strided_slice %16 {offsets = [0, 0], sizes = [128, 32], strides = [1, 1]} : vector<128x64xf32> to vector<128x32xf32>
    %21 = tpu.concatenate %19, %20 in 1 : vector<128x32xf32>, vector<128x32xf32> -> vector<128x64xf32>
    %22 = arith.mulf %21, %15 : vector<128x64xf32>
    %23 = arith.addf %18, %22 : vector<128x64xf32>
    %24 = arith.mulf %17, %14 : vector<128x64xf32>
    %25 = vector.extract_strided_slice %17 {offsets = [0, 32], sizes = [128, 32], strides = [1, 1]} : vector<128x64xf32> to vector<128x32xf32>
    %26 = vector.extract_strided_slice %17 {offsets = [0, 0], sizes = [128, 32], strides = [1, 1]} : vector<128x64xf32> to vector<128x32xf32>
    %27 = tpu.concatenate %25, %26 in 1 : vector<128x32xf32>, vector<128x32xf32> -> vector<128x64xf32>
    %28 = arith.mulf %27, %15 : vector<128x64xf32>
    %29 = arith.addf %24, %28 : vector<128x64xf32>
    %30 = vector.broadcast %8 : vector<128x1xf32> to vector<128x64xf32>
    %31 = arith.mulf %29, %30 : vector<128x64xf32>
    %32 = arith.truncf %23 : vector<128x64xf32> to vector<128x64xbf16>
    %33 = arith.truncf %31 : vector<128x64xf32> to vector<128x64xbf16>
    %cst_18 = arith.constant dense<0.000000e+00> : vector<128x128xf32>
    %34 = tpu.matmul %32, %33, %cst_18 {dimension_numbers = #tpu.dot_dimension_numbers<[1], [1], [0], [0], [0, 0, 1, 0], [], []>} : vector<128x64xbf16>, vector<128x64xbf16>, vector<128x128xf32> -> vector<128x128xf32>
    %35 = arith.subf %34, %13 : vector<128x128xf32>
    %c0_19 = arith.constant 0 : index
    %c0_20 = arith.constant 0 : index
    %c0_21 = arith.constant 0 : index
    %c0_22 = arith.constant 0 : index
    %36 = vector.load %arg10[%c0_19, %c0_20, %c0_21, %c0_22] : memref<1x2x128x128xf32, #tpu.memory_space<vmem>>, vector<1x1x128x128xf32>
    %37 = vector.shape_cast %36 : vector<1x1x128x128xf32> to vector<128x128xf32>
    %38 = vector.shape_cast %35 : vector<128x128xf32> to vector<1x1x128x128xf32>
    tpu.vector_store %arg10[%c0_19, %c0_20, %c0_21, %c0_22], %38 {strides = array<i32>} : memref<1x2x128x128xf32, #tpu.memory_space<vmem>>, vector<1x1x128x128xf32>,
    %39 = vector.extract_strided_slice %6 {offsets = [0, 128], sizes = [128, 64], strides = [1, 1]} : vector<128x256xf32> to vector<128x64xf32>
    %40 = vector.extract_strided_slice %6 {offsets = [0, 192], sizes = [128, 64], strides = [1, 1]} : vector<128x256xf32> to vector<128x64xf32>
    %41 = arith.mulf %39, %14 : vector<128x64xf32>
    %42 = vector.extract_strided_slice %39 {offsets = [0, 32], sizes = [128, 32], strides = [1, 1]} : vector<128x64xf32> to vector<128x32xf32>
    %43 = vector.extract_strided_slice %39 {offsets = [0, 0], sizes = [128, 32], strides = [1, 1]} : vector<128x64xf32> to vector<128x32xf32>
    %44 = tpu.concatenate %42, %43 in 1 : vector<128x32xf32>, vector<128x32xf32> -> vector<128x64xf32>
    %45 = arith.mulf %44, %15 : vector<128x64xf32>
    %46 = arith.addf %41, %45 : vector<128x64xf32>
    %47 = arith.mulf %40, %14 : vector<128x64xf32>
    %48 = vector.extract_strided_slice %40 {offsets = [0, 32], sizes = [128, 32], strides = [1, 1]} : vector<128x64xf32> to vector<128x32xf32>
    %49 = vector.extract_strided_slice %40 {offsets = [0, 0], sizes = [128, 32], strides = [1, 1]} : vector<128x64xf32> to vector<128x32xf32>
    %50 = tpu.concatenate %48, %49 in 1 : vector<128x32xf32>, vector<128x32xf32> -> vector<128x64xf32>
    %51 = arith.mulf %50, %15 : vector<128x64xf32>
    %52 = arith.addf %47, %51 : vector<128x64xf32>
    %53 = vector.broadcast %8 : vector<128x1xf32> to vector<128x64xf32>
    %54 = arith.mulf %52, %53 : vector<128x64xf32>
    %55 = arith.truncf %46 : vector<128x64xf32> to vector<128x64xbf16>
    %56 = arith.truncf %54 : vector<128x64xf32> to vector<128x64xbf16>
    %cst_23 = arith.constant dense<0.000000e+00> : vector<128x128xf32>
    %57 = tpu.matmul %55, %56, %cst_23 {dimension_numbers = #tpu.dot_dimension_numbers<[1], [1], [0], [0], [0, 0, 1, 0], [], []>} : vector<128x64xbf16>, vector<128x64xbf16>, vector<128x128xf32> -> vector<128x128xf32>
    %58 = arith.subf %57, %13 : vector<128x128xf32>
    %c0_24 = arith.constant 0 : index
    %c1 = arith.constant 1 : index
    %c0_25 = arith.constant 0 : index
    %c0_26 = arith.constant 0 : index
    %59 = vector.load %arg10[%c0_24, %c1, %c0_25, %c0_26] : memref<1x2x128x128xf32, #tpu.memory_space<vmem>>, vector<1x1x128x128xf32>
    %60 = vector.shape_cast %59 : vector<1x1x128x128xf32> to vector<128x128xf32>
    %61 = vector.shape_cast %58 : vector<128x128xf32> to vector<1x1x128x128xf32>
    tpu.vector_store %arg10[%c0_24, %c1, %c0_25, %c0_26], %61 {strides = array<i32>} : memref<1x2x128x128xf32, #tpu.memory_space<vmem>>, vector<1x1x128x128xf32>,
    return
  }
  func.func @transform_0(%arg0: i32, %arg1: i32) -> (i32, i32, i32) {
    %c0_i32 = arith.constant 0 : i32
    %c0_i32_0 = arith.constant 0 : i32
    %c0_i32_1 = arith.constant 0 : i32
    return %arg0, %c0_i32, %c0_i32_0 : i32, i32, i32
  }
  func.func @transform_1(%arg0: i32, %arg1: i32) -> (i32, i32, i32) {
    %c0_i32 = arith.constant 0 : i32
    %c0_i32_0 = arith.constant 0 : i32
    %c0_i32_1 = arith.constant 0 : i32
    return %arg0, %c0_i32, %c0_i32_0 : i32, i32, i32
  }
  func.func @transform_2(%arg0: i32, %arg1: i32) -> (i32, i32, i32) {
    %c0_i32 = arith.constant 0 : i32
    %c0_i32_0 = arith.constant 0 : i32
    %c0_i32_1 = arith.constant 0 : i32
    return %arg0, %c0_i32, %c0_i32_0 : i32, i32, i32
  }
  func.func @transform_3(%arg0: i32, %arg1: i32) -> (i32, i32) {
    %c0_i32 = arith.constant 0 : i32
    %c0_i32_0 = arith.constant 0 : i32
    return %c0_i32, %arg1 : i32, i32
  }
  func.func @transform_4(%arg0: i32, %arg1: i32) -> (i32, i32) {
    %c0_i32 = arith.constant 0 : i32
    %c0_i32_0 = arith.constant 0 : i32
    return %c0_i32, %arg1 : i32, i32
  }
  func.func @transform_5(%arg0: i32, %arg1: i32) -> (i32, i32) {
    %c0_i32 = arith.constant 0 : i32
    %c0_i32_0 = arith.constant 0 : i32
    %c0_i32_1 = arith.constant 0 : i32
    return %c0_i32, %c0_i32_0 : i32, i32
  }
  func.func @transform_6(%arg0: i32, %arg1: i32) -> (i32, i32) {
    %c0_i32 = arith.constant 0 : i32
    %c0_i32_0 = arith.constant 0 : i32
    %c0_i32_1 = arith.constant 0 : i32
    return %c0_i32, %c0_i32_0 : i32, i32
  }
  func.func @transform_7(%arg0: i32, %arg1: i32) -> (i32, i32) {
    %c0_i32 = arith.constant 0 : i32
    %c0_i32_0 = arith.constant 0 : i32
    %c0_i32_1 = arith.constant 0 : i32
    return %c0_i32, %c0_i32_0 : i32, i32
  }
  func.func @transform_8(%arg0: i32, %arg1: i32) -> (i32, i32, i32, i32) {
    %c0_i32 = arith.constant 0 : i32
    %c0_i32_0 = arith.constant 0 : i32
    %c0_i32_1 = arith.constant 0 : i32
    return %arg0, %arg1, %c0_i32, %c0_i32_0 : i32, i32, i32, i32
  }
}

</mosaic_0001>

<llo_original>
// kernel: tpu_custom_call.1
$region0: #{tpu_custom_call.1}
  #allocation0 [shape = 'u32[]', space=smem, size = 0x4, offset = 0x4, fixed_abs, tag = 'smem constant byte address 0x4 - core index']
  #allocation1 [shape = 'u32[144,128]{1,0:T(1,128)}', space=vmem, size = 0x12000, scoped, tag = 'internal scratch']
  %s0 = inlined_call_operand.hbm [shape: bf16[2,128,1024], index: 0, kind: input, shape index: {}]
  %s1 = inlined_call_operand.vmem [shape: f32[2,128,1], index: 1, kind: input, shape index: {}]
  %s2 = inlined_call_operand.vmem [shape: f32[2,1,128], index: 2, kind: input, shape index: {}]
  %s3 = inlined_call_operand.hbm [shape: bf16[1024,256], index: 3, kind: input, shape index: {}]
  %s4 = inlined_call_operand.vmem [shape: f32[1,256], index: 4, kind: input, shape index: {}]
  %s5 = inlined_call_operand.vmem [shape: f32[128,64], index: 5, kind: input, shape index: {}]
  %s6 = inlined_call_operand.vmem [shape: f32[128,64], index: 6, kind: input, shape index: {}]
  %s7 = inlined_call_operand.vmem [shape: f32[128,128], index: 7, kind: input, shape index: {}]
  %s8 = inlined_call_operand.hbm [shape: f32[2,2,128,128], index: 8, kind: output, shape index: {}]
  %s9 = sld [smem:[#allocation0]]
  $region73: #{tpu_custom_call.1} parent=0
    _
  %s11 = ssub.s32 1, %s9
  %s12 = scalar_select 0, %s11, %s9
  $region1: #{tpu_custom_call.1} parent=0
    #allocation2 [shape = 'u8[524288]{0}', space=vmem, size = 0x80000, scoped, tag = 'input window, operand 0']
    #allocation3 [shape = 's32[2]{0}', space=sflag, size = 0x8, scoped, tag = 'scoped memory for tpu_custom_call.1']
    #allocation4 [shape = 's32[2]{0}', space=sflag, size = 0x8, scoped, tag = 'scoped memory for tpu_custom_call.1']
    #allocation5 [shape = 'u8[524288]{0}', space=vmem, size = 0x80000, scoped, tag = 'input window, operand 3, single buffered']
    #allocation6 [shape = 's32[1]{0}', space=sflag, size = 0x4, scoped, tag = 'scoped memory for tpu_custom_call.1']
    #allocation7 [shape = 'u8[262144]{0}', space=vmem, size = 0x40000, scoped, tag = 'output window, operand 0']
    %13 = vsyncpa [#allocation3], 0
    %s14 = scalar_lea.sflag [#allocation3], 1
    %15 = vsyncpa %s14, 0
    %16 = vsyncpa [#allocation6], 0
    %17 = vsyncpa [#allocation4], 0
    %s18 = scalar_lea.sflag [#allocation4], 1
    %19 = vsyncpa %s18, 0
    loop: start=0, step=1, limit=4
    $region2: #{tpu_custom_call.1} parent=1 // loop_pre_header
      _
    $region3: #{tpu_custom_call.1} parent=1 // loop_header
      %s21 = sphi 0, %s25
      %p22 = scmp.ge.s32.totalorder %s21, 4
      %s28 = sphi 0, %s40
      %s29 = sphi 0, %s36
      %s30 = sphi 0, %s28
      %s31 = sphi 0, %s29
      %s32 = sphi 0, %s30
      %s33 = sphi 0, %s31
      %s43 = sphi 0, %s45
      %s46 = sphi 0, %s43
      %s47 = sphi 0, %s46
      %s63 = sphi 0, %s47
      %s69 = sphi 0, %s71
      %s72 = sphi 0, %s69
      %s73 = sphi 0, %s72
      %s89 = sphi 0, %s73
      %s95 = sphi 0, %s97
      %s98 = sphi 0, %s95
      %s99 = sphi 0, %s98
      %s115 = sphi 0, %s99
      %s121 = sphi 0, %s123
      %s124 = sphi 0, %s121
      %s125 = sphi 0, %s124
      %s141 = sphi 0, %s125
      %s147 = sphi 0, %s149
      %s150 = sphi 0, %s147
      %s151 = sphi 0, %s150
      %s167 = sphi 0, %s151
      %s171 = sphi 0, %s171
      %s173 = sphi 0, %s171
      %s174 = sphi 0, %s173
      %s188 = sphi 0, %s174
      %s192 = sphi 0, %s192
      %s194 = sphi 0, %s192
      %s195 = sphi 0, %s194
      %s209 = sphi 0, %s195
      %s213 = sphi 0, %s213
      %s215 = sphi 0, %s213
      %s216 = sphi 0, %s215
      %s230 = sphi 0, %s216
      %s238 = sphi 0, %s240
      %s241 = sphi 0, %s238
      %s242 = sphi 0, %s241
      %s258 = sphi 0, %s242
    $region4: #{tpu_custom_call.1} parent=1 // loop_header_branch
      %24 = sbr.rel (%p22) target = $region8
    $region5: #{tpu_custom_call.1} parent=1 // loop_body
      %s26 = ssub.s32 %s21, 1
      %s27 = ssub.s32 %s21, 2
      %s34 = sadd.s32 1, %s29
      %p35 = scmp.ge.s32.totalorder %s34, 1
      %s36 = scalar_select %p35, 0, %s34
      %s37 = sadd.s32 1, %s28
      %s38 = scalar_select %p35, %s37, %s28
      %p39 = scmp.ge.s32.totalorder %s38, 2
      %s40 = scalar_select %p39, 0, %s38
      %s41 = ssub.s32 %s28, %s40
      %p42 = scmp.eq.s32.totalorder %s41, 0
      %s44 = sadd.s32 %s43, 1
      %s45 = scalar_select %p42, %s43, %s44
      %p48 = pneg %p42
      %p49 = scmp.eq.s32.totalorder %s21, 1
      %p50 = por %p48, %p49
      %p51 = scmp.ne.s32.totalorder %s43, %s46
      %p52 = scmp.eq.s32.totalorder %s21, 0
      %p53 = por %p51, %p52
      %p54 = scmp.ne.s32.totalorder %s43, %s46
      %p55 = scmp.eq.s32.totalorder %s26, 1
      %p56 = por %p54, %p55
      %p57 = scmp.ne.s32.totalorder %s46, %s47
      %p58 = scmp.eq.s32.totalorder %s26, 0
      %p59 = por %p57, %p58
      %p60 = scmp.ne.s32.totalorder %s46, %s47
      %p61 = scmp.eq.s32.totalorder %s27, 1
      %p62 = por %p60, %p61
      %p64 = scmp.ne.s32.totalorder %s47, %s63
      %p65 = scmp.eq.s32.totalorder %s27, 0
      %p66 = por %p64, %p65
      %s67 = ssub.s32 %s28, %s40
      %p68 = scmp.eq.s32.totalorder %s67, 0
      %s70 = sadd.s32 %s69, 1
      %s71 = scalar_select %p68, %s69, %s70
      %p74 = pneg %p68
      %p75 = scmp.eq.s32.totalorder %s21, 1
      %p76 = por %p74, %p75
      %p77 = scmp.ne.s32.totalorder %s69, %s72
      %p78 = scmp.eq.s32.totalorder %s21, 0
      %p79 = por %p77, %p78
      %p80 = scmp.ne.s32.totalorder %s69, %s72
      %p81 = scmp.eq.s32.totalorder %s26, 1
      %p82 = por %p80, %p81
      %p83 = scmp.ne.s32.totalorder %s72, %s73
      %p84 = scmp.eq.s32.totalorder %s26, 0
      %p85 = por %p83, %p84
      %p86 = scmp.ne.s32.totalorder %s72, %s73
      %p87 = scmp.eq.s32.totalorder %s27, 1
      %p88 = por %p86, %p87
      %p90 = scmp.ne.s32.totalorder %s73, %s89
      %p91 = scmp.eq.s32.totalorder %s27, 0
      %p92 = por %p90, %p91
      %s93 = ssub.s32 %s28, %s40
      %p94 = scmp.eq.s32.totalorder %s93, 0
      %s96 = sadd.s32 %s95, 1
      %s97 = scalar_select %p94, %s95, %s96
      %p100 = pneg %p94
      %p101 = scmp.eq.s32.totalorder %s21, 1
      %p102 = por %p100, %p101
      %p103 = scmp.ne.s32.totalorder %s95, %s98
      %p104 = scmp.eq.s32.totalorder %s21, 0
      %p105 = por %p103, %p104
      %p106 = scmp.ne.s32.totalorder %s95, %s98
      %p107 = scmp.eq.s32.totalorder %s26, 1
      %p108 = por %p106, %p107
      %p109 = scmp.ne.s32.totalorder %s98, %s99
      %p110 = scmp.eq.s32.totalorder %s26, 0
      %p111 = por %p109, %p110
      %p112 = scmp.ne.s32.totalorder %s98, %s99
      %p113 = scmp.eq.s32.totalorder %s27, 1
      %p114 = por %p112, %p113
      %p116 = scmp.ne.s32.totalorder %s99, %s115
      %p117 = scmp.eq.s32.totalorder %s27, 0
      %p118 = por %p116, %p117
      %s119 = ssub.s32 %s29, %s36
      %p120 = scmp.eq.s32.totalorder %s119, 0
      %s122 = sadd.s32 %s121, 1
      %s123 = scalar_select %p120, %s121, %s122
      %p126 = pneg %p120
      %p127 = scmp.eq.s32.totalorder %s21, 1
      %p128 = por %p126, %p127
      %p129 = scmp.ne.s32.totalorder %s121, %s124
      %p130 = scmp.eq.s32.totalorder %s21, 0
      %p131 = por %p129, %p130
      %p132 = scmp.ne.s32.totalorder %s121, %s124
      %p133 = scmp.eq.s32.totalorder %s26, 1
      %p134 = por %p132, %p133
      %p135 = scmp.ne.s32.totalorder %s124, %s125
      %p136 = scmp.eq.s32.totalorder %s26, 0
      %p137 = por %p135, %p136
      %p138 = scmp.ne.s32.totalorder %s124, %s125
      %p139 = scmp.eq.s32.totalorder %s27, 1
      %p140 = por %p138, %p139
      %p142 = scmp.ne.s32.totalorder %s125, %s141
      %p143 = scmp.eq.s32.totalorder %s27, 0
      %p144 = por %p142, %p143
      %s145 = ssub.s32 %s29, %s36
      %p146 = scmp.eq.s32.totalorder %s145, 0
      %s148 = sadd.s32 %s147, 1
      %s149 = scalar_select %p146, %s147, %s148
      %p152 = pneg %p146
      %p153 = scmp.eq.s32.totalorder %s21, 1
      %p154 = por %p152, %p153
      %p155 = scmp.ne.s32.totalorder %s147, %s150
      %p156 = scmp.eq.s32.totalorder %s21, 0
      %p157 = por %p155, %p156
      %p158 = scmp.ne.s32.totalorder %s147, %s150
      %p159 = scmp.eq.s32.totalorder %s26, 1
      %p160 = por %p158, %p159
      %p161 = scmp.ne.s32.totalorder %s150, %s151
      %p162 = scmp.eq.s32.totalorder %s26, 0
      %p163 = por %p161, %p162
      %p164 = scmp.ne.s32.totalorder %s150, %s151
      %p165 = scmp.eq.s32.totalorder %s27, 1
      %p166 = por %p164, %p165
      %p168 = scmp.ne.s32.totalorder %s151, %s167
      %p169 = scmp.eq.s32.totalorder %s27, 0
      %p170 = por %p168, %p169
      %s172 = sadd.s32 %s171, 1
      %p175 = scmp.eq.s32.totalorder %s21, 1
      %p176 = scmp.ne.s32.totalorder %s171, %s173
      %p177 = scmp.eq.s32.totalorder %s21, 0
      %p178 = por %p176, %p177
      %p179 = scmp.ne.s32.totalorder %s171, %s173
      %p180 = scmp.eq.s32.totalorder %s26, 1
      %p181 = por %p179, %p180
      %p182 = scmp.ne.s32.totalorder %s173, %s174
      %p183 = scmp.eq.s32.totalorder %s26, 0
      %p184 = por %p182, %p183
      %p185 = scmp.ne.s32.totalorder %s173, %s174
      %p186 = scmp.eq.s32.totalorder %s27, 1
      %p187 = por %p185, %p186
      %p189 = scmp.ne.s32.totalorder %s174, %s188
      %p190 = scmp.eq.s32.totalorder %s27, 0
      %p191 = por %p189, %p190
      %s193 = sadd.s32 %s192, 1
      %p196 = scmp.eq.s32.totalorder %s21, 1
      %p197 = scmp.ne.s32.totalorder %s192, %s194
      %p198 = scmp.eq.s32.totalorder %s21, 0
      %p199 = por %p197, %p198
      %p200 = scmp.ne.s32.totalorder %s192, %s194
      %p201 = scmp.eq.s32.totalorder %s26, 1
      %p202 = por %p200, %p201
      %p203 = scmp.ne.s32.totalorder %s194, %s195
      %p204 = scmp.eq.s32.totalorder %s26, 0
      %p205 = por %p203, %p204
      %p206 = scmp.ne.s32.totalorder %s194, %s195
      %p207 = scmp.eq.s32.totalorder %s27, 1
      %p208 = por %p206, %p207
      %p210 = scmp.ne.s32.totalorder %s195, %s209
      %p211 = scmp.eq.s32.totalorder %s27, 0
      %p212 = por %p210, %p211
      %s214 = sadd.s32 %s213, 1
      %p217 = scmp.eq.s32.totalorder %s21, 1
      %p218 = scmp.ne.s32.totalorder %s213, %s215
      %p219 = scmp.eq.s32.totalorder %s21, 0
      %p220 = por %p218, %p219
      %p221 = scmp.ne.s32.totalorder %s213, %s215
      %p222 = scmp.eq.s32.totalorder %s26, 1
      %p223 = por %p221, %p222
      %p224 = scmp.ne.s32.totalorder %s215, %s216
      %p225 = scmp.eq.s32.totalorder %s26, 0
      %p226 = por %p224, %p225
      %p227 = scmp.ne.s32.totalorder %s215, %s216
      %p228 = scmp.eq.s32.totalorder %s27, 1
      %p229 = por %p227, %p228
      %p231 = scmp.ne.s32.totalorder %s216, %s230
      %p232 = scmp.eq.s32.totalorder %s27, 0
      %p233 = por %p231, %p232
      %s234 = ssub.s32 %s28, %s40
      %s235 = ssub.s32 %s29, %s36
      %s236 = sor.u32 %s234, %s235
      %p237 = scmp.eq.s32.totalorder %s236, 0
      %s239 = sadd.s32 %s238, 1
      %s240 = scalar_select %p237, %s238, %s239
      %p243 = pneg %p237
      %p244 = scmp.eq.s32.totalorder %s21, 1
      %p245 = por %p243, %p244
      %p246 = scmp.ne.s32.totalorder %s238, %s241
      %p247 = scmp.eq.s32.totalorder %s21, 0
      %p248 = por %p246, %p247
      %p249 = scmp.ne.s32.totalorder %s238, %s241
      %p250 = scmp.eq.s32.totalorder %s26, 1
      %p251 = por %p249, %p250
      %p252 = scmp.ne.s32.totalorder %s241, %s242
      %p253 = scmp.eq.s32.totalorder %s26, 0
      %p254 = por %p252, %p253
      %p255 = scmp.ne.s32.totalorder %s241, %s242
      %p256 = scmp.eq.s32.totalorder %s27, 1
      %p257 = por %p255, %p256
      %p259 = scmp.ne.s32.totalorder %s242, %s258
      %p260 = scmp.eq.s32.totalorder %s27, 0
      %p261 = por %p259, %p260
      %p262 = scmp.le.s32.totalorder 1, %s21
      %p263 = scmp.lt.s32.totalorder %s21, 3
      %p264 = pnand %p262, %p263
      %p265 = pneg %p264
      // Predicated region
      $region9: #{tpu_custom_call.1} parent=5 // pred_check
        _
      $region10: #{tpu_custom_call.1} parent=5 // pred_check_branch
        %267 = sbr.rel (%p264) target = $region12
      $region11: #{tpu_custom_call.1} parent=5 // pred_region
        %s268 = ssub.s32 %s21, 1
        // Predicated region
        $region13: #{tpu_custom_call.1} parent=11 // pred_check
          %p269 = pneg %p137
        $region14: #{tpu_custom_call.1} parent=11 // pred_check_branch
          %271 = sbr.rel (%p269) target = $region16
        $region15: #{tpu_custom_call.1} parent=11 // pred_region
          %s272 = smul.u32 2, %s31
          %s274 = ssub.s32 16384, 16384
          %275 = vsyncadd [#allocation6], %s274
          %s276 = smul.addr %s272, 64
          %s277 = scalar_lea.hbm %s3, %s276
          %s278 = sshll.u32 [#allocation5], 4
          %s279 = int_to_ptr.vmem [resolvable:$true] %s278
          %284 = dma.hbm_to_vmem [thread:$0]  %s277, 16384, %s279, [#allocation6], 128, 128, 8
        $region16: #{tpu_custom_call.1} parent=11 // pred_fallthru
          _
        // Predicated region
        $region17: #{tpu_custom_call.1} parent=11 // pred_check
          %p285 = pneg %p163
        $region18: #{tpu_custom_call.1} parent=11 // pred_check_branch
          %287 = sbr.rel (%p285) target = $region20
        $region19: #{tpu_custom_call.1} parent=11 // pred_region
          %s288 = smul.u32 2, %s31
          %p289 = scmp.lt.s32.totalorder %s288, 1
          %s290 = scalar_select %p289, %s288, 1
          %s291 = scalar_lea.vmem %s4, %s290
          %s292 = smul.u32 2, %s31
        $region20: #{tpu_custom_call.1} parent=11 // pred_fallthru
          _
        // Predicated region
        $region21: #{tpu_custom_call.1} parent=11 // pred_check
          %p293 = pneg %p184
        $region22: #{tpu_custom_call.1} parent=11 // pred_check_branch
          %295 = sbr.rel (%p293) target = $region24
        $region23: #{tpu_custom_call.1} parent=11 // pred_region
          _
        $region24: #{tpu_custom_call.1} parent=11 // pred_fallthru
          _
        // Predicated region
        $region25: #{tpu_custom_call.1} parent=11 // pred_check
          %p296 = pneg %p205
        $region26: #{tpu_custom_call.1} parent=11 // pred_check_branch
          %298 = sbr.rel (%p296) target = $region28
        $region27: #{tpu_custom_call.1} parent=11 // pred_region
          _
        $region28: #{tpu_custom_call.1} parent=11 // pred_fallthru
          _
        // Predicated region
        $region29: #{tpu_custom_call.1} parent=11 // pred_check
          %p299 = pneg %p226
        $region30: #{tpu_custom_call.1} parent=11 // pred_check_branch
          %301 = sbr.rel (%p299) target = $region32
        $region31: #{tpu_custom_call.1} parent=11 // pred_region
          _
        $region32: #{tpu_custom_call.1} parent=11 // pred_fallthru
          _
      $region12: #{tpu_custom_call.1} parent=5 // pred_fallthru
        _
      %p302 = scmp.lt.s32.totalorder %s21, 2
      // Predicated region
      $region33: #{tpu_custom_call.1} parent=5 // pred_check
        %p303 = pneg %p302
      $region34: #{tpu_custom_call.1} parent=5 // pred_check_branch
        %305 = sbr.rel (%p303) target = $region36
      $region35: #{tpu_custom_call.1} parent=5 // pred_region
        // Predicated region
        $region37: #{tpu_custom_call.1} parent=35 // pred_check
          %p306 = pneg %p53
        $region38: #{tpu_custom_call.1} parent=35 // pred_check_branch
          %308 = sbr.rel (%p306) target = $region40
        $region39: #{tpu_custom_call.1} parent=35 // pred_region
          %s309 = sand.u32 %s43, 1
          %s310 = scalar_lea.sflag [#allocation3], %s309
          %s311 = sand.u32 %s43, 1
          %s312 = smul.addr %s311, 512
          %s313 = scalar_lea.vmem [#allocation2], %s312
          %s315 = ssub.s32 8192, 8192
          %316 = vsyncadd %s310, %s315
          %s317 = smul.addr %s28, 128
          %s318 = smul.addr %s317, 64
          %s319 = scalar_lea.hbm %s0, %s318
          %s320 = sshll.u32 %s313, 4
          %s321 = int_to_ptr.vmem [resolvable:$true] %s320
          %326 = dma.hbm_to_vmem [thread:$0]  %s319, 8192, %s321, %s310, 512, 512, 32
        $region40: #{tpu_custom_call.1} parent=35 // pred_fallthru
          _
        // Predicated region
        $region41: #{tpu_custom_call.1} parent=35 // pred_check
          %p327 = pneg %p79
        $region42: #{tpu_custom_call.1} parent=35 // pred_check_branch
          %329 = sbr.rel (%p327) target = $region44
        $region43: #{tpu_custom_call.1} parent=35 // pred_region
          %p330 = scmp.lt.s32.totalorder %s28, 1
          %s331 = scalar_select %p330, %s28, 1
          %s332 = smul.addr %s331, 16
          %s333 = smul.addr %s332, 8
          %s334 = scalar_lea.vmem %s1, %s333
        $region44: #{tpu_custom_call.1} parent=35 // pred_fallthru
          _
        // Predicated region
        $region45: #{tpu_custom_call.1} parent=35 // pred_check
          %p335 = pneg %p105
        $region46: #{tpu_custom_call.1} parent=35 // pred_check_branch
          %337 = sbr.rel (%p335) target = $region48
        $region47: #{tpu_custom_call.1} parent=35 // pred_region
          %p338 = scmp.lt.s32.totalorder %s28, 1
          %s339 = scalar_select %p338, %s28, 1
          %s340 = scalar_lea.vmem %s2, %s339
        $region48: #{tpu_custom_call.1} parent=35 // pred_fallthru
          _
      $region36: #{tpu_custom_call.1} parent=5 // pred_fallthru
        _
      %p341 = scmp.le.s32.totalorder 1, %s21
      %p342 = scmp.lt.s32.totalorder %s21, 3
      %p343 = pnand %p341, %p342
      %p344 = pneg %p343
      // Predicated region
      $region49: #{tpu_custom_call.1} parent=5 // pred_check
        _
      $region50: #{tpu_custom_call.1} parent=5 // pred_check_branch
        %346 = sbr.rel (%p343) target = $region52
      $region51: #{tpu_custom_call.1} parent=5 // pred_region
        %s347 = ssub.s32 %s21, 1
        %s348 = sand.u32 %s46, 1
        %s349 = scalar_lea.sflag [#allocation3], %s348
        %s350 = sand.u32 %s46, 1
        %s351 = smul.addr %s350, 512
        %s352 = scalar_lea.vmem [#allocation2], %s351
        // Predicated region
        $region53: #{tpu_custom_call.1} parent=51 // pred_check
          %p353 = pneg %p59
        $region54: #{tpu_custom_call.1} parent=51 // pred_check_branch
          %355 = sbr.rel (%p353) target = $region56
        $region55: #{tpu_custom_call.1} parent=51 // pred_region
          %356 = dma.done %s349, 8192
        $region56: #{tpu_custom_call.1} parent=51 // pred_fallthru
          _
        // Predicated region
        $region57: #{tpu_custom_call.1} parent=51 // pred_check
          %p357 = pneg %p137
        $region58: #{tpu_custom_call.1} parent=51 // pred_check_branch
          %359 = sbr.rel (%p357) target = $region60
        $region59: #{tpu_custom_call.1} parent=51 // pred_region
          %360 = dma.done [#allocation6], 16384
        $region60: #{tpu_custom_call.1} parent=51 // pred_fallthru
          _
        %s361 = sand.u32 %s46, 1
        %s362 = scalar_lea.sflag [#allocation3], %s361
        %s363 = sand.u32 %s46, 1
        %s364 = smul.addr %s363, 512
        %s365 = scalar_lea.vmem [#allocation2], %s364
        %p366 = pneg %p59
        %p367 = pneg %p56
        %p368 = scmp.lt.s32.totalorder %s30, 1
        %s369 = scalar_select %p368, %s30, 1
        %s370 = smul.addr %s369, 16
        %s371 = smul.addr %s370, 8
        %s372 = scalar_lea.vmem %s1, %s371
        %p373 = pneg %p85
        %p374 = pneg %p82
        %p375 = scmp.lt.s32.totalorder %s30, 1
        %s376 = scalar_select %p375, %s30, 1
        %s377 = scalar_lea.vmem %s2, %s376
        %p378 = pneg %p111
        %p379 = pneg %p108
        %p380 = pneg %p137
        %p381 = pneg %p134
        %s382 = smul.u32 2, %s31
        %p383 = scmp.lt.s32.totalorder %s382, 1
        %s384 = scalar_select %p383, %s382, 1
        %s385 = scalar_lea.vmem %s4, %s384
        %p386 = pneg %p163
        %p387 = pneg %p160
        %p388 = pneg %p184
        %p389 = pneg %p181
        %p390 = pneg %p205
        %p391 = pneg %p202
        %p392 = pneg %p226
        %p393 = pneg %p223
        %p394 = pneg %p254
        %p395 = pneg %p251
        %s396 = sand.u32 %s241, 1
        %s397 = scalar_lea.sflag [#allocation4], %s396
        %s398 = sand.u32 %s241, 1
        %s399 = smul.addr %s398, 256
        %s400 = scalar_lea.vmem [#allocation7], %s399
        %p401 = scmp.lt.s32.totalorder %s30, 1
        %s402 = scalar_select %p401, %s30, 1
        %s403 = smul.addr %s402, 16
        %s404 = smul.addr %s403, 8
        %s405 = scalar_lea.vmem %s1, %s404
        %p406 = scmp.lt.s32.totalorder %s30, 1
        %s407 = scalar_select %p406, %s30, 1
        %s408 = scalar_lea.vmem %s2, %s407
        %s409 = smul.u32 2, %s31
        %s410 = smul.u32 2, %s31
        %p411 = scmp.lt.s32.totalorder %s410, 1
        %s412 = scalar_select %p411, %s410, 1
        %s413 = scalar_lea.vmem %s4, %s412
        %s414 = smul.u32 2, %s31
        %s415 = smul.u32 2, %s31
        %v417 = vld [vmem:[%s352] sm:$0xff]
        %v418 = vld [vmem:[%s352 + $0x8] sm:$0xff]
        %v419 = vld [vmem:[%s352 + $0x10] sm:$0xff]
        %v420 = vld [vmem:[%s352 + $0x18] sm:$0xff]
        %v421 = vld [vmem:[%s352 + $0x20] sm:$0xff]
        %v422 = vld [vmem:[%s352 + $0x28] sm:$0xff]
        %v423 = vld [vmem:[%s352 + $0x30] sm:$0xff]
        %v424 = vld [vmem:[%s352 + $0x38] sm:$0xff]
        %v425 = vld [vmem:[%s352 + $0x40] sm:$0xff]
        %v426 = vld [vmem:[%s352 + $0x48] sm:$0xff]
        %v427 = vld [vmem:[%s352 + $0x50] sm:$0xff]
        %v428 = vld [vmem:[%s352 + $0x58] sm:$0xff]
        %v429 = vld [vmem:[%s352 + $0x60] sm:$0xff]
        %v430 = vld [vmem:[%s352 + $0x68] sm:$0xff]
        %v431 = vld [vmem:[%s352 + $0x70] sm:$0xff]
        %v432 = vld [vmem:[%s352 + $0x78] sm:$0xff]
        %v433 = vld [vmem:[%s352 + $0x80] sm:$0xff]
        %v434 = vld [vmem:[%s352 + $0x88] sm:$0xff]
        %v435 = vld [vmem:[%s352 + $0x90] sm:$0xff]
        %v436 = vld [vmem:[%s352 + $0x98] sm:$0xff]
        %v437 = vld [vmem:[%s352 + $0xa0] sm:$0xff]
        %v438 = vld [vmem:[%s352 + $0xa8] sm:$0xff]
        %v439 = vld [vmem:[%s352 + $0xb0] sm:$0xff]
        %v440 = vld [vmem:[%s352 + $0xb8] sm:$0xff]
        %v441 = vld [vmem:[%s352 + $0xc0] sm:$0xff]
        %v442 = vld [vmem:[%s352 + $0xc8] sm:$0xff]
        %v443 = vld [vmem:[%s352 + $0xd0] sm:$0xff]
        %v444 = vld [vmem:[%s352 + $0xd8] sm:$0xff]
        %v445 = vld [vmem:[%s352 + $0xe0] sm:$0xff]
        %v446 = vld [vmem:[%s352 + $0xe8] sm:$0xff]
        %v447 = vld [vmem:[%s352 + $0xf0] sm:$0xff]
        %v448 = vld [vmem:[%s352 + $0xf8] sm:$0xff]
        %v449 = vld [vmem:[%s352 + $0x100] sm:$0xff]
        %v450 = vld [vmem:[%s352 + $0x108] sm:$0xff]
        %v451 = vld [vmem:[%s352 + $0x110] sm:$0xff]
        %v452 = vld [vmem:[%s352 + $0x118] sm:$0xff]
        %v453 = vld [vmem:[%s352 + $0x120] sm:$0xff]
        %v454 = vld [vmem:[%s352 + $0x128] sm:$0xff]
        %v455 = vld [vmem:[%s352 + $0x130] sm:$0xff]
        %v456 = vld [vmem:[%s352 + $0x138] sm:$0xff]
        %v457 = vld [vmem:[%s352 + $0x140] sm:$0xff]
        %v458 = vld [vmem:[%s352 + $0x148] sm:$0xff]
        %v459 = vld [vmem:[%s352 + $0x150] sm:$0xff]
        %v460 = vld [vmem:[%s352 + $0x158] sm:$0xff]
        %v461 = vld [vmem:[%s352 + $0x160] sm:$0xff]
        %v462 = vld [vmem:[%s352 + $0x168] sm:$0xff]
        %v463 = vld [vmem:[%s352 + $0x170] sm:$0xff]
        %v464 = vld [vmem:[%s352 + $0x178] sm:$0xff]
        %v465 = vld [vmem:[%s352 + $0x180] sm:$0xff]
        %v466 = vld [vmem:[%s352 + $0x188] sm:$0xff]
        %v467 = vld [vmem:[%s352 + $0x190] sm:$0xff]
        %v468 = vld [vmem:[%s352 + $0x198] sm:$0xff]
        %v469 = vld [vmem:[%s352 + $0x1a0] sm:$0xff]
        %v470 = vld [vmem:[%s352 + $0x1a8] sm:$0xff]
        %v471 = vld [vmem:[%s352 + $0x1b0] sm:$0xff]
        %v472 = vld [vmem:[%s352 + $0x1b8] sm:$0xff]
        %v473 = vld [vmem:[%s352 + $0x1c0] sm:$0xff]
        %v474 = vld [vmem:[%s352 + $0x1c8] sm:$0xff]
        %v475 = vld [vmem:[%s352 + $0x1d0] sm:$0xff]
        %v476 = vld [vmem:[%s352 + $0x1d8] sm:$0xff]
        %v477 = vld [vmem:[%s352 + $0x1e0] sm:$0xff]
        %v478 = vld [vmem:[%s352 + $0x1e8] sm:$0xff]
        %v479 = vld [vmem:[%s352 + $0x1f0] sm:$0xff]
        %v480 = vld [vmem:[%s352 + $0x1f8] sm:$0xff]
        %v481 = vld [vmem:[#allocation5] sm:$0xff]
        %v482 = vld [vmem:[#allocation5 + $0x8] sm:$0xff]
        %v483 = vld [vmem:[#allocation5 + $0x10] sm:$0xff]
        %v484 = vld [vmem:[#allocation5 + $0x18] sm:$0xff]
        %v485 = vld [vmem:[#allocation5 + $0x20] sm:$0xff]
        %v486 = vld [vmem:[#allocation5 + $0x28] sm:$0xff]
        %v487 = vld [vmem:[#allocation5 + $0x30] sm:$0xff]
        %v488 = vld [vmem:[#allocation5 + $0x38] sm:$0xff]
        %v489 = vld [vmem:[#allocation5 + $0x40] sm:$0xff]
        %v490 = vld [vmem:[#allocation5 + $0x48] sm:$0xff]
        %v491 = vld [vmem:[#allocation5 + $0x50] sm:$0xff]
        %v492 = vld [vmem:[#allocation5 + $0x58] sm:$0xff]
        %v493 = vld [vmem:[#allocation5 + $0x60] sm:$0xff]
        %v494 = vld [vmem:[#allocation5 + $0x68] sm:$0xff]
        %v495 = vld [vmem:[#allocation5 + $0x70] sm:$0xff]
        %v496 = vld [vmem:[#allocation5 + $0x78] sm:$0xff]
        %v497 = vld [vmem:[#allocation5 + $0x80] sm:$0xff]
        %v498 = vld [vmem:[#allocation5 + $0x88] sm:$0xff]
        %v499 = vld [vmem:[#allocation5 + $0x90] sm:$0xff]
        %v500 = vld [vmem:[#allocation5 + $0x98] sm:$0xff]
        %v501 = vld [vmem:[#allocation5 + $0xa0] sm:$0xff]
        %v502 = vld [vmem:[#allocation5 + $0xa8] sm:$0xff]
        %v503 = vld [vmem:[#allocation5 + $0xb0] sm:$0xff]
        %v504 = vld [vmem:[#allocation5 + $0xb8] sm:$0xff]
        %v505 = vld [vmem:[#allocation5 + $0xc0] sm:$0xff]
        %v506 = vld [vmem:[#allocation5 + $0xc8] sm:$0xff]
        %v507 = vld [vmem:[#allocation5 + $0xd0] sm:$0xff]
        %v508 = vld [vmem:[#allocation5 + $0xd8] sm:$0xff]
        %v509 = vld [vmem:[#allocation5 + $0xe0] sm:$0xff]
        %v510 = vld [vmem:[#allocation5 + $0xe8] sm:$0xff]
        %v511 = vld [vmem:[#allocation5 + $0xf0] sm:$0xff]
        %v512 = vld [vmem:[#allocation5 + $0xf8] sm:$0xff]
        %v513 = vld [vmem:[#allocation5 + $0x100] sm:$0xff]
        %v514 = vld [vmem:[#allocation5 + $0x108] sm:$0xff]
        %v515 = vld [vmem:[#allocation5 + $0x110] sm:$0xff]
        %v516 = vld [vmem:[#allocation5 + $0x118] sm:$0xff]
        %v517 = vld [vmem:[#allocation5 + $0x120] sm:$0xff]
        %v518 = vld [vmem:[#allocation5 + $0x128] sm:$0xff]
        %v519 = vld [vmem:[#allocation5 + $0x130] sm:$0xff]
        %v520 = vld [vmem:[#allocation5 + $0x138] sm:$0xff]
        %v521 = vld [vmem:[#allocation5 + $0x140] sm:$0xff]
        %v522 = vld [vmem:[#allocation5 + $0x148] sm:$0xff]
        %v523 = vld [vmem:[#allocation5 + $0x150] sm:$0xff]
        %v524 = vld [vmem:[#allocation5 + $0x158] sm:$0xff]
        %v525 = vld [vmem:[#allocation5 + $0x160] sm:$0xff]
        %v526 = vld [vmem:[#allocation5 + $0x168] sm:$0xff]
        %v527 = vld [vmem:[#allocation5 + $0x170] sm:$0xff]
        %v528 = vld [vmem:[#allocation5 + $0x178] sm:$0xff]
        %v529 = vld [vmem:[#allocation5 + $0x180] sm:$0xff]
        %v530 = vld [vmem:[#allocation5 + $0x188] sm:$0xff]
        %v531 = vld [vmem:[#allocation5 + $0x190] sm:$0xff]
        %v532 = vld [vmem:[#allocation5 + $0x198] sm:$0xff]
        %v533 = vld [vmem:[#allocation5 + $0x1a0] sm:$0xff]
        %v534 = vld [vmem:[#allocation5 + $0x1a8] sm:$0xff]
        %v535 = vld [vmem:[#allocation5 + $0x1b0] sm:$0xff]
        %v536 = vld [vmem:[#allocation5 + $0x1b8] sm:$0xff]
        %v537 = vld [vmem:[#allocation5 + $0x1c0] sm:$0xff]
        %v538 = vld [vmem:[#allocation5 + $0x1c8] sm:$0xff]
        %v539 = vld [vmem:[#allocation5 + $0x1d0] sm:$0xff]
        %v540 = vld [vmem:[#allocation5 + $0x1d8] sm:$0xff]
        %v541 = vld [vmem:[#allocation5 + $0x1e0] sm:$0xff]
        %v542 = vld [vmem:[#allocation5 + $0x1e8] sm:$0xff]
        %v543 = vld [vmem:[#allocation5 + $0x1f0] sm:$0xff]
        %v544 = vld [vmem:[#allocation5 + $0x1f8] sm:$0xff]
        %v545 = vld [vmem:[#allocation5 + $0x200] sm:$0xff]
        %v546 = vld [vmem:[#allocation5 + $0x208] sm:$0xff]
        %v547 = vld [vmem:[#allocation5 + $0x210] sm:$0xff]
        %v548 = vld [vmem:[#allocation5 + $0x218] sm:$0xff]
        %v549 = vld [vmem:[#allocation5 + $0x220] sm:$0xff]
        %v550 = vld [vmem:[#allocation5 + $0x228] sm:$0xff]
        %v551 = vld [vmem:[#allocation5 + $0x230] sm:$0xff]
        %v552 = vld [vmem:[#allocation5 + $0x238] sm:$0xff]
        %v553 = vld [vmem:[#allocation5 + $0x240] sm:$0xff]
        %v554 = vld [vmem:[#allocation5 + $0x248] sm:$0xff]
        %v555 = vld [vmem:[#allocation5 + $0x250] sm:$0xff]
        %v556 = vld [vmem:[#allocation5 + $0x258] sm:$0xff]
        %v557 = vld [vmem:[#allocation5 + $0x260] sm:$0xff]
        %v558 = vld [vmem:[#allocation5 + $0x268] sm:$0xff]
        %v559 = vld [vmem:[#allocation5 + $0x270] sm:$0xff]
        %v560 = vld [vmem:[#allocation5 + $0x278] sm:$0xff]
        %v561 = vld [vmem:[#allocation5 + $0x280] sm:$0xff]
        %v562 = vld [vmem:[#allocation5 + $0x288] sm:$0xff]
        %v563 = vld [vmem:[#allocation5 + $0x290] sm:$0xff]
        %v564 = vld [vmem:[#allocation5 + $0x298] sm:$0xff]
        %v565 = vld [vmem:[#allocation5 + $0x2a0] sm:$0xff]
        %v566 = vld [vmem:[#allocation5 + $0x2a8] sm:$0xff]
        %v567 = vld [vmem:[#allocation5 + $0x2b0] sm:$0xff]
        %v568 = vld [vmem:[#allocation5 + $0x2b8] sm:$0xff]
        %v569 = vld [vmem:[#allocation5 + $0x2c0] sm:$0xff]
        %v570 = vld [vmem:[#allocation5 + $0x2c8] sm:$0xff]
        %v571 = vld [vmem:[#allocation5 + $0x2d0] sm:$0xff]
        %v572 = vld [vmem:[#allocation5 + $0x2d8] sm:$0xff]
        %v573 = vld [vmem:[#allocation5 + $0x2e0] sm:$0xff]
        %v574 = vld [vmem:[#allocation5 + $0x2e8] sm:$0xff]
        %v575 = vld [vmem:[#allocation5 + $0x2f0] sm:$0xff]
        %v576 = vld [vmem:[#allocation5 + $0x2f8] sm:$0xff]
        %v577 = vld [vmem:[#allocation5 + $0x300] sm:$0xff]
        %v578 = vld [vmem:[#allocation5 + $0x308] sm:$0xff]
        %v579 = vld [vmem:[#allocation5 + $0x310] sm:$0xff]
        %v580 = vld [vmem:[#allocation5 + $0x318] sm:$0xff]
        %v581 = vld [vmem:[#allocation5 + $0x320] sm:$0xff]
        %v582 = vld [vmem:[#allocation5 + $0x328] sm:$0xff]
        %v583 = vld [vmem:[#allocation5 + $0x330] sm:$0xff]
        %v584 = vld [vmem:[#allocation5 + $0x338] sm:$0xff]
        %v585 = vld [vmem:[#allocation5 + $0x340] sm:$0xff]
        %v586 = vld [vmem:[#allocation5 + $0x348] sm:$0xff]
        %v587 = vld [vmem:[#allocation5 + $0x350] sm:$0xff]
        %v588 = vld [vmem:[#allocation5 + $0x358] sm:$0xff]
        %v589 = vld [vmem:[#allocation5 + $0x360] sm:$0xff]
        %v590 = vld [vmem:[#allocation5 + $0x368] sm:$0xff]
        %v591 = vld [vmem:[#allocation5 + $0x370] sm:$0xff]
        %v592 = vld [vmem:[#allocation5 + $0x378] sm:$0xff]
        %v593 = vld [vmem:[#allocation5 + $0x380] sm:$0xff]
        %v594 = vld [vmem:[#allocation5 + $0x388] sm:$0xff]
        %v595 = vld [vmem:[#allocation5 + $0x390] sm:$0xff]
        %v596 = vld [vmem:[#allocation5 + $0x398] sm:$0xff]
        %v597 = vld [vmem:[#allocation5 + $0x3a0] sm:$0xff]
        %v598 = vld [vmem:[#allocation5 + $0x3a8] sm:$0xff]
        %v599 = vld [vmem:[#allocation5 + $0x3b0] sm:$0xff]
        %v600 = vld [vmem:[#allocation5 + $0x3b8] sm:$0xff]
        %v601 = vld [vmem:[#allocation5 + $0x3c0] sm:$0xff]
        %v602 = vld [vmem:[#allocation5 + $0x3c8] sm:$0xff]
        %v603 = vld [vmem:[#allocation5 + $0x3d0] sm:$0xff]
        %v604 = vld [vmem:[#allocation5 + $0x3d8] sm:$0xff]
        %v605 = vld [vmem:[#allocation5 + $0x3e0] sm:$0xff]
        %v606 = vld [vmem:[#allocation5 + $0x3e8] sm:$0xff]
        %v607 = vld [vmem:[#allocation5 + $0x3f0] sm:$0xff]
        %v608 = vld [vmem:[#allocation5 + $0x3f8] sm:$0xff]
        %v609 = vld [vmem:[%s413] sm:$0x3]
        %v611 = vlaneseq
        %v612 = vshrl.u32 %v611, 7
        %v613 = vsub.s32 0, %v612
        %v614 = vrot.slane %v609, %v613
        %v615 = vlaneseq
        %v616 = vshrl.u32 %v615, 7
        %v617 = vsub.s32 1, %v616
        %v618 = vrot.slane %v609, %v617
        %v685 = vunpack.c.l.b16 %v417
        %v686 = vunpack.c.h.b16 %v417
        %v687 = vunpack.c.l.b16 %v418
        %v688 = vunpack.c.h.b16 %v418
        %v689 = vunpack.c.l.b16 %v419
        %v690 = vunpack.c.h.b16 %v419
        %v691 = vunpack.c.l.b16 %v420
        %v692 = vunpack.c.h.b16 %v420
        %v693 = vunpack.c.l.b16 %v421
        %v694 = vunpack.c.h.b16 %v421
        %v695 = vunpack.c.l.b16 %v422
        %v696 = vunpack.c.h.b16 %v422
        %v697 = vunpack.c.l.b16 %v423
        %v698 = vunpack.c.h.b16 %v423
        %v699 = vunpack.c.l.b16 %v424
        %v700 = vunpack.c.h.b16 %v424
        %v701 = vunpack.c.l.b16 %v425
        %v702 = vunpack.c.h.b16 %v425
        %v703 = vunpack.c.l.b16 %v426
        %v704 = vunpack.c.h.b16 %v426
        %v705 = vunpack.c.l.b16 %v427
        %v706 = vunpack.c.h.b16 %v427
        %v707 = vunpack.c.l.b16 %v428
        %v708 = vunpack.c.h.b16 %v428
        %v709 = vunpack.c.l.b16 %v429
        %v710 = vunpack.c.h.b16 %v429
        %v711 = vunpack.c.l.b16 %v430
        %v712 = vunpack.c.h.b16 %v430
        %v713 = vunpack.c.l.b16 %v431
        %v714 = vunpack.c.h.b16 %v431
        %v715 = vunpack.c.l.b16 %v432
        %v716 = vunpack.c.h.b16 %v432
        %v717 = vunpack.c.l.b16 %v433
        %v718 = vunpack.c.h.b16 %v433
        %v719 = vunpack.c.l.b16 %v434
        %v720 = vunpack.c.h.b16 %v434
        %v721 = vunpack.c.l.b16 %v435
        %v722 = vunpack.c.h.b16 %v435
        %v723 = vunpack.c.l.b16 %v436
        %v724 = vunpack.c.h.b16 %v436
        %v725 = vunpack.c.l.b16 %v437
        %v726 = vunpack.c.h.b16 %v437
        %v727 = vunpack.c.l.b16 %v438
        %v728 = vunpack.c.h.b16 %v438
        %v729 = vunpack.c.l.b16 %v439
        %v730 = vunpack.c.h.b16 %v439
        %v731 = vunpack.c.l.b16 %v440
        %v732 = vunpack.c.h.b16 %v440
        %v733 = vunpack.c.l.b16 %v441
        %v734 = vunpack.c.h.b16 %v441
        %v735 = vunpack.c.l.b16 %v442
        %v736 = vunpack.c.h.b16 %v442
        %v737 = vunpack.c.l.b16 %v443
        %v738 = vunpack.c.h.b16 %v443
        %v739 = vunpack.c.l.b16 %v444
        %v740 = vunpack.c.h.b16 %v444
        %v741 = vunpack.c.l.b16 %v445
        %v742 = vunpack.c.h.b16 %v445
        %v743 = vunpack.c.l.b16 %v446
        %v744 = vunpack.c.h.b16 %v446
        %v745 = vunpack.c.l.b16 %v447
        %v746 = vunpack.c.h.b16 %v447
        %v747 = vunpack.c.l.b16 %v448
        %v748 = vunpack.c.h.b16 %v448
        %v749 = vunpack.c.l.b16 %v449
        %v750 = vunpack.c.h.b16 %v449
        %v751 = vunpack.c.l.b16 %v450
        %v752 = vunpack.c.h.b16 %v450
        %v753 = vunpack.c.l.b16 %v451
        %v754 = vunpack.c.h.b16 %v451
        %v755 = vunpack.c.l.b16 %v452
        %v756 = vunpack.c.h.b16 %v452
        %v757 = vunpack.c.l.b16 %v453
        %v758 = vunpack.c.h.b16 %v453
        %v759 = vunpack.c.l.b16 %v454
        %v760 = vunpack.c.h.b16 %v454
        %v761 = vunpack.c.l.b16 %v455
        %v762 = vunpack.c.h.b16 %v455
        %v763 = vunpack.c.l.b16 %v456
        %v764 = vunpack.c.h.b16 %v456
        %v765 = vunpack.c.l.b16 %v457
        %v766 = vunpack.c.h.b16 %v457
        %v767 = vunpack.c.l.b16 %v458
        %v768 = vunpack.c.h.b16 %v458
        %v769 = vunpack.c.l.b16 %v459
        %v770 = vunpack.c.h.b16 %v459
        %v771 = vunpack.c.l.b16 %v460
        %v772 = vunpack.c.h.b16 %v460
        %v773 = vunpack.c.l.b16 %v461
        %v774 = vunpack.c.h.b16 %v461
        %v775 = vunpack.c.l.b16 %v462
        %v776 = vunpack.c.h.b16 %v462
        %v777 = vunpack.c.l.b16 %v463
        %v778 = vunpack.c.h.b16 %v463
        %v779 = vunpack.c.l.b16 %v464
        %v780 = vunpack.c.h.b16 %v464
        %v781 = vunpack.c.l.b16 %v465
        %v782 = vunpack.c.h.b16 %v465
        %v783 = vunpack.c.l.b16 %v466
        %v784 = vunpack.c.h.b16 %v466
        %v785 = vunpack.c.l.b16 %v467
        %v786 = vunpack.c.h.b16 %v467
        %v787 = vunpack.c.l.b16 %v468
        %v788 = vunpack.c.h.b16 %v468
        %v789 = vunpack.c.l.b16 %v469
        %v790 = vunpack.c.h.b16 %v469
        %v791 = vunpack.c.l.b16 %v470
        %v792 = vunpack.c.h.b16 %v470
        %v793 = vunpack.c.l.b16 %v471
        %v794 = vunpack.c.h.b16 %v471
        %v795 = vunpack.c.l.b16 %v472
        %v796 = vunpack.c.h.b16 %v472
        %v797 = vunpack.c.l.b16 %v473
        %v798 = vunpack.c.h.b16 %v473
        %v799 = vunpack.c.l.b16 %v474
        %v800 = vunpack.c.h.b16 %v474
        %v801 = vunpack.c.l.b16 %v475
        %v802 = vunpack.c.h.b16 %v475
        %v803 = vunpack.c.l.b16 %v476
        %v804 = vunpack.c.h.b16 %v476
        %v805 = vunpack.c.l.b16 %v477
        %v806 = vunpack.c.h.b16 %v477
        %v807 = vunpack.c.l.b16 %v478
        %v808 = vunpack.c.h.b16 %v478
        %v809 = vunpack.c.l.b16 %v479
        %v810 = vunpack.c.h.b16 %v479
        %v811 = vunpack.c.l.b16 %v480
        %v812 = vunpack.c.h.b16 %v480
        %v813 = vpack.c.b16 %v693, %v685
        %v814 = vpack.c.b16 %v694, %v686
        %v815 = vpack.c.b16 %v695, %v687
        %v816 = vpack.c.b16 %v696, %v688
        %v817 = vpack.c.b16 %v697, %v689
        %v818 = vpack.c.b16 %v698, %v690
        %v819 = vpack.c.b16 %v699, %v691
        %v820 = vpack.c.b16 %v700, %v692
        %v821 = vpack.c.b16 %v709, %v701
        %v822 = vpack.c.b16 %v710, %v702
        %v823 = vpack.c.b16 %v711, %v703
        %v824 = vpack.c.b16 %v712, %v704
        %v825 = vpack.c.b16 %v713, %v705
        %v826 = vpack.c.b16 %v714, %v706
        %v827 = vpack.c.b16 %v715, %v707
        %v828 = vpack.c.b16 %v716, %v708
        %v829 = vpack.c.b16 %v725, %v717
        %v830 = vpack.c.b16 %v726, %v718
        %v831 = vpack.c.b16 %v727, %v719
        %v832 = vpack.c.b16 %v728, %v720
        %v833 = vpack.c.b16 %v729, %v721
        %v834 = vpack.c.b16 %v730, %v722
        %v835 = vpack.c.b16 %v731, %v723
        %v836 = vpack.c.b16 %v732, %v724
        %v837 = vpack.c.b16 %v741, %v733
        %v838 = vpack.c.b16 %v742, %v734
        %v839 = vpack.c.b16 %v743, %v735
        %v840 = vpack.c.b16 %v744, %v736
        %v841 = vpack.c.b16 %v745, %v737
        %v842 = vpack.c.b16 %v746, %v738
        %v843 = vpack.c.b16 %v747, %v739
        %v844 = vpack.c.b16 %v748, %v740
        %v845 = vpack.c.b16 %v757, %v749
        %v846 = vpack.c.b16 %v758, %v750
        %v847 = vpack.c.b16 %v759, %v751
        %v848 = vpack.c.b16 %v760, %v752
        %v849 = vpack.c.b16 %v761, %v753
        %v850 = vpack.c.b16 %v762, %v754
        %v851 = vpack.c.b16 %v763, %v755
        %v852 = vpack.c.b16 %v764, %v756
        %v853 = vpack.c.b16 %v773, %v765
        %v854 = vpack.c.b16 %v774, %v766
        %v855 = vpack.c.b16 %v775, %v767
        %v856 = vpack.c.b16 %v776, %v768
        %v857 = vpack.c.b16 %v777, %v769
        %v858 = vpack.c.b16 %v778, %v770
        %v859 = vpack.c.b16 %v779, %v771
        %v860 = vpack.c.b16 %v780, %v772
        %v861 = vpack.c.b16 %v789, %v781
        %v862 = vpack.c.b16 %v790, %v782
        %v863 = vpack.c.b16 %v791, %v783
        %v864 = vpack.c.b16 %v792, %v784
        %v865 = vpack.c.b16 %v793, %v785
        %v866 = vpack.c.b16 %v794, %v786
        %v867 = vpack.c.b16 %v795, %v787
        %v868 = vpack.c.b16 %v796, %v788
        %v869 = vpack.c.b16 %v805, %v797
        %v870 = vpack.c.b16 %v806, %v798
        %v871 = vpack.c.b16 %v807, %v799
        %v872 = vpack.c.b16 %v808, %v800
        %v873 = vpack.c.b16 %v809, %v801
        %v874 = vpack.c.b16 %v810, %v802
        %v875 = vpack.c.b16 %v811, %v803
        %v876 = vpack.c.b16 %v812, %v804
        %v1069 = vunpack.c.l.b16 %v481
        %v1070 = vunpack.c.h.b16 %v481
        %v1071 = vunpack.c.l.b16 %v482
        %v1072 = vunpack.c.h.b16 %v482
        %v1073 = vunpack.c.l.b16 %v483
        %v1074 = vunpack.c.h.b16 %v483
        %v1075 = vunpack.c.l.b16 %v484
        %v1076 = vunpack.c.h.b16 %v484
        %v1077 = vunpack.c.l.b16 %v485
        %v1078 = vunpack.c.h.b16 %v485
        %v1079 = vunpack.c.l.b16 %v486
        %v1080 = vunpack.c.h.b16 %v486
        %v1081 = vunpack.c.l.b16 %v487
        %v1082 = vunpack.c.h.b16 %v487
        %v1083 = vunpack.c.l.b16 %v488
        %v1084 = vunpack.c.h.b16 %v488
        %v1085 = vunpack.c.l.b16 %v489
        %v1086 = vunpack.c.h.b16 %v489
        %v1087 = vunpack.c.l.b16 %v490
        %v1088 = vunpack.c.h.b16 %v490
        %v1089 = vunpack.c.l.b16 %v491
        %v1090 = vunpack.c.h.b16 %v491
        %v1091 = vunpack.c.l.b16 %v492
        %v1092 = vunpack.c.h.b16 %v492
        %v1093 = vunpack.c.l.b16 %v493
        %v1094 = vunpack.c.h.b16 %v493
        %v1095 = vunpack.c.l.b16 %v494
        %v1096 = vunpack.c.h.b16 %v494
        %v1097 = vunpack.c.l.b16 %v495
        %v1098 = vunpack.c.h.b16 %v495
        %v1099 = vunpack.c.l.b16 %v496
        %v1100 = vunpack.c.h.b16 %v496
        %v1101 = vunpack.c.l.b16 %v497
        %v1102 = vunpack.c.h.b16 %v497
        %v1103 = vunpack.c.l.b16 %v498
        %v1104 = vunpack.c.h.b16 %v498
        %v1105 = vunpack.c.l.b16 %v499
        %v1106 = vunpack.c.h.b16 %v499
        %v1107 = vunpack.c.l.b16 %v500
        %v1108 = vunpack.c.h.b16 %v500
        %v1109 = vunpack.c.l.b16 %v501
        %v1110 = vunpack.c.h.b16 %v501
        %v1111 = vunpack.c.l.b16 %v502
        %v1112 = vunpack.c.h.b16 %v502
        %v1113 = vunpack.c.l.b16 %v503
        %v1114 = vunpack.c.h.b16 %v503
        %v1115 = vunpack.c.l.b16 %v504
        %v1116 = vunpack.c.h.b16 %v504
        %v1117 = vunpack.c.l.b16 %v505
        %v1118 = vunpack.c.h.b16 %v505
        %v1119 = vunpack.c.l.b16 %v506
        %v1120 = vunpack.c.h.b16 %v506
        %v1121 = vunpack.c.l.b16 %v507
        %v1122 = vunpack.c.h.b16 %v507
        %v1123 = vunpack.c.l.b16 %v508
        %v1124 = vunpack.c.h.b16 %v508
        %v1125 = vunpack.c.l.b16 %v509
        %v1126 = vunpack.c.h.b16 %v509
        %v1127 = vunpack.c.l.b16 %v510
        %v1128 = vunpack.c.h.b16 %v510
        %v1129 = vunpack.c.l.b16 %v511
        %v1130 = vunpack.c.h.b16 %v511
        %v1131 = vunpack.c.l.b16 %v512
        %v1132 = vunpack.c.h.b16 %v512
        %v1133 = vunpack.c.l.b16 %v513
        %v1134 = vunpack.c.h.b16 %v513
        %v1135 = vunpack.c.l.b16 %v514
        %v1136 = vunpack.c.h.b16 %v514
        %v1137 = vunpack.c.l.b16 %v515
        %v1138 = vunpack.c.h.b16 %v515
        %v1139 = vunpack.c.l.b16 %v516
        %v1140 = vunpack.c.h.b16 %v516
        %v1141 = vunpack.c.l.b16 %v517
        %v1142 = vunpack.c.h.b16 %v517
        %v1143 = vunpack.c.l.b16 %v518
        %v1144 = vunpack.c.h.b16 %v518
        %v1145 = vunpack.c.l.b16 %v519
        %v1146 = vunpack.c.h.b16 %v519
        %v1147 = vunpack.c.l.b16 %v520
        %v1148 = vunpack.c.h.b16 %v520
        %v1149 = vunpack.c.l.b16 %v521
        %v1150 = vunpack.c.h.b16 %v521
        %v1151 = vunpack.c.l.b16 %v522
        %v1152 = vunpack.c.h.b16 %v522
        %v1153 = vunpack.c.l.b16 %v523
        %v1154 = vunpack.c.h.b16 %v523
        %v1155 = vunpack.c.l.b16 %v524
        %v1156 = vunpack.c.h.b16 %v524
        %v1157 = vunpack.c.l.b16 %v525
        %v1158 = vunpack.c.h.b16 %v525
        %v1159 = vunpack.c.l.b16 %v526
        %v1160 = vunpack.c.h.b16 %v526
        %v1161 = vunpack.c.l.b16 %v527
        %v1162 = vunpack.c.h.b16 %v527
        %v1163 = vunpack.c.l.b16 %v528
        %v1164 = vunpack.c.h.b16 %v528
        %v1165 = vunpack.c.l.b16 %v529
        %v1166 = vunpack.c.h.b16 %v529
        %v1167 = vunpack.c.l.b16 %v530
        %v1168 = vunpack.c.h.b16 %v530
        %v1169 = vunpack.c.l.b16 %v531
        %v1170 = vunpack.c.h.b16 %v531
        %v1171 = vunpack.c.l.b16 %v532
        %v1172 = vunpack.c.h.b16 %v532
        %v1173 = vunpack.c.l.b16 %v533
        %v1174 = vunpack.c.h.b16 %v533
        %v1175 = vunpack.c.l.b16 %v534
        %v1176 = vunpack.c.h.b16 %v534
        %v1177 = vunpack.c.l.b16 %v535
        %v1178 = vunpack.c.h.b16 %v535
        %v1179 = vunpack.c.l.b16 %v536
        %v1180 = vunpack.c.h.b16 %v536
        %v1181 = vunpack.c.l.b16 %v537
        %v1182 = vunpack.c.h.b16 %v537
        %v1183 = vunpack.c.l.b16 %v538
        %v1184 = vunpack.c.h.b16 %v538
        %v1185 = vunpack.c.l.b16 %v539
        %v1186 = vunpack.c.h.b16 %v539
        %v1187 = vunpack.c.l.b16 %v540
        %v1188 = vunpack.c.h.b16 %v540
        %v1189 = vunpack.c.l.b16 %v541
        %v1190 = vunpack.c.h.b16 %v541
        %v1191 = vunpack.c.l.b16 %v542
        %v1192 = vunpack.c.h.b16 %v542
        %v1193 = vunpack.c.l.b16 %v543
        %v1194 = vunpack.c.h.b16 %v543
        %v1195 = vunpack.c.l.b16 %v544
        %v1196 = vunpack.c.h.b16 %v544
        %v1197 = vunpack.c.l.b16 %v545
        %v1198 = vunpack.c.h.b16 %v545
        %v1199 = vunpack.c.l.b16 %v546
        %v1200 = vunpack.c.h.b16 %v546
        %v1201 = vunpack.c.l.b16 %v547
        %v1202 = vunpack.c.h.b16 %v547
        %v1203 = vunpack.c.l.b16 %v548
        %v1204 = vunpack.c.h.b16 %v548
        %v1205 = vunpack.c.l.b16 %v549
        %v1206 = vunpack.c.h.b16 %v549
        %v1207 = vunpack.c.l.b16 %v550
        %v1208 = vunpack.c.h.b16 %v550
        %v1209 = vunpack.c.l.b16 %v551
        %v1210 = vunpack.c.h.b16 %v551
        %v1211 = vunpack.c.l.b16 %v552
        %v1212 = vunpack.c.h.b16 %v552
        %v1213 = vunpack.c.l.b16 %v553
        %v1214 = vunpack.c.h.b16 %v553
        %v1215 = vunpack.c.l.b16 %v554
        %v1216 = vunpack.c.h.b16 %v554
        %v1217 = vunpack.c.l.b16 %v555
        %v1218 = vunpack.c.h.b16 %v555
        %v1219 = vunpack.c.l.b16 %v556
        %v1220 = vunpack.c.h.b16 %v556
        %v1221 = vunpack.c.l.b16 %v557
        %v1222 = vunpack.c.h.b16 %v557
        %v1223 = vunpack.c.l.b16 %v558
        %v1224 = vunpack.c.h.b16 %v558
        %v1225 = vunpack.c.l.b16 %v559
        %v1226 = vunpack.c.h.b16 %v559
        %v1227 = vunpack.c.l.b16 %v560
        %v1228 = vunpack.c.h.b16 %v560
        %v1229 = vunpack.c.l.b16 %v561
        %v1230 = vunpack.c.h.b16 %v561
        %v1231 = vunpack.c.l.b16 %v562
        %v1232 = vunpack.c.h.b16 %v562
        %v1233 = vunpack.c.l.b16 %v563
        %v1234 = vunpack.c.h.b16 %v563
        %v1235 = vunpack.c.l.b16 %v564
        %v1236 = vunpack.c.h.b16 %v564
        %v1237 = vunpack.c.l.b16 %v565
        %v1238 = vunpack.c.h.b16 %v565
        %v1239 = vunpack.c.l.b16 %v566
        %v1240 = vunpack.c.h.b16 %v566
        %v1241 = vunpack.c.l.b16 %v567
        %v1242 = vunpack.c.h.b16 %v567
        %v1243 = vunpack.c.l.b16 %v568
        %v1244 = vunpack.c.h.b16 %v568
        %v1245 = vunpack.c.l.b16 %v569
        %v1246 = vunpack.c.h.b16 %v569
        %v1247 = vunpack.c.l.b16 %v570
        %v1248 = vunpack.c.h.b16 %v570
        %v1249 = vunpack.c.l.b16 %v571
        %v1250 = vunpack.c.h.b16 %v571
        %v1251 = vunpack.c.l.b16 %v572
        %v1252 = vunpack.c.h.b16 %v572
        %v1253 = vunpack.c.l.b16 %v573
        %v1254 = vunpack.c.h.b16 %v573
        %v1255 = vunpack.c.l.b16 %v574
        %v1256 = vunpack.c.h.b16 %v574
        %v1257 = vunpack.c.l.b16 %v575
        %v1258 = vunpack.c.h.b16 %v575
        %v1259 = vunpack.c.l.b16 %v576
        %v1260 = vunpack.c.h.b16 %v576
        %v1261 = vunpack.c.l.b16 %v577
        %v1262 = vunpack.c.h.b16 %v577
        %v1263 = vunpack.c.l.b16 %v578
        %v1264 = vunpack.c.h.b16 %v578
        %v1265 = vunpack.c.l.b16 %v579
        %v1266 = vunpack.c.h.b16 %v579
        %v1267 = vunpack.c.l.b16 %v580
        %v1268 = vunpack.c.h.b16 %v580
        %v1269 = vunpack.c.l.b16 %v581
        %v1270 = vunpack.c.h.b16 %v581
        %v1271 = vunpack.c.l.b16 %v582
        %v1272 = vunpack.c.h.b16 %v582
        %v1273 = vunpack.c.l.b16 %v583
        %v1274 = vunpack.c.h.b16 %v583
        %v1275 = vunpack.c.l.b16 %v584
        %v1276 = vunpack.c.h.b16 %v584
        %v1277 = vunpack.c.l.b16 %v585
        %v1278 = vunpack.c.h.b16 %v585
        %v1279 = vunpack.c.l.b16 %v586
        %v1280 = vunpack.c.h.b16 %v586
        %v1281 = vunpack.c.l.b16 %v587
        %v1282 = vunpack.c.h.b16 %v587
        %v1283 = vunpack.c.l.b16 %v588
        %v1284 = vunpack.c.h.b16 %v588
        %v1285 = vunpack.c.l.b16 %v589
        %v1286 = vunpack.c.h.b16 %v589
        %v1287 = vunpack.c.l.b16 %v590
        %v1288 = vunpack.c.h.b16 %v590
        %v1289 = vunpack.c.l.b16 %v591
        %v1290 = vunpack.c.h.b16 %v591
        %v1291 = vunpack.c.l.b16 %v592
        %v1292 = vunpack.c.h.b16 %v592
        %v1293 = vunpack.c.l.b16 %v593
        %v1294 = vunpack.c.h.b16 %v593
        %v1295 = vunpack.c.l.b16 %v594
        %v1296 = vunpack.c.h.b16 %v594
        %v1297 = vunpack.c.l.b16 %v595
        %v1298 = vunpack.c.h.b16 %v595
        %v1299 = vunpack.c.l.b16 %v596
        %v1300 = vunpack.c.h.b16 %v596
        %v1301 = vunpack.c.l.b16 %v597
        %v1302 = vunpack.c.h.b16 %v597
        %v1303 = vunpack.c.l.b16 %v598
        %v1304 = vunpack.c.h.b16 %v598
        %v1305 = vunpack.c.l.b16 %v599
        %v1306 = vunpack.c.h.b16 %v599
        %v1307 = vunpack.c.l.b16 %v600
        %v1308 = vunpack.c.h.b16 %v600
        %v1309 = vunpack.c.l.b16 %v601
        %v1310 = vunpack.c.h.b16 %v601
        %v1311 = vunpack.c.l.b16 %v602
        %v1312 = vunpack.c.h.b16 %v602
        %v1313 = vunpack.c.l.b16 %v603
        %v1314 = vunpack.c.h.b16 %v603
        %v1315 = vunpack.c.l.b16 %v604
        %v1316 = vunpack.c.h.b16 %v604
        %v1317 = vunpack.c.l.b16 %v605
        %v1318 = vunpack.c.h.b16 %v605
        %v1319 = vunpack.c.l.b16 %v606
        %v1320 = vunpack.c.h.b16 %v606
        %v1321 = vunpack.c.l.b16 %v607
        %v1322 = vunpack.c.h.b16 %v607
        %v1323 = vunpack.c.l.b16 %v608
        %v1324 = vunpack.c.h.b16 %v608
        %v1325 = vpack.c.b16 %v1071, %v1069
        %v1326 = vpack.c.b16 %v1072, %v1070
        %v1327 = vpack.c.b16 %v1075, %v1073
        %v1328 = vpack.c.b16 %v1076, %v1074
        %v1329 = vpack.c.b16 %v1079, %v1077
        %v1330 = vpack.c.b16 %v1080, %v1078
        %v1331 = vpack.c.b16 %v1083, %v1081
        %v1332 = vpack.c.b16 %v1084, %v1082
        %v1333 = vpack.c.b16 %v1087, %v1085
        %v1334 = vpack.c.b16 %v1088, %v1086
        %v1335 = vpack.c.b16 %v1091, %v1089
        %v1336 = vpack.c.b16 %v1092, %v1090
        %v1337 = vpack.c.b16 %v1095, %v1093
        %v1338 = vpack.c.b16 %v1096, %v1094
        %v1339 = vpack.c.b16 %v1099, %v1097
        %v1340 = vpack.c.b16 %v1100, %v1098
        %v1341 = vpack.c.b16 %v1103, %v1101
        %v1342 = vpack.c.b16 %v1104, %v1102
        %v1343 = vpack.c.b16 %v1107, %v1105
        %v1344 = vpack.c.b16 %v1108, %v1106
        %v1345 = vpack.c.b16 %v1111, %v1109
        %v1346 = vpack.c.b16 %v1112, %v1110
        %v1347 = vpack.c.b16 %v1115, %v1113
        %v1348 = vpack.c.b16 %v1116, %v1114
        %v1349 = vpack.c.b16 %v1119, %v1117
        %v1350 = vpack.c.b16 %v1120, %v1118
        %v1351 = vpack.c.b16 %v1123, %v1121
        %v1352 = vpack.c.b16 %v1124, %v1122
        %v1353 = vpack.c.b16 %v1127, %v1125
        %v1354 = vpack.c.b16 %v1128, %v1126
        %v1355 = vpack.c.b16 %v1131, %v1129
        %v1356 = vpack.c.b16 %v1132, %v1130
        %v1357 = vpack.c.b16 %v1135, %v1133
        %v1358 = vpack.c.b16 %v1136, %v1134
        %v1359 = vpack.c.b16 %v1139, %v1137
        %v1360 = vpack.c.b16 %v1140, %v1138
        %v1361 = vpack.c.b16 %v1143, %v1141
        %v1362 = vpack.c.b16 %v1144, %v1142
        %v1363 = vpack.c.b16 %v1147, %v1145
        %v1364 = vpack.c.b16 %v1148, %v1146
        %v1365 = vpack.c.b16 %v1151, %v1149
        %v1366 = vpack.c.b16 %v1152, %v1150
        %v1367 = vpack.c.b16 %v1155, %v1153
        %v1368 = vpack.c.b16 %v1156, %v1154
        %v1369 = vpack.c.b16 %v1159, %v1157
        %v1370 = vpack.c.b16 %v1160, %v1158
        %v1371 = vpack.c.b16 %v1163, %v1161
        %v1372 = vpack.c.b16 %v1164, %v1162
        %v1373 = vpack.c.b16 %v1167, %v1165
        %v1374 = vpack.c.b16 %v1168, %v1166
        %v1375 = vpack.c.b16 %v1171, %v1169
        %v1376 = vpack.c.b16 %v1172, %v1170
        %v1377 = vpack.c.b16 %v1175, %v1173
        %v1378 = vpack.c.b16 %v1176, %v1174
        %v1379 = vpack.c.b16 %v1179, %v1177
        %v1380 = vpack.c.b16 %v1180, %v1178
        %v1381 = vpack.c.b16 %v1183, %v1181
        %v1382 = vpack.c.b16 %v1184, %v1182
        %v1383 = vpack.c.b16 %v1187, %v1185
        %v1384 = vpack.c.b16 %v1188, %v1186
        %v1385 = vpack.c.b16 %v1191, %v1189
        %v1386 = vpack.c.b16 %v1192, %v1190
        %v1387 = vpack.c.b16 %v1195, %v1193
        %v1388 = vpack.c.b16 %v1196, %v1194
        %v1389 = vpack.c.b16 %v1199, %v1197
        %v1390 = vpack.c.b16 %v1200, %v1198
        %v1391 = vpack.c.b16 %v1203, %v1201
        %v1392 = vpack.c.b16 %v1204, %v1202
        %v1393 = vpack.c.b16 %v1207, %v1205
        %v1394 = vpack.c.b16 %v1208, %v1206
        %v1395 = vpack.c.b16 %v1211, %v1209
        %v1396 = vpack.c.b16 %v1212, %v1210
        %v1397 = vpack.c.b16 %v1215, %v1213
        %v1398 = vpack.c.b16 %v1216, %v1214
        %v1399 = vpack.c.b16 %v1219, %v1217
        %v1400 = vpack.c.b16 %v1220, %v1218
        %v1401 = vpack.c.b16 %v1223, %v1221
        %v1402 = vpack.c.b16 %v1224, %v1222
        %v1403 = vpack.c.b16 %v1227, %v1225
        %v1404 = vpack.c.b16 %v1228, %v1226
        %v1405 = vpack.c.b16 %v1231, %v1229
        %v1406 = vpack.c.b16 %v1232, %v1230
        %v1407 = vpack.c.b16 %v1235, %v1233
        %v1408 = vpack.c.b16 %v1236, %v1234
        %v1409 = vpack.c.b16 %v1239, %v1237
        %v1410 = vpack.c.b16 %v1240, %v1238
        %v1411 = vpack.c.b16 %v1243, %v1241
        %v1412 = vpack.c.b16 %v1244, %v1242
        %v1413 = vpack.c.b16 %v1247, %v1245
        %v1414 = vpack.c.b16 %v1248, %v1246
        %v1415 = vpack.c.b16 %v1251, %v1249
        %v1416 = vpack.c.b16 %v1252, %v1250
        %v1417 = vpack.c.b16 %v1255, %v1253
        %v1418 = vpack.c.b16 %v1256, %v1254
        %v1419 = vpack.c.b16 %v1259, %v1257
        %v1420 = vpack.c.b16 %v1260, %v1258
        %v1421 = vpack.c.b16 %v1263, %v1261
        %v1422 = vpack.c.b16 %v1264, %v1262
        %v1423 = vpack.c.b16 %v1267, %v1265
        %v1424 = vpack.c.b16 %v1268, %v1266
        %v1425 = vpack.c.b16 %v1271, %v1269
        %v1426 = vpack.c.b16 %v1272, %v1270
        %v1427 = vpack.c.b16 %v1275, %v1273
        %v1428 = vpack.c.b16 %v1276, %v1274
        %v1429 = vpack.c.b16 %v1279, %v1277
        %v1430 = vpack.c.b16 %v1280, %v1278
        %v1431 = vpack.c.b16 %v1283, %v1281
        %v1432 = vpack.c.b16 %v1284, %v1282
        %v1433 = vpack.c.b16 %v1287, %v1285
        %v1434 = vpack.c.b16 %v1288, %v1286
        %v1435 = vpack.c.b16 %v1291, %v1289
        %v1436 = vpack.c.b16 %v1292, %v1290
        %v1437 = vpack.c.b16 %v1295, %v1293
        %v1438 = vpack.c.b16 %v1296, %v1294
        %v1439 = vpack.c.b16 %v1299, %v1297
        %v1440 = vpack.c.b16 %v1300, %v1298
        %v1441 = vpack.c.b16 %v1303, %v1301
        %v1442 = vpack.c.b16 %v1304, %v1302
        %v1443 = vpack.c.b16 %v1307, %v1305
        %v1444 = vpack.c.b16 %v1308, %v1306
        %v1445 = vpack.c.b16 %v1311, %v1309
        %v1446 = vpack.c.b16 %v1312, %v1310
        %v1447 = vpack.c.b16 %v1315, %v1313
        %v1448 = vpack.c.b16 %v1316, %v1314
        %v1449 = vpack.c.b16 %v1319, %v1317
        %v1450 = vpack.c.b16 %v1320, %v1318
        %v1451 = vpack.c.b16 %v1323, %v1321
        %v1452 = vpack.c.b16 %v1324, %v1322
        %1581 = vmatprep.subr.bf16.mxu0 %v1326
        %1582 = vmatpush1.bf16.msra.mxu0 %v1325
        %1583 = vmatprep.subr.bf16.mxu0 %v1328
        %1584 = vmatpush1.bf16.msra.mxu0 %v1327
        %1585 = vmatprep.subr.bf16.mxu0 %v1330
        %1586 = vmatpush1.bf16.msra.mxu0 %v1329
        %1587 = vmatprep.subr.bf16.mxu0 %v1332
        %1588 = vmatpush1.bf16.msra.mxu0 %v1331
        %1589 = vmatprep.subr.bf16.mxu0 %v1334
        %1590 = vmatpush1.bf16.msra.mxu0 %v1333
        %1591 = vmatprep.subr.bf16.mxu0 %v1336
        %1592 = vmatpush1.bf16.msra.mxu0 %v1335
        %1593 = vmatprep.subr.bf16.mxu0 %v1338
        %1594 = vmatpush1.bf16.msra.mxu0 %v1337
        %1595 = vmatprep.subr.bf16.mxu0 %v1340
        %1596 = vmatpush1.bf16.msra.mxu0 %v1339
        %1597 = vmatprep.subr.bf16.mxu0 %v1342
        %1598 = vmatpush1.bf16.msra.mxu0 %v1341
        %1599 = vmatprep.subr.bf16.mxu0 %v1344
        %1600 = vmatpush1.bf16.msra.mxu0 %v1343
        %1601 = vmatprep.subr.bf16.mxu0 %v1346
        %1602 = vmatpush1.bf16.msra.mxu0 %v1345
        %1603 = vmatprep.subr.bf16.mxu0 %v1348
        %1604 = vmatpush1.bf16.msra.mxu0 %v1347
        %1605 = vmatprep.subr.bf16.mxu0 %v1350
        %1606 = vmatpush1.bf16.msra.mxu0 %v1349
        %1607 = vmatprep.subr.bf16.mxu0 %v1352
        %1608 = vmatpush1.bf16.msra.mxu0 %v1351
        %1609 = vmatprep.subr.bf16.mxu0 %v1354
        %1610 = vmatpush1.bf16.msra.mxu0 %v1353
        %1611 = vmatprep.subr.bf16.mxu0 %v1356
        %1612 = vmatpush1.bf16.msra.mxu0 %v1355
        %1613 = vmatprep.mubr.bf16.mxu0 %v814
        %1614 = vmatmul.mubr.bf16.gmra.mrb[0].mxu0 %v813
        %v1615 = vpop.f32.mrb[0].mxu0
        %v1616 = vadd.f32 %v614, %v1615
        %v1617 = vpop.f32.mrb[0].mxu0
        %v1618 = vadd.f32 %v618, %v1617
        %v1619 = vpop.f32.mrb[0].mxu0
        %v1620 = vadd.f32 %v614, %v1619
        %v1621 = vpop.f32.mrb[0].mxu0
        %v1622 = vadd.f32 %v618, %v1621
        %1623 = vmatprep.mubr.bf16.mxu0 %v822
        %1624 = vmatmul.mubr.bf16.gmra.mrb[0].mxu0 %v821
        %v1625 = vpop.f32.mrb[0].mxu0
        %v1626 = vadd.f32 %v614, %v1625
        %v1627 = vpop.f32.mrb[0].mxu0
        %v1628 = vadd.f32 %v618, %v1627
        %v1629 = vpop.f32.mrb[0].mxu0
        %v1630 = vadd.f32 %v614, %v1629
        %v1631 = vpop.f32.mrb[0].mxu0
        %v1632 = vadd.f32 %v618, %v1631
        %1633 = vmatprep.mubr.bf16.mxu0 %v830
        %1634 = vmatmul.mubr.bf16.gmra.mrb[0].mxu0 %v829
        %v1635 = vpop.f32.mrb[0].mxu0
        %v1636 = vadd.f32 %v614, %v1635
        %v1637 = vpop.f32.mrb[0].mxu0
        %v1638 = vadd.f32 %v618, %v1637
        %v1639 = vpop.f32.mrb[0].mxu0
        %v1640 = vadd.f32 %v614, %v1639
        %v1641 = vpop.f32.mrb[0].mxu0
        %v1642 = vadd.f32 %v618, %v1641
        %1643 = vmatprep.mubr.bf16.mxu0 %v838
        %1644 = vmatmul.mubr.bf16.gmra.mrb[0].mxu0 %v837
        %v1645 = vpop.f32.mrb[0].mxu0
        %v1646 = vadd.f32 %v614, %v1645
        %v1647 = vpop.f32.mrb[0].mxu0
        %v1648 = vadd.f32 %v618, %v1647
        %v1649 = vpop.f32.mrb[0].mxu0
        %v1650 = vadd.f32 %v614, %v1649
        %v1651 = vpop.f32.mrb[0].mxu0
        %v1652 = vadd.f32 %v618, %v1651
        %1653 = vmatprep.mubr.bf16.mxu0 %v846
        %1654 = vmatmul.mubr.bf16.gmra.mrb[0].mxu0 %v845
        %v1655 = vpop.f32.mrb[0].mxu0
        %v1656 = vadd.f32 %v614, %v1655
        %v1657 = vpop.f32.mrb[0].mxu0
        %v1658 = vadd.f32 %v618, %v1657
        %v1659 = vpop.f32.mrb[0].mxu0
        %v1660 = vadd.f32 %v614, %v1659
        %v1661 = vpop.f32.mrb[0].mxu0
        %v1662 = vadd.f32 %v618, %v1661
        %1663 = vmatprep.mubr.bf16.mxu0 %v854
        %1664 = vmatmul.mubr.bf16.gmra.mrb[0].mxu0 %v853
        %v1665 = vpop.f32.mrb[0].mxu0
        %v1666 = vadd.f32 %v614, %v1665
        %v1667 = vpop.f32.mrb[0].mxu0
        %v1668 = vadd.f32 %v618, %v1667
        %v1669 = vpop.f32.mrb[0].mxu0
        %v1670 = vadd.f32 %v614, %v1669
        %v1671 = vpop.f32.mrb[0].mxu0
        %v1672 = vadd.f32 %v618, %v1671
        %1673 = vmatprep.mubr.bf16.mxu0 %v862
        %1674 = vmatmul.mubr.bf16.gmra.mrb[0].mxu0 %v861
        %v1675 = vpop.f32.mrb[0].mxu0
        %v1676 = vadd.f32 %v614, %v1675
        %v1677 = vpop.f32.mrb[0].mxu0
        %v1678 = vadd.f32 %v618, %v1677
        %v1679 = vpop.f32.mrb[0].mxu0
        %v1680 = vadd.f32 %v614, %v1679
        %v1681 = vpop.f32.mrb[0].mxu0
        %v1682 = vadd.f32 %v618, %v1681
        %1683 = vmatprep.mubr.bf16.mxu0 %v870
        %1684 = vmatmul.mubr.bf16.gmra.mrb[0].mxu0 %v869
        %v1685 = vpop.f32.mrb[0].mxu0
        %v1686 = vadd.f32 %v614, %v1685
        %v1687 = vpop.f32.mrb[0].mxu0
        %v1688 = vadd.f32 %v618, %v1687
        %v1689 = vpop.f32.mrb[0].mxu0
        %v1690 = vadd.f32 %v614, %v1689
        %v1691 = vpop.f32.mrb[0].mxu0
        %v1692 = vadd.f32 %v618, %v1691
        %1693 = vdwg.mxu0
        %1694 = vmatprep.subr.bf16.mxu0 %v1358
        %1695 = vmatpush1.bf16.msra.mxu0 %v1357
        %1696 = vmatprep.subr.bf16.mxu0 %v1360
        %1697 = vmatpush1.bf16.msra.mxu0 %v1359
        %1698 = vmatprep.subr.bf16.mxu0 %v1362
        %1699 = vmatpush1.bf16.msra.mxu0 %v1361
        %1700 = vmatprep.subr.bf16.mxu0 %v1364
        %1701 = vmatpush1.bf16.msra.mxu0 %v1363
        %1702 = vmatprep.subr.bf16.mxu0 %v1366
        %1703 = vmatpush1.bf16.msra.mxu0 %v1365
        %1704 = vmatprep.subr.bf16.mxu0 %v1368
        %1705 = vmatpush1.bf16.msra.mxu0 %v1367
        %1706 = vmatprep.subr.bf16.mxu0 %v1370
        %1707 = vmatpush1.bf16.msra.mxu0 %v1369
        %1708 = vmatprep.subr.bf16.mxu0 %v1372
        %1709 = vmatpush1.bf16.msra.mxu0 %v1371
        %1710 = vmatprep.subr.bf16.mxu0 %v1374
        %1711 = vmatpush1.bf16.msra.mxu0 %v1373
        %1712 = vmatprep.subr.bf16.mxu0 %v1376
        %1713 = vmatpush1.bf16.msra.mxu0 %v1375
        %1714 = vmatprep.subr.bf16.mxu0 %v1378
        %1715 = vmatpush1.bf16.msra.mxu0 %v1377
        %1716 = vmatprep.subr.bf16.mxu0 %v1380
        %1717 = vmatpush1.bf16.msra.mxu0 %v1379
        %1718 = vmatprep.subr.bf16.mxu0 %v1382
        %1719 = vmatpush1.bf16.msra.mxu0 %v1381
        %1720 = vmatprep.subr.bf16.mxu0 %v1384
        %1721 = vmatpush1.bf16.msra.mxu0 %v1383
        %1722 = vmatprep.subr.bf16.mxu0 %v1386
        %1723 = vmatpush1.bf16.msra.mxu0 %v1385
        %1724 = vmatprep.subr.bf16.mxu0 %v1388
        %1725 = vmatpush1.bf16.msra.mxu0 %v1387
        %1726 = vmatprep.mubr.bf16.mxu0 %v816
        %1727 = vmatmul.mubr.bf16.gmra.mrb[0].mxu0 %v815
        %v1728 = vpop.f32.mrb[0].mxu0
        %v1729 = vadd.f32 %v1616, %v1728
        %v1730 = vpop.f32.mrb[0].mxu0
        %v1731 = vadd.f32 %v1618, %v1730
        %v1732 = vpop.f32.mrb[0].mxu0
        %v1733 = vadd.f32 %v1620, %v1732
        %v1734 = vpop.f32.mrb[0].mxu0
        %v1735 = vadd.f32 %v1622, %v1734
        %1736 = vmatprep.mubr.bf16.mxu0 %v824
        %1737 = vmatmul.mubr.bf16.gmra.mrb[0].mxu0 %v823
        %v1738 = vpop.f32.mrb[0].mxu0
        %v1739 = vadd.f32 %v1626, %v1738
        %v1740 = vpop.f32.mrb[0].mxu0
        %v1741 = vadd.f32 %v1628, %v1740
        %v1742 = vpop.f32.mrb[0].mxu0
        %v1743 = vadd.f32 %v1630, %v1742
        %v1744 = vpop.f32.mrb[0].mxu0
        %v1745 = vadd.f32 %v1632, %v1744
        %1746 = vmatprep.mubr.bf16.mxu0 %v832
        %1747 = vmatmul.mubr.bf16.gmra.mrb[0].mxu0 %v831
        %v1748 = vpop.f32.mrb[0].mxu0
        %v1749 = vadd.f32 %v1636, %v1748
        %v1750 = vpop.f32.mrb[0].mxu0
        %v1751 = vadd.f32 %v1638, %v1750
        %v1752 = vpop.f32.mrb[0].mxu0
        %v1753 = vadd.f32 %v1640, %v1752
        %v1754 = vpop.f32.mrb[0].mxu0
        %v1755 = vadd.f32 %v1642, %v1754
        %1756 = vmatprep.mubr.bf16.mxu0 %v840
        %1757 = vmatmul.mubr.bf16.gmra.mrb[0].mxu0 %v839
        %v1758 = vpop.f32.mrb[0].mxu0
        %v1759 = vadd.f32 %v1646, %v1758
        %v1760 = vpop.f32.mrb[0].mxu0
        %v1761 = vadd.f32 %v1648, %v1760
        %v1762 = vpop.f32.mrb[0].mxu0
        %v1763 = vadd.f32 %v1650, %v1762
        %v1764 = vpop.f32.mrb[0].mxu0
        %v1765 = vadd.f32 %v1652, %v1764
        %1766 = vmatprep.mubr.bf16.mxu0 %v848
        %1767 = vmatmul.mubr.bf16.gmra.mrb[0].mxu0 %v847
        %v1768 = vpop.f32.mrb[0].mxu0
        %v1769 = vadd.f32 %v1656, %v1768
        %v1770 = vpop.f32.mrb[0].mxu0
        %v1771 = vadd.f32 %v1658, %v1770
        %v1772 = vpop.f32.mrb[0].mxu0
        %v1773 = vadd.f32 %v1660, %v1772
        %v1774 = vpop.f32.mrb[0].mxu0
        %v1775 = vadd.f32 %v1662, %v1774
        %1776 = vmatprep.mubr.bf16.mxu0 %v856
        %1777 = vmatmul.mubr.bf16.gmra.mrb[0].mxu0 %v855
        %v1778 = vpop.f32.mrb[0].mxu0
        %v1779 = vadd.f32 %v1666, %v1778
        %v1780 = vpop.f32.mrb[0].mxu0
        %v1781 = vadd.f32 %v1668, %v1780
        %v1782 = vpop.f32.mrb[0].mxu0
        %v1783 = vadd.f32 %v1670, %v1782
        %v1784 = vpop.f32.mrb[0].mxu0
        %v1785 = vadd.f32 %v1672, %v1784
        %1786 = vmatprep.mubr.bf16.mxu0 %v864
        %1787 = vmatmul.mubr.bf16.gmra.mrb[0].mxu0 %v863
        %v1788 = vpop.f32.mrb[0].mxu0
        %v1789 = vadd.f32 %v1676, %v1788
        %v1790 = vpop.f32.mrb[0].mxu0
        %v1791 = vadd.f32 %v1678, %v1790
        %v1792 = vpop.f32.mrb[0].mxu0
        %v1793 = vadd.f32 %v1680, %v1792
        %v1794 = vpop.f32.mrb[0].mxu0
        %v1795 = vadd.f32 %v1682, %v1794
        %1796 = vmatprep.mubr.bf16.mxu0 %v872
        %1797 = vmatmul.mubr.bf16.gmra.mrb[0].mxu0 %v871
        %v1798 = vpop.f32.mrb[0].mxu0
        %v1799 = vadd.f32 %v1686, %v1798
        %v1800 = vpop.f32.mrb[0].mxu0
        %v1801 = vadd.f32 %v1688, %v1800
        %v1802 = vpop.f32.mrb[0].mxu0
        %v1803 = vadd.f32 %v1690, %v1802
        %v1804 = vpop.f32.mrb[0].mxu0
        %v1805 = vadd.f32 %v1692, %v1804
        %1806 = vdwg.mxu0
        %1807 = vmatprep.subr.bf16.mxu0 %v1390
        %1808 = vmatpush1.bf16.msra.mxu0 %v1389
        %1809 = vmatprep.subr.bf16.mxu0 %v1392
        %1810 = vmatpush1.bf16.msra.mxu0 %v1391
        %1811 = vmatprep.subr.bf16.mxu0 %v1394
        %1812 = vmatpush1.bf16.msra.mxu0 %v1393
        %1813 = vmatprep.subr.bf16.mxu0 %v1396
        %1814 = vmatpush1.bf16.msra.mxu0 %v1395
        %1815 = vmatprep.subr.bf16.mxu0 %v1398
        %1816 = vmatpush1.bf16.msra.mxu0 %v1397
        %1817 = vmatprep.subr.bf16.mxu0 %v1400
        %1818 = vmatpush1.bf16.msra.mxu0 %v1399
        %1819 = vmatprep.subr.bf16.mxu0 %v1402
        %1820 = vmatpush1.bf16.msra.mxu0 %v1401
        %1821 = vmatprep.subr.bf16.mxu0 %v1404
        %1822 = vmatpush1.bf16.msra.mxu0 %v1403
        %1823 = vmatprep.subr.bf16.mxu0 %v1406
        %1824 = vmatpush1.bf16.msra.mxu0 %v1405
        %1825 = vmatprep.subr.bf16.mxu0 %v1408
        %1826 = vmatpush1.bf16.msra.mxu0 %v1407
        %1827 = vmatprep.subr.bf16.mxu0 %v1410
        %1828 = vmatpush1.bf16.msra.mxu0 %v1409
        %1829 = vmatprep.subr.bf16.mxu0 %v1412
        %1830 = vmatpush1.bf16.msra.mxu0 %v1411
        %1831 = vmatprep.subr.bf16.mxu0 %v1414
        %1832 = vmatpush1.bf16.msra.mxu0 %v1413
        %1833 = vmatprep.subr.bf16.mxu0 %v1416
        %1834 = vmatpush1.bf16.msra.mxu0 %v1415
        %1835 = vmatprep.subr.bf16.mxu0 %v1418
        %1836 = vmatpush1.bf16.msra.mxu0 %v1417
        %1837 = vmatprep.subr.bf16.mxu0 %v1420
        %1838 = vmatpush1.bf16.msra.mxu0 %v1419
        %1839 = vmatprep.mubr.bf16.mxu0 %v818
        %1840 = vmatmul.mubr.bf16.gmra.mrb[0].mxu0 %v817
        %v1841 = vpop.f32.mrb[0].mxu0
        %v1842 = vadd.f32 %v1729, %v1841
        %v1843 = vpop.f32.mrb[0].mxu0
        %v1844 = vadd.f32 %v1731, %v1843
        %v1845 = vpop.f32.mrb[0].mxu0
        %v1846 = vadd.f32 %v1733, %v1845
        %v1847 = vpop.f32.mrb[0].mxu0
        %v1848 = vadd.f32 %v1735, %v1847
        %1849 = vmatprep.mubr.bf16.mxu0 %v826
        %1850 = vmatmul.mubr.bf16.gmra.mrb[0].mxu0 %v825
        %v1851 = vpop.f32.mrb[0].mxu0
        %v1852 = vadd.f32 %v1739, %v1851
        %v1853 = vpop.f32.mrb[0].mxu0
        %v1854 = vadd.f32 %v1741, %v1853
        %v1855 = vpop.f32.mrb[0].mxu0
        %v1856 = vadd.f32 %v1743, %v1855
        %v1857 = vpop.f32.mrb[0].mxu0
        %v1858 = vadd.f32 %v1745, %v1857
        %1859 = vmatprep.mubr.bf16.mxu0 %v834
        %1860 = vmatmul.mubr.bf16.gmra.mrb[0].mxu0 %v833
        %v1861 = vpop.f32.mrb[0].mxu0
        %v1862 = vadd.f32 %v1749, %v1861
        %v1863 = vpop.f32.mrb[0].mxu0
        %v1864 = vadd.f32 %v1751, %v1863
        %v1865 = vpop.f32.mrb[0].mxu0
        %v1866 = vadd.f32 %v1753, %v1865
        %v1867 = vpop.f32.mrb[0].mxu0
        %v1868 = vadd.f32 %v1755, %v1867
        %1869 = vmatprep.mubr.bf16.mxu0 %v842
        %1870 = vmatmul.mubr.bf16.gmra.mrb[0].mxu0 %v841
        %v1871 = vpop.f32.mrb[0].mxu0
        %v1872 = vadd.f32 %v1759, %v1871
        %v1873 = vpop.f32.mrb[0].mxu0
        %v1874 = vadd.f32 %v1761, %v1873
        %v1875 = vpop.f32.mrb[0].mxu0
        %v1876 = vadd.f32 %v1763, %v1875
        %v1877 = vpop.f32.mrb[0].mxu0
        %v1878 = vadd.f32 %v1765, %v1877
        %1879 = vmatprep.mubr.bf16.mxu0 %v850
        %1880 = vmatmul.mubr.bf16.gmra.mrb[0].mxu0 %v849
        %v1881 = vpop.f32.mrb[0].mxu0
        %v1882 = vadd.f32 %v1769, %v1881
        %v1883 = vpop.f32.mrb[0].mxu0
        %v1884 = vadd.f32 %v1771, %v1883
        %v1885 = vpop.f32.mrb[0].mxu0
        %v1886 = vadd.f32 %v1773, %v1885
        %v1887 = vpop.f32.mrb[0].mxu0
        %v1888 = vadd.f32 %v1775, %v1887
        %1889 = vmatprep.mubr.bf16.mxu0 %v858
        %1890 = vmatmul.mubr.bf16.gmra.mrb[0].mxu0 %v857
        %v1891 = vpop.f32.mrb[0].mxu0
        %v1892 = vadd.f32 %v1779, %v1891
        %v1893 = vpop.f32.mrb[0].mxu0
        %v1894 = vadd.f32 %v1781, %v1893
        %v1895 = vpop.f32.mrb[0].mxu0
        %v1896 = vadd.f32 %v1783, %v1895
        %v1897 = vpop.f32.mrb[0].mxu0
        %v1898 = vadd.f32 %v1785, %v1897
        %1899 = vmatprep.mubr.bf16.mxu0 %v866
        %1900 = vmatmul.mubr.bf16.gmra.mrb[0].mxu0 %v865
        %v1901 = vpop.f32.mrb[0].mxu0
        %v1902 = vadd.f32 %v1789, %v1901
        %v1903 = vpop.f32.mrb[0].mxu0
        %v1904 = vadd.f32 %v1791, %v1903
        %v1905 = vpop.f32.mrb[0].mxu0
        %v1906 = vadd.f32 %v1793, %v1905
        %v1907 = vpop.f32.mrb[0].mxu0
        %v1908 = vadd.f32 %v1795, %v1907
        %1909 = vmatprep.mubr.bf16.mxu0 %v874
        %1910 = vmatmul.mubr.bf16.gmra.mrb[0].mxu0 %v873
        %v1911 = vpop.f32.mrb[0].mxu0
        %v1912 = vadd.f32 %v1799, %v1911
        %v1913 = vpop.f32.mrb[0].mxu0
        %v1914 = vadd.f32 %v1801, %v1913
        %v1915 = vpop.f32.mrb[0].mxu0
        %v1916 = vadd.f32 %v1803, %v1915
        %v1917 = vpop.f32.mrb[0].mxu0
        %v1918 = vadd.f32 %v1805, %v1917
        %1919 = vdwg.mxu0
        %1920 = vmatprep.subr.bf16.mxu0 %v1422
        %1921 = vmatpush1.bf16.msra.mxu0 %v1421
        %1922 = vmatprep.subr.bf16.mxu0 %v1424
        %1923 = vmatpush1.bf16.msra.mxu0 %v1423
        %1924 = vmatprep.subr.bf16.mxu0 %v1426
        %1925 = vmatpush1.bf16.msra.mxu0 %v1425
        %1926 = vmatprep.subr.bf16.mxu0 %v1428
        %1927 = vmatpush1.bf16.msra.mxu0 %v1427
        %1928 = vmatprep.subr.bf16.mxu0 %v1430
        %1929 = vmatpush1.bf16.msra.mxu0 %v1429
        %1930 = vmatprep.subr.bf16.mxu0 %v1432
        %1931 = vmatpush1.bf16.msra.mxu0 %v1431
        %1932 = vmatprep.subr.bf16.mxu0 %v1434
        %1933 = vmatpush1.bf16.msra.mxu0 %v1433
        %1934 = vmatprep.subr.bf16.mxu0 %v1436
        %1935 = vmatpush1.bf16.msra.mxu0 %v1435
        %1936 = vmatprep.subr.bf16.mxu0 %v1438
        %1937 = vmatpush1.bf16.msra.mxu0 %v1437
        %1938 = vmatprep.subr.bf16.mxu0 %v1440
        %1939 = vmatpush1.bf16.msra.mxu0 %v1439
        %1940 = vmatprep.subr.bf16.mxu0 %v1442
        %1941 = vmatpush1.bf16.msra.mxu0 %v1441
        %1942 = vmatprep.subr.bf16.mxu0 %v1444
        %1943 = vmatpush1.bf16.msra.mxu0 %v1443
        %1944 = vmatprep.subr.bf16.mxu0 %v1446
        %1945 = vmatpush1.bf16.msra.mxu0 %v1445
        %1946 = vmatprep.subr.bf16.mxu0 %v1448
        %1947 = vmatpush1.bf16.msra.mxu0 %v1447
        %1948 = vmatprep.subr.bf16.mxu0 %v1450
        %1949 = vmatpush1.bf16.msra.mxu0 %v1449
        %1950 = vmatprep.subr.bf16.mxu0 %v1452
        %1951 = vmatpush1.bf16.msra.mxu0 %v1451
        %1952 = vmatprep.mubr.bf16.mxu0 %v820
        %1953 = vmatmul.mubr.bf16.gmra.mrb[0].mxu0 %v819
        %v1954 = vpop.f32.mrb[0].mxu0
        %v1955 = vadd.f32 %v1842, %v1954
        %v1956 = vpop.f32.mrb[0].mxu0
        %v1957 = vadd.f32 %v1844, %v1956
        %v1958 = vpop.f32.mrb[0].mxu0
        %v1959 = vadd.f32 %v1846, %v1958
        %v1960 = vpop.f32.mrb[0].mxu0
        %v1961 = vadd.f32 %v1848, %v1960
        %1962 = vmatprep.mubr.bf16.mxu0 %v828
        %1963 = vmatmul.mubr.bf16.gmra.mrb[0].mxu0 %v827
        %v1964 = vpop.f32.mrb[0].mxu0
        %v1965 = vadd.f32 %v1852, %v1964
        %v1966 = vpop.f32.mrb[0].mxu0
        %v1967 = vadd.f32 %v1854, %v1966
        %v1968 = vpop.f32.mrb[0].mxu0
        %v1969 = vadd.f32 %v1856, %v1968
        %v1970 = vpop.f32.mrb[0].mxu0
        %v1971 = vadd.f32 %v1858, %v1970
        %1972 = vmatprep.mubr.bf16.mxu0 %v836
        %1973 = vmatmul.mubr.bf16.gmra.mrb[0].mxu0 %v835
        %v1974 = vpop.f32.mrb[0].mxu0
        %v1975 = vadd.f32 %v1862, %v1974
        %v1976 = vpop.f32.mrb[0].mxu0
        %v1977 = vadd.f32 %v1864, %v1976
        %v1978 = vpop.f32.mrb[0].mxu0
        %v1979 = vadd.f32 %v1866, %v1978
        %v1980 = vpop.f32.mrb[0].mxu0
        %v1981 = vadd.f32 %v1868, %v1980
        %1982 = vmatprep.mubr.bf16.mxu0 %v844
        %1983 = vmatmul.mubr.bf16.gmra.mrb[0].mxu0 %v843
        %v1984 = vpop.f32.mrb[0].mxu0
        %v1985 = vadd.f32 %v1872, %v1984
        %v1986 = vpop.f32.mrb[0].mxu0
        %v1987 = vadd.f32 %v1874, %v1986
        %v1988 = vpop.f32.mrb[0].mxu0
        %v1989 = vadd.f32 %v1876, %v1988
        %v1990 = vpop.f32.mrb[0].mxu0
        %v1991 = vadd.f32 %v1878, %v1990
        %1992 = vmatprep.mubr.bf16.mxu0 %v852
        %1993 = vmatmul.mubr.bf16.gmra.mrb[0].mxu0 %v851
        %v1994 = vpop.f32.mrb[0].mxu0
        %v1995 = vadd.f32 %v1882, %v1994
        %v1996 = vpop.f32.mrb[0].mxu0
        %v1997 = vadd.f32 %v1884, %v1996
        %v1998 = vpop.f32.mrb[0].mxu0
        %v1999 = vadd.f32 %v1886, %v1998
        %v2000 = vpop.f32.mrb[0].mxu0
        %v2001 = vadd.f32 %v1888, %v2000
        %2002 = vmatprep.mubr.bf16.mxu0 %v860
        %2003 = vmatmul.mubr.bf16.gmra.mrb[0].mxu0 %v859
        %v2004 = vpop.f32.mrb[0].mxu0
        %v2005 = vadd.f32 %v1892, %v2004
        %v2006 = vpop.f32.mrb[0].mxu0
        %v2007 = vadd.f32 %v1894, %v2006
        %v2008 = vpop.f32.mrb[0].mxu0
        %v2009 = vadd.f32 %v1896, %v2008
        %v2010 = vpop.f32.mrb[0].mxu0
        %v2011 = vadd.f32 %v1898, %v2010
        %2012 = vmatprep.mubr.bf16.mxu0 %v868
        %2013 = vmatmul.mubr.bf16.gmra.mrb[0].mxu0 %v867
        %v2014 = vpop.f32.mrb[0].mxu0
        %v2015 = vadd.f32 %v1902, %v2014
        %v2016 = vpop.f32.mrb[0].mxu0
        %v2017 = vadd.f32 %v1904, %v2016
        %v2018 = vpop.f32.mrb[0].mxu0
        %v2019 = vadd.f32 %v1906, %v2018
        %v2020 = vpop.f32.mrb[0].mxu0
        %v2021 = vadd.f32 %v1908, %v2020
        %2022 = vmatprep.mubr.bf16.mxu0 %v876
        %2023 = vmatmul.mubr.bf16.gmra.mrb[0].mxu0 %v875
        %v2024 = vpop.f32.mrb[0].mxu0
        %v2025 = vadd.f32 %v1912, %v2024
        %v2026 = vpop.f32.mrb[0].mxu0
        %v2027 = vadd.f32 %v1914, %v2026
        %v2028 = vpop.f32.mrb[0].mxu0
        %v2029 = vadd.f32 %v1916, %v2028
        %v2030 = vpop.f32.mrb[0].mxu0
        %v2031 = vadd.f32 %v1918, %v2030
        %2032 = vdwg.mxu0
        %v2033 = vld [vmem:[%s405] sm:$0xff]
        %v2034 = vld [vmem:[%s405 + $0x8] sm:$0xff]
        %v2035 = vld [vmem:[%s405 + $0x10] sm:$0xff]
        %v2036 = vld [vmem:[%s405 + $0x18] sm:$0xff]
        %v2037 = vld [vmem:[%s405 + $0x20] sm:$0xff]
        %v2038 = vld [vmem:[%s405 + $0x28] sm:$0xff]
        %v2039 = vld [vmem:[%s405 + $0x30] sm:$0xff]
        %v2040 = vld [vmem:[%s405 + $0x38] sm:$0xff]
        %v2041 = vld [vmem:[%s405 + $0x40] sm:$0xff]
        %v2042 = vld [vmem:[%s405 + $0x48] sm:$0xff]
        %v2043 = vld [vmem:[%s405 + $0x50] sm:$0xff]
        %v2044 = vld [vmem:[%s405 + $0x58] sm:$0xff]
        %v2045 = vld [vmem:[%s405 + $0x60] sm:$0xff]
        %v2046 = vld [vmem:[%s405 + $0x68] sm:$0xff]
        %v2047 = vld [vmem:[%s405 + $0x70] sm:$0xff]
        %v2048 = vld [vmem:[%s405 + $0x78] sm:$0xff]
        %v2049 = vld [vmem:[%s408] sm:$0x1]
        %v2050 = vld [vmem:[%s7] sm:$0xff]
        %v2051 = vld [vmem:[%s7 + $0x8] sm:$0xff]
        %v2052 = vld [vmem:[%s7 + $0x10] sm:$0xff]
        %v2053 = vld [vmem:[%s7 + $0x18] sm:$0xff]
        %v2054 = vld [vmem:[%s7 + $0x20] sm:$0xff]
        %v2055 = vld [vmem:[%s7 + $0x28] sm:$0xff]
        %v2056 = vld [vmem:[%s7 + $0x30] sm:$0xff]
        %v2057 = vld [vmem:[%s7 + $0x38] sm:$0xff]
        %v2058 = vld [vmem:[%s7 + $0x40] sm:$0xff]
        %v2059 = vld [vmem:[%s7 + $0x48] sm:$0xff]
        %v2060 = vld [vmem:[%s7 + $0x50] sm:$0xff]
        %v2061 = vld [vmem:[%s7 + $0x58] sm:$0xff]
        %v2062 = vld [vmem:[%s7 + $0x60] sm:$0xff]
        %v2063 = vld [vmem:[%s7 + $0x68] sm:$0xff]
        %v2064 = vld [vmem:[%s7 + $0x70] sm:$0xff]
        %v2065 = vld [vmem:[%s7 + $0x78] sm:$0xff]
        %v2067 = vlaneseq
        %v2068 = vshrl.u32 %v2067, 7
        %v2069 = vsub.s32 0, %v2068
        %v2070 = vrot.slane %v2049, %v2069
        %v2072 = vadd.f32 %v2070, %v2050
        %v2073 = vadd.f32 %v2070, %v2051
        %v2074 = vadd.f32 %v2070, %v2052
        %v2075 = vadd.f32 %v2070, %v2053
        %v2076 = vadd.f32 %v2070, %v2054
        %v2077 = vadd.f32 %v2070, %v2055
        %v2078 = vadd.f32 %v2070, %v2056
        %v2079 = vadd.f32 %v2070, %v2057
        %v2080 = vadd.f32 %v2070, %v2058
        %v2081 = vadd.f32 %v2070, %v2059
        %v2082 = vadd.f32 %v2070, %v2060
        %v2083 = vadd.f32 %v2070, %v2061
        %v2084 = vadd.f32 %v2070, %v2062
        %v2085 = vadd.f32 %v2070, %v2063
        %v2086 = vadd.f32 %v2070, %v2064
        %v2087 = vadd.f32 %v2070, %v2065
        %v2088 = vld [vmem:[%s5] sm:$0xff]
        %v2089 = vld [vmem:[%s5 + $0x8] sm:$0xff]
        %v2090 = vld [vmem:[%s5 + $0x10] sm:$0xff]
        %v2091 = vld [vmem:[%s5 + $0x18] sm:$0xff]
        %v2092 = vld [vmem:[%s5 + $0x20] sm:$0xff]
        %v2093 = vld [vmem:[%s5 + $0x28] sm:$0xff]
        %v2094 = vld [vmem:[%s5 + $0x30] sm:$0xff]
        %v2095 = vld [vmem:[%s5 + $0x38] sm:$0xff]
        %v2096 = vld [vmem:[%s5 + $0x40] sm:$0xff]
        %v2097 = vld [vmem:[%s5 + $0x48] sm:$0xff]
        %v2098 = vld [vmem:[%s5 + $0x50] sm:$0xff]
        %v2099 = vld [vmem:[%s5 + $0x58] sm:$0xff]
        %v2100 = vld [vmem:[%s5 + $0x60] sm:$0xff]
        %v2101 = vld [vmem:[%s5 + $0x68] sm:$0xff]
        %v2102 = vld [vmem:[%s5 + $0x70] sm:$0xff]
        %v2103 = vld [vmem:[%s5 + $0x78] sm:$0xff]
        %v2104 = vld [vmem:[%s6] sm:$0xff]
        %v2105 = vld [vmem:[%s6 + $0x8] sm:$0xff]
        %v2106 = vld [vmem:[%s6 + $0x10] sm:$0xff]
        %v2107 = vld [vmem:[%s6 + $0x18] sm:$0xff]
        %v2108 = vld [vmem:[%s6 + $0x20] sm:$0xff]
        %v2109 = vld [vmem:[%s6 + $0x28] sm:$0xff]
        %v2110 = vld [vmem:[%s6 + $0x30] sm:$0xff]
        %v2111 = vld [vmem:[%s6 + $0x38] sm:$0xff]
        %v2112 = vld [vmem:[%s6 + $0x40] sm:$0xff]
        %v2113 = vld [vmem:[%s6 + $0x48] sm:$0xff]
        %v2114 = vld [vmem:[%s6 + $0x50] sm:$0xff]
        %v2115 = vld [vmem:[%s6 + $0x58] sm:$0xff]
        %v2116 = vld [vmem:[%s6 + $0x60] sm:$0xff]
        %v2117 = vld [vmem:[%s6 + $0x68] sm:$0xff]
        %v2118 = vld [vmem:[%s6 + $0x70] sm:$0xff]
        %v2119 = vld [vmem:[%s6 + $0x78] sm:$0xff]
        %v2120 = vmul.f32 %v1955, %v2088
        %v2121 = vmul.f32 %v1959, %v2089
        %v2122 = vmul.f32 %v1965, %v2090
        %v2123 = vmul.f32 %v1969, %v2091
        %v2124 = vmul.f32 %v1975, %v2092
        %v2125 = vmul.f32 %v1979, %v2093
        %v2126 = vmul.f32 %v1985, %v2094
        %v2127 = vmul.f32 %v1989, %v2095
        %v2128 = vmul.f32 %v1995, %v2096
        %v2129 = vmul.f32 %v1999, %v2097
        %v2130 = vmul.f32 %v2005, %v2098
        %v2131 = vmul.f32 %v2009, %v2099
        %v2132 = vmul.f32 %v2015, %v2100
        %v2133 = vmul.f32 %v2019, %v2101
        %v2134 = vmul.f32 %v2025, %v2102
        %v2135 = vmul.f32 %v2029, %v2103
        %2152 = vrot.lane.b32.xlu0 %v1955, 96
        %v2153 = vpop.permute.xlu0 %2152
        %2154 = vrot.lane.b32.xlu0 %v1959, 96
        %v2155 = vpop.permute.xlu0 %2154
        %2156 = vrot.lane.b32.xlu0 %v1965, 96
        %v2157 = vpop.permute.xlu0 %2156
        %2158 = vrot.lane.b32.xlu0 %v1969, 96
        %v2159 = vpop.permute.xlu0 %2158
        %2160 = vrot.lane.b32.xlu0 %v1975, 96
        %v2161 = vpop.permute.xlu0 %2160
        %2162 = vrot.lane.b32.xlu0 %v1979, 96
        %v2163 = vpop.permute.xlu0 %2162
        %2164 = vrot.lane.b32.xlu0 %v1985, 96
        %v2165 = vpop.permute.xlu0 %2164
        %2166 = vrot.lane.b32.xlu0 %v1989, 96
        %v2167 = vpop.permute.xlu0 %2166
        %2168 = vrot.lane.b32.xlu0 %v1995, 96
        %v2169 = vpop.permute.xlu0 %2168
        %2170 = vrot.lane.b32.xlu0 %v1999, 96
        %v2171 = vpop.permute.xlu0 %2170
        %2172 = vrot.lane.b32.xlu0 %v2005, 96
        %v2173 = vpop.permute.xlu0 %2172
        %2174 = vrot.lane.b32.xlu0 %v2009, 96
        %v2175 = vpop.permute.xlu0 %2174
        %2176 = vrot.lane.b32.xlu0 %v2015, 96
        %v2177 = vpop.permute.xlu0 %2176
        %2178 = vrot.lane.b32.xlu0 %v2019, 96
        %v2179 = vpop.permute.xlu0 %2178
        %2180 = vrot.lane.b32.xlu0 %v2025, 96
        %v2181 = vpop.permute.xlu0 %2180
        %2182 = vrot.lane.b32.xlu0 %v2029, 96
        %v2183 = vpop.permute.xlu0 %2182
        %2200 = vrot.lane.b32.xlu0 %v1955, 32
        %v2201 = vpop.permute.xlu0 %2200
        %2202 = vrot.lane.b32.xlu0 %v1959, 32
        %v2203 = vpop.permute.xlu0 %2202
        %2204 = vrot.lane.b32.xlu0 %v1965, 32
        %v2205 = vpop.permute.xlu0 %2204
        %2206 = vrot.lane.b32.xlu0 %v1969, 32
        %v2207 = vpop.permute.xlu0 %2206
        %2208 = vrot.lane.b32.xlu0 %v1975, 32
        %v2209 = vpop.permute.xlu0 %2208
        %2210 = vrot.lane.b32.xlu0 %v1979, 32
        %v2211 = vpop.permute.xlu0 %2210
        %2212 = vrot.lane.b32.xlu0 %v1985, 32
        %v2213 = vpop.permute.xlu0 %2212
        %2214 = vrot.lane.b32.xlu0 %v1989, 32
        %v2215 = vpop.permute.xlu0 %2214
        %2216 = vrot.lane.b32.xlu0 %v1995, 32
        %v2217 = vpop.permute.xlu0 %2216
        %2218 = vrot.lane.b32.xlu0 %v1999, 32
        %v2219 = vpop.permute.xlu0 %2218
        %2220 = vrot.lane.b32.xlu0 %v2005, 32
        %v2221 = vpop.permute.xlu0 %2220
        %2222 = vrot.lane.b32.xlu0 %v2009, 32
        %v2223 = vpop.permute.xlu0 %2222
        %2224 = vrot.lane.b32.xlu0 %v2015, 32
        %v2225 = vpop.permute.xlu0 %2224
        %2226 = vrot.lane.b32.xlu0 %v2019, 32
        %v2227 = vpop.permute.xlu0 %2226
        %2228 = vrot.lane.b32.xlu0 %v2025, 32
        %v2229 = vpop.permute.xlu0 %2228
        %2230 = vrot.lane.b32.xlu0 %v2029, 32
        %v2231 = vpop.permute.xlu0 %2230
        %vm2248 = vcmask 261120
        %v2249 = vsel %vm2248, %v2153, %v2201
        %v2250 = vsel %vm2248, %v2155, %v2203
        %v2251 = vsel %vm2248, %v2157, %v2205
        %v2252 = vsel %vm2248, %v2159, %v2207
        %v2253 = vsel %vm2248, %v2161, %v2209
        %v2254 = vsel %vm2248, %v2163, %v2211
        %v2255 = vsel %vm2248, %v2165, %v2213
        %v2256 = vsel %vm2248, %v2167, %v2215
        %v2257 = vsel %vm2248, %v2169, %v2217
        %v2258 = vsel %vm2248, %v2171, %v2219
        %v2259 = vsel %vm2248, %v2173, %v2221
        %v2260 = vsel %vm2248, %v2175, %v2223
        %v2261 = vsel %vm2248, %v2177, %v2225
        %v2262 = vsel %vm2248, %v2179, %v2227
        %v2263 = vsel %vm2248, %v2181, %v2229
        %v2264 = vsel %vm2248, %v2183, %v2231
        %v2265 = vmul.f32 %v2249, %v2104
        %v2266 = vmul.f32 %v2250, %v2105
        %v2267 = vmul.f32 %v2251, %v2106
        %v2268 = vmul.f32 %v2252, %v2107
        %v2269 = vmul.f32 %v2253, %v2108
        %v2270 = vmul.f32 %v2254, %v2109
        %v2271 = vmul.f32 %v2255, %v2110
        %v2272 = vmul.f32 %v2256, %v2111
        %v2273 = vmul.f32 %v2257, %v2112
        %v2274 = vmul.f32 %v2258, %v2113
        %v2275 = vmul.f32 %v2259, %v2114
        %v2276 = vmul.f32 %v2260, %v2115
        %v2277 = vmul.f32 %v2261, %v2116
        %v2278 = vmul.f32 %v2262, %v2117
        %v2279 = vmul.f32 %v2263, %v2118
        %v2280 = vmul.f32 %v2264, %v2119
        %v2281 = vadd.f32 %v2120, %v2265
        %v2282 = vadd.f32 %v2121, %v2266
        %v2283 = vadd.f32 %v2122, %v2267
        %v2284 = vadd.f32 %v2123, %v2268
        %v2285 = vadd.f32 %v2124, %v2269
        %v2286 = vadd.f32 %v2125, %v2270
        %v2287 = vadd.f32 %v2126, %v2271
        %v2288 = vadd.f32 %v2127, %v2272
        %v2289 = vadd.f32 %v2128, %v2273
        %v2290 = vadd.f32 %v2129, %v2274
        %v2291 = vadd.f32 %v2130, %v2275
        %v2292 = vadd.f32 %v2131, %v2276
        %v2293 = vadd.f32 %v2132, %v2277
        %v2294 = vadd.f32 %v2133, %v2278
        %v2295 = vadd.f32 %v2134, %v2279
        %v2296 = vadd.f32 %v2135, %v2280
        %2313 = vrot.lane.b32.xlu0 %v2088, 64
        %v2314 = vpop.permute.xlu0 %2313
        %2315 = vrot.lane.b32.xlu0 %v2089, 64
        %v2316 = vpop.permute.xlu0 %2315
        %2317 = vrot.lane.b32.xlu0 %v2090, 64
        %v2318 = vpop.permute.xlu0 %2317
        %2319 = vrot.lane.b32.xlu0 %v2091, 64
        %v2320 = vpop.permute.xlu0 %2319
        %2321 = vrot.lane.b32.xlu0 %v2092, 64
        %v2322 = vpop.permute.xlu0 %2321
        %2323 = vrot.lane.b32.xlu0 %v2093, 64
        %v2324 = vpop.permute.xlu0 %2323
        %2325 = vrot.lane.b32.xlu0 %v2094, 64
        %v2326 = vpop.permute.xlu0 %2325
        %2327 = vrot.lane.b32.xlu0 %v2095, 64
        %v2328 = vpop.permute.xlu0 %2327
        %2329 = vrot.lane.b32.xlu0 %v2096, 64
        %v2330 = vpop.permute.xlu0 %2329
        %2331 = vrot.lane.b32.xlu0 %v2097, 64
        %v2332 = vpop.permute.xlu0 %2331
        %2333 = vrot.lane.b32.xlu0 %v2098, 64
        %v2334 = vpop.permute.xlu0 %2333
        %2335 = vrot.lane.b32.xlu0 %v2099, 64
        %v2336 = vpop.permute.xlu0 %2335
        %2337 = vrot.lane.b32.xlu0 %v2100, 64
        %v2338 = vpop.permute.xlu0 %2337
        %2339 = vrot.lane.b32.xlu0 %v2101, 64
        %v2340 = vpop.permute.xlu0 %2339
        %2341 = vrot.lane.b32.xlu0 %v2102, 64
        %v2342 = vpop.permute.xlu0 %2341
        %2343 = vrot.lane.b32.xlu0 %v2103, 64
        %v2344 = vpop.permute.xlu0 %2343
        %v2361 = vmul.f32 %v1955, %v2314
        %v2362 = vmul.f32 %v1959, %v2316
        %v2363 = vmul.f32 %v1965, %v2318
        %v2364 = vmul.f32 %v1969, %v2320
        %v2365 = vmul.f32 %v1975, %v2322
        %v2366 = vmul.f32 %v1979, %v2324
        %v2367 = vmul.f32 %v1985, %v2326
        %v2368 = vmul.f32 %v1989, %v2328
        %v2369 = vmul.f32 %v1995, %v2330
        %v2370 = vmul.f32 %v1999, %v2332
        %v2371 = vmul.f32 %v2005, %v2334
        %v2372 = vmul.f32 %v2009, %v2336
        %v2373 = vmul.f32 %v2015, %v2338
        %v2374 = vmul.f32 %v2019, %v2340
        %v2375 = vmul.f32 %v2025, %v2342
        %v2376 = vmul.f32 %v2029, %v2344
        %v2377 = vsel %vm2248, %v2201, %v2153
        %v2378 = vsel %vm2248, %v2203, %v2155
        %v2379 = vsel %vm2248, %v2205, %v2157
        %v2380 = vsel %vm2248, %v2207, %v2159
        %v2381 = vsel %vm2248, %v2209, %v2161
        %v2382 = vsel %vm2248, %v2211, %v2163
        %v2383 = vsel %vm2248, %v2213, %v2165
        %v2384 = vsel %vm2248, %v2215, %v2167
        %v2385 = vsel %vm2248, %v2217, %v2169
        %v2386 = vsel %vm2248, %v2219, %v2171
        %v2387 = vsel %vm2248, %v2221, %v2173
        %v2388 = vsel %vm2248, %v2223, %v2175
        %v2389 = vsel %vm2248, %v2225, %v2177
        %v2390 = vsel %vm2248, %v2227, %v2179
        %v2391 = vsel %vm2248, %v2229, %v2181
        %v2392 = vsel %vm2248, %v2231, %v2183
        %v2393 = vmul.f32 %v2377, %v2104
        %v2394 = vmul.f32 %v2378, %v2105
        %v2395 = vmul.f32 %v2379, %v2106
        %v2396 = vmul.f32 %v2380, %v2107
        %v2397 = vmul.f32 %v2381, %v2108
        %v2398 = vmul.f32 %v2382, %v2109
        %v2399 = vmul.f32 %v2383, %v2110
        %v2400 = vmul.f32 %v2384, %v2111
        %v2401 = vmul.f32 %v2385, %v2112
        %v2402 = vmul.f32 %v2386, %v2113
        %v2403 = vmul.f32 %v2387, %v2114
        %v2404 = vmul.f32 %v2388, %v2115
        %v2405 = vmul.f32 %v2389, %v2116
        %v2406 = vmul.f32 %v2390, %v2117
        %v2407 = vmul.f32 %v2391, %v2118
        %v2408 = vmul.f32 %v2392, %v2119
        %2425 = vrot.lane.b32.xlu0 %v2393, 64
        %v2426 = vpop.permute.xlu0 %2425
        %2427 = vrot.lane.b32.xlu0 %v2394, 64
        %v2428 = vpop.permute.xlu0 %2427
        %2429 = vrot.lane.b32.xlu0 %v2395, 64
        %v2430 = vpop.permute.xlu0 %2429
        %2431 = vrot.lane.b32.xlu0 %v2396, 64
        %v2432 = vpop.permute.xlu0 %2431
        %2433 = vrot.lane.b32.xlu0 %v2397, 64
        %v2434 = vpop.permute.xlu0 %2433
        %2435 = vrot.lane.b32.xlu0 %v2398, 64
        %v2436 = vpop.permute.xlu0 %2435
        %2437 = vrot.lane.b32.xlu0 %v2399, 64
        %v2438 = vpop.permute.xlu0 %2437
        %2439 = vrot.lane.b32.xlu0 %v2400, 64
        %v2440 = vpop.permute.xlu0 %2439
        %2441 = vrot.lane.b32.xlu0 %v2401, 64
        %v2442 = vpop.permute.xlu0 %2441
        %2443 = vrot.lane.b32.xlu0 %v2402, 64
        %v2444 = vpop.permute.xlu0 %2443
        %2445 = vrot.lane.b32.xlu0 %v2403, 64
        %v2446 = vpop.permute.xlu0 %2445
        %2447 = vrot.lane.b32.xlu0 %v2404, 64
        %v2448 = vpop.permute.xlu0 %2447
        %2449 = vrot.lane.b32.xlu0 %v2405, 64
        %v2450 = vpop.permute.xlu0 %2449
        %2451 = vrot.lane.b32.xlu0 %v2406, 64
        %v2452 = vpop.permute.xlu0 %2451
        %2453 = vrot.lane.b32.xlu0 %v2407, 64
        %v2454 = vpop.permute.xlu0 %2453
        %2455 = vrot.lane.b32.xlu0 %v2408, 64
        %v2456 = vpop.permute.xlu0 %2455
        %v2473 = vadd.f32 %v2361, %v2426
        %v2474 = vadd.f32 %v2362, %v2428
        %v2475 = vadd.f32 %v2363, %v2430
        %v2476 = vadd.f32 %v2364, %v2432
        %v2477 = vadd.f32 %v2365, %v2434
        %v2478 = vadd.f32 %v2366, %v2436
        %v2479 = vadd.f32 %v2367, %v2438
        %v2480 = vadd.f32 %v2368, %v2440
        %v2481 = vadd.f32 %v2369, %v2442
        %v2482 = vadd.f32 %v2370, %v2444
        %v2483 = vadd.f32 %v2371, %v2446
        %v2484 = vadd.f32 %v2372, %v2448
        %v2485 = vadd.f32 %v2373, %v2450
        %v2486 = vadd.f32 %v2374, %v2452
        %v2487 = vadd.f32 %v2375, %v2454
        %v2488 = vadd.f32 %v2376, %v2456
        %2490 = vset.pattern.permute.xlu0 0
        %2491 = vperm.xlu0 %2490, %v2033
        %v2492 = vpop.permute.xlu0 %2491
        %2495 = vset.pattern.permute.xlu0 0
        %2496 = vperm.xlu0 %2495, %v2034
        %v2497 = vpop.permute.xlu0 %2496
        %2500 = vset.pattern.permute.xlu0 0
        %2501 = vperm.xlu0 %2500, %v2035
        %v2502 = vpop.permute.xlu0 %2501
        %2505 = vset.pattern.permute.xlu0 0
        %2506 = vperm.xlu0 %2505, %v2036
        %v2507 = vpop.permute.xlu0 %2506
        %2510 = vset.pattern.permute.xlu0 0
        %2511 = vperm.xlu0 %2510, %v2037
        %v2512 = vpop.permute.xlu0 %2511
        %2515 = vset.pattern.permute.xlu0 0
        %2516 = vperm.xlu0 %2515, %v2038
        %v2517 = vpop.permute.xlu0 %2516
        %2520 = vset.pattern.permute.xlu0 0
        %2521 = vperm.xlu0 %2520, %v2039
        %v2522 = vpop.permute.xlu0 %2521
        %2525 = vset.pattern.permute.xlu0 0
        %2526 = vperm.xlu0 %2525, %v2040
        %v2527 = vpop.permute.xlu0 %2526
        %2530 = vset.pattern.permute.xlu0 0
        %2531 = vperm.xlu0 %2530, %v2041
        %v2532 = vpop.permute.xlu0 %2531
        %2535 = vset.pattern.permute.xlu0 0
        %2536 = vperm.xlu0 %2535, %v2042
        %v2537 = vpop.permute.xlu0 %2536
        %2540 = vset.pattern.permute.xlu0 0
        %2541 = vperm.xlu0 %2540, %v2043
        %v2542 = vpop.permute.xlu0 %2541
        %2545 = vset.pattern.permute.xlu0 0
        %2546 = vperm.xlu0 %2545, %v2044
        %v2547 = vpop.permute.xlu0 %2546
        %2550 = vset.pattern.permute.xlu0 0
        %2551 = vperm.xlu0 %2550, %v2045
        %v2552 = vpop.permute.xlu0 %2551
        %2555 = vset.pattern.permute.xlu0 0
        %2556 = vperm.xlu0 %2555, %v2046
        %v2557 = vpop.permute.xlu0 %2556
        %2560 = vset.pattern.permute.xlu0 0
        %2561 = vperm.xlu0 %2560, %v2047
        %v2562 = vpop.permute.xlu0 %2561
        %2565 = vset.pattern.permute.xlu0 0
        %2566 = vperm.xlu0 %2565, %v2048
        %v2567 = vpop.permute.xlu0 %2566
        %v2569 = vmul.f32 %v2473, %v2492
        %v2570 = vmul.f32 %v2474, %v2497
        %v2571 = vmul.f32 %v2475, %v2502
        %v2572 = vmul.f32 %v2476, %v2507
        %v2573 = vmul.f32 %v2477, %v2512
        %v2574 = vmul.f32 %v2478, %v2517
        %v2575 = vmul.f32 %v2479, %v2522
        %v2576 = vmul.f32 %v2480, %v2527
        %v2577 = vmul.f32 %v2481, %v2532
        %v2578 = vmul.f32 %v2482, %v2537
        %v2579 = vmul.f32 %v2483, %v2542
        %v2580 = vmul.f32 %v2484, %v2547
        %v2581 = vmul.f32 %v2485, %v2552
        %v2582 = vmul.f32 %v2486, %v2557
        %v2583 = vmul.f32 %v2487, %v2562
        %v2584 = vmul.f32 %v2488, %v2567
        %v2585 = vpack.c.bf16 %v2282, %v2281
        %v2586 = vpack.c.bf16 %v2284, %v2283
        %v2587 = vpack.c.bf16 %v2286, %v2285
        %v2588 = vpack.c.bf16 %v2288, %v2287
        %v2589 = vpack.c.bf16 %v2290, %v2289
        %v2590 = vpack.c.bf16 %v2292, %v2291
        %v2591 = vpack.c.bf16 %v2294, %v2293
        %v2592 = vpack.c.bf16 %v2296, %v2295
        %v2593 = vpack.c.bf16 %v2570, %v2569
        %v2594 = vpack.c.bf16 %v2572, %v2571
        %v2595 = vpack.c.bf16 %v2574, %v2573
        %v2596 = vpack.c.bf16 %v2576, %v2575
        %v2597 = vpack.c.bf16 %v2578, %v2577
        %v2598 = vpack.c.bf16 %v2580, %v2579
        %v2599 = vpack.c.bf16 %v2582, %v2581
        %v2600 = vpack.c.bf16 %v2584, %v2583
        %2609 = vrot.lane.b32.xlu0 %v2593, 64
        %v2610 = vpop.permute.xlu0 %2609
        %2611 = vrot.lane.b32.xlu0 %v2594, 64
        %v2612 = vpop.permute.xlu0 %2611
        %2613 = vrot.lane.b32.xlu0 %v2595, 64
        %v2614 = vpop.permute.xlu0 %2613
        %2615 = vrot.lane.b32.xlu0 %v2596, 64
        %v2616 = vpop.permute.xlu0 %2615
        %2617 = vrot.lane.b32.xlu0 %v2597, 64
        %v2618 = vpop.permute.xlu0 %2617
        %2619 = vrot.lane.b32.xlu0 %v2598, 64
        %v2620 = vpop.permute.xlu0 %2619
        %2621 = vrot.lane.b32.xlu0 %v2599, 64
        %v2622 = vpop.permute.xlu0 %2621
        %2623 = vrot.lane.b32.xlu0 %v2600, 64
        %v2624 = vpop.permute.xlu0 %2623
        %vm2625 = vcmask 523264
        %v2627 = vsel %vm2625, %v2585, 0
        %v2630 = vsel %vm2625, %v2586, 0
        %v2633 = vsel %vm2625, %v2587, 0
        %v2636 = vsel %vm2625, %v2588, 0
        %v2639 = vsel %vm2625, %v2589, 0
        %v2642 = vsel %vm2625, %v2590, 0
        %v2645 = vsel %vm2625, %v2591, 0
        %v2648 = vsel %vm2625, %v2592, 0
        %v2651 = vsel %vm2625, %v2610, 0
        %v2654 = vsel %vm2625, %v2612, 0
        %v2657 = vsel %vm2625, %v2614, 0
        %v2660 = vsel %vm2625, %v2616, 0
        %v2663 = vsel %vm2625, %v2618, 0
        %v2666 = vsel %vm2625, %v2620, 0
        %v2669 = vsel %vm2625, %v2622, 0
        %v2672 = vsel %vm2625, %v2624, 0
        %2674 = vmatprep.subr.bf16.mxu0 0
        %2675 = vmatpush1.bf16.xpose.msra.mxu0 %v2651
        %2676 = vmatprep.subr.bf16.mxu0 0
        %2677 = vmatpush1.bf16.xpose.msra.mxu0 %v2654
        %2678 = vmatprep.subr.bf16.mxu0 0
        %2679 = vmatpush1.bf16.xpose.msra.mxu0 %v2657
        %2680 = vmatprep.subr.bf16.mxu0 0
        %2681 = vmatpush1.bf16.xpose.msra.mxu0 %v2660
        %2682 = vmatprep.subr.bf16.mxu0 0
        %2683 = vmatpush1.bf16.xpose.msra.mxu0 %v2663
        %2684 = vmatprep.subr.bf16.mxu0 0
        %2685 = vmatpush1.bf16.xpose.msra.mxu0 %v2666
        %2686 = vmatprep.subr.bf16.mxu0 0
        %2687 = vmatpush1.bf16.xpose.msra.mxu0 %v2669
        %2688 = vmatprep.subr.bf16.mxu0 0
        %2689 = vmatpush1.bf16.xpose.msra.mxu0 %v2672
        %2690 = vmatprep.subr.bf16.mxu0 0
        %2691 = vmatpush1.bf16.xpose.msra.mxu0 0
        %2692 = vmatprep.subr.bf16.mxu0 0
        %2693 = vmatpush1.bf16.xpose.msra.mxu0 0
        %2694 = vmatprep.subr.bf16.mxu0 0
        %2695 = vmatpush1.bf16.xpose.msra.mxu0 0
        %2696 = vmatprep.subr.bf16.mxu0 0
        %2697 = vmatpush1.bf16.xpose.msra.mxu0 0
        %2698 = vmatprep.subr.bf16.mxu0 0
        %2699 = vmatpush1.bf16.xpose.msra.mxu0 0
        %2700 = vmatprep.subr.bf16.mxu0 0
        %2701 = vmatpush1.bf16.xpose.msra.mxu0 0
        %2702 = vmatprep.subr.bf16.mxu0 0
        %2703 = vmatpush1.bf16.xpose.msra.mxu0 0
        %2704 = vmatprep.subr.bf16.mxu0 0
        %2705 = vmatpush1.bf16.xpose.msra.mxu0 0
        %2706 = vmatprep.mubr.bf16.mxu0 0
        %2707 = vmatmul.mubr.bf16.gmra.mrb[0].mxu0 %v2627
        %v2708 = vpop.f32.mrb[0].mxu0
        %v2709 = vadd.f32 0.0, %v2708
        %v2710 = vpop.f32.mrb[0].mxu0
        %v2711 = vpop.f32.mrb[0].mxu0
        %v2712 = vadd.f32 0.0, %v2711
        %v2713 = vpop.f32.mrb[0].mxu0
        %2714 = vmatprep.mubr.bf16.mxu0 0
        %2715 = vmatmul.mubr.bf16.gmra.mrb[0].mxu0 %v2630
        %v2716 = vpop.f32.mrb[0].mxu0
        %v2717 = vadd.f32 0.0, %v2716
        %v2718 = vpop.f32.mrb[0].mxu0
        %v2719 = vpop.f32.mrb[0].mxu0
        %v2720 = vadd.f32 0.0, %v2719
        %v2721 = vpop.f32.mrb[0].mxu0
        %2722 = vmatprep.mubr.bf16.mxu0 0
        %2723 = vmatmul.mubr.bf16.gmra.mrb[0].mxu0 %v2633
        %v2724 = vpop.f32.mrb[0].mxu0
        %v2725 = vadd.f32 0.0, %v2724
        %v2726 = vpop.f32.mrb[0].mxu0
        %v2727 = vpop.f32.mrb[0].mxu0
        %v2728 = vadd.f32 0.0, %v2727
        %v2729 = vpop.f32.mrb[0].mxu0
        %2730 = vmatprep.mubr.bf16.mxu0 0
        %2731 = vmatmul.mubr.bf16.gmra.mrb[0].mxu0 %v2636
        %v2732 = vpop.f32.mrb[0].mxu0
        %v2733 = vadd.f32 0.0, %v2732
        %v2734 = vpop.f32.mrb[0].mxu0
        %v2735 = vpop.f32.mrb[0].mxu0
        %v2736 = vadd.f32 0.0, %v2735
        %v2737 = vpop.f32.mrb[0].mxu0
        %2738 = vmatprep.mubr.bf16.mxu0 0
        %2739 = vmatmul.mubr.bf16.gmra.mrb[0].mxu0 %v2639
        %v2740 = vpop.f32.mrb[0].mxu0
        %v2741 = vadd.f32 0.0, %v2740
        %v2742 = vpop.f32.mrb[0].mxu0
        %v2743 = vpop.f32.mrb[0].mxu0
        %v2744 = vadd.f32 0.0, %v2743
        %v2745 = vpop.f32.mrb[0].mxu0
        %2746 = vmatprep.mubr.bf16.mxu0 0
        %2747 = vmatmul.mubr.bf16.gmra.mrb[0].mxu0 %v2642
        %v2748 = vpop.f32.mrb[0].mxu0
        %v2749 = vadd.f32 0.0, %v2748
        %v2750 = vpop.f32.mrb[0].mxu0
        %v2751 = vpop.f32.mrb[0].mxu0
        %v2752 = vadd.f32 0.0, %v2751
        %v2753 = vpop.f32.mrb[0].mxu0
        %2754 = vmatprep.mubr.bf16.mxu0 0
        %2755 = vmatmul.mubr.bf16.gmra.mrb[0].mxu0 %v2645
        %v2756 = vpop.f32.mrb[0].mxu0
        %v2757 = vadd.f32 0.0, %v2756
        %v2758 = vpop.f32.mrb[0].mxu0
        %v2759 = vpop.f32.mrb[0].mxu0
        %v2760 = vadd.f32 0.0, %v2759
        %v2761 = vpop.f32.mrb[0].mxu0
        %2762 = vmatprep.mubr.bf16.mxu0 0
        %2763 = vmatmul.mubr.bf16.gmra.mrb[0].mxu0 %v2648
        %v2764 = vpop.f32.mrb[0].mxu0
        %v2765 = vadd.f32 0.0, %v2764
        %v2766 = vpop.f32.mrb[0].mxu0
        %v2767 = vpop.f32.mrb[0].mxu0
        %v2768 = vadd.f32 0.0, %v2767
        %v2769 = vpop.f32.mrb[0].mxu0
        %2770 = vdwg.mxu0
        %v2771 = vsub.f32 %v2709, %v2072
        %v2772 = vsub.f32 %v2712, %v2073
        %v2773 = vsub.f32 %v2717, %v2074
        %v2774 = vsub.f32 %v2720, %v2075
        %v2775 = vsub.f32 %v2725, %v2076
        %v2776 = vsub.f32 %v2728, %v2077
        %v2777 = vsub.f32 %v2733, %v2078
        %v2778 = vsub.f32 %v2736, %v2079
        %v2779 = vsub.f32 %v2741, %v2080
        %v2780 = vsub.f32 %v2744, %v2081
        %v2781 = vsub.f32 %v2749, %v2082
        %v2782 = vsub.f32 %v2752, %v2083
        %v2783 = vsub.f32 %v2757, %v2084
        %v2784 = vsub.f32 %v2760, %v2085
        %v2785 = vsub.f32 %v2765, %v2086
        %v2786 = vsub.f32 %v2768, %v2087
        %2787 = vst [vmem:[%s400] sm:$0xff] %v2771
        %2788 = vst [vmem:[%s400 + $0x8] sm:$0xff] %v2772
        %2789 = vst [vmem:[%s400 + $0x10] sm:$0xff] %v2773
        %2790 = vst [vmem:[%s400 + $0x18] sm:$0xff] %v2774
        %2791 = vst [vmem:[%s400 + $0x20] sm:$0xff] %v2775
        %2792 = vst [vmem:[%s400 + $0x28] sm:$0xff] %v2776
        %2793 = vst [vmem:[%s400 + $0x30] sm:$0xff] %v2777
        %2794 = vst [vmem:[%s400 + $0x38] sm:$0xff] %v2778
        %2795 = vst [vmem:[%s400 + $0x40] sm:$0xff] %v2779
        %2796 = vst [vmem:[%s400 + $0x48] sm:$0xff] %v2780
        %2797 = vst [vmem:[%s400 + $0x50] sm:$0xff] %v2781
        %2798 = vst [vmem:[%s400 + $0x58] sm:$0xff] %v2782
        %2799 = vst [vmem:[%s400 + $0x60] sm:$0xff] %v2783
        %2800 = vst [vmem:[%s400 + $0x68] sm:$0xff] %v2784
        %2801 = vst [vmem:[%s400 + $0x70] sm:$0xff] %v2785
        %2802 = vst [vmem:[%s400 + $0x78] sm:$0xff] %v2786
        %v2803 = vmul.f32 %v1957, %v2088
        %v2804 = vmul.f32 %v1961, %v2089
        %v2805 = vmul.f32 %v1967, %v2090
        %v2806 = vmul.f32 %v1971, %v2091
        %v2807 = vmul.f32 %v1977, %v2092
        %v2808 = vmul.f32 %v1981, %v2093
        %v2809 = vmul.f32 %v1987, %v2094
        %v2810 = vmul.f32 %v1991, %v2095
        %v2811 = vmul.f32 %v1997, %v2096
        %v2812 = vmul.f32 %v2001, %v2097
        %v2813 = vmul.f32 %v2007, %v2098
        %v2814 = vmul.f32 %v2011, %v2099
        %v2815 = vmul.f32 %v2017, %v2100
        %v2816 = vmul.f32 %v2021, %v2101
        %v2817 = vmul.f32 %v2027, %v2102
        %v2818 = vmul.f32 %v2031, %v2103
        %2835 = vrot.lane.b32.xlu0 %v1957, 96
        %v2836 = vpop.permute.xlu0 %2835
        %2837 = vrot.lane.b32.xlu0 %v1961, 96
        %v2838 = vpop.permute.xlu0 %2837
        %2839 = vrot.lane.b32.xlu0 %v1967, 96
        %v2840 = vpop.permute.xlu0 %2839
        %2841 = vrot.lane.b32.xlu0 %v1971, 96
        %v2842 = vpop.permute.xlu0 %2841
        %2843 = vrot.lane.b32.xlu0 %v1977, 96
        %v2844 = vpop.permute.xlu0 %2843
        %2845 = vrot.lane.b32.xlu0 %v1981, 96
        %v2846 = vpop.permute.xlu0 %2845
        %2847 = vrot.lane.b32.xlu0 %v1987, 96
        %v2848 = vpop.permute.xlu0 %2847
        %2849 = vrot.lane.b32.xlu0 %v1991, 96
        %v2850 = vpop.permute.xlu0 %2849
        %2851 = vrot.lane.b32.xlu0 %v1997, 96
        %v2852 = vpop.permute.xlu0 %2851
        %2853 = vrot.lane.b32.xlu0 %v2001, 96
        %v2854 = vpop.permute.xlu0 %2853
        %2855 = vrot.lane.b32.xlu0 %v2007, 96
        %v2856 = vpop.permute.xlu0 %2855
        %2857 = vrot.lane.b32.xlu0 %v2011, 96
        %v2858 = vpop.permute.xlu0 %2857
        %2859 = vrot.lane.b32.xlu0 %v2017, 96
        %v2860 = vpop.permute.xlu0 %2859
        %2861 = vrot.lane.b32.xlu0 %v2021, 96
        %v2862 = vpop.permute.xlu0 %2861
        %2863 = vrot.lane.b32.xlu0 %v2027, 96
        %v2864 = vpop.permute.xlu0 %2863
        %2865 = vrot.lane.b32.xlu0 %v2031, 96
        %v2866 = vpop.permute.xlu0 %2865
        %2883 = vrot.lane.b32.xlu0 %v1957, 32
        %v2884 = vpop.permute.xlu0 %2883
        %2885 = vrot.lane.b32.xlu0 %v1961, 32
        %v2886 = vpop.permute.xlu0 %2885
        %2887 = vrot.lane.b32.xlu0 %v1967, 32
        %v2888 = vpop.permute.xlu0 %2887
        %2889 = vrot.lane.b32.xlu0 %v1971, 32
        %v2890 = vpop.permute.xlu0 %2889
        %2891 = vrot.lane.b32.xlu0 %v1977, 32
        %v2892 = vpop.permute.xlu0 %2891
        %2893 = vrot.lane.b32.xlu0 %v1981, 32
        %v2894 = vpop.permute.xlu0 %2893
        %2895 = vrot.lane.b32.xlu0 %v1987, 32
        %v2896 = vpop.permute.xlu0 %2895
        %2897 = vrot.lane.b32.xlu0 %v1991, 32
        %v2898 = vpop.permute.xlu0 %2897
        %2899 = vrot.lane.b32.xlu0 %v1997, 32
        %v2900 = vpop.permute.xlu0 %2899
        %2901 = vrot.lane.b32.xlu0 %v2001, 32
        %v2902 = vpop.permute.xlu0 %2901
        %2903 = vrot.lane.b32.xlu0 %v2007, 32
        %v2904 = vpop.permute.xlu0 %2903
        %2905 = vrot.lane.b32.xlu0 %v2011, 32
        %v2906 = vpop.permute.xlu0 %2905
        %2907 = vrot.lane.b32.xlu0 %v2017, 32
        %v2908 = vpop.permute.xlu0 %2907
        %2909 = vrot.lane.b32.xlu0 %v2021, 32
        %v2910 = vpop.permute.xlu0 %2909
        %2911 = vrot.lane.b32.xlu0 %v2027, 32
        %v2912 = vpop.permute.xlu0 %2911
        %2913 = vrot.lane.b32.xlu0 %v2031, 32
        %v2914 = vpop.permute.xlu0 %2913
        %v2931 = vsel %vm2248, %v2836, %v2884
        %v2932 = vsel %vm2248, %v2838, %v2886
        %v2933 = vsel %vm2248, %v2840, %v2888
        %v2934 = vsel %vm2248, %v2842, %v2890
        %v2935 = vsel %vm2248, %v2844, %v2892
        %v2936 = vsel %vm2248, %v2846, %v2894
        %v2937 = vsel %vm2248, %v2848, %v2896
        %v2938 = vsel %vm2248, %v2850, %v2898
        %v2939 = vsel %vm2248, %v2852, %v2900
        %v2940 = vsel %vm2248, %v2854, %v2902
        %v2941 = vsel %vm2248, %v2856, %v2904
        %v2942 = vsel %vm2248, %v2858, %v2906
        %v2943 = vsel %vm2248, %v2860, %v2908
        %v2944 = vsel %vm2248, %v2862, %v2910
        %v2945 = vsel %vm2248, %v2864, %v2912
        %v2946 = vsel %vm2248, %v2866, %v2914
        %v2947 = vmul.f32 %v2931, %v2104
        %v2948 = vmul.f32 %v2932, %v2105
        %v2949 = vmul.f32 %v2933, %v2106
        %v2950 = vmul.f32 %v2934, %v2107
        %v2951 = vmul.f32 %v2935, %v2108
        %v2952 = vmul.f32 %v2936, %v2109
        %v2953 = vmul.f32 %v2937, %v2110
        %v2954 = vmul.f32 %v2938, %v2111
        %v2955 = vmul.f32 %v2939, %v2112
        %v2956 = vmul.f32 %v2940, %v2113
        %v2957 = vmul.f32 %v2941, %v2114
        %v2958 = vmul.f32 %v2942, %v2115
        %v2959 = vmul.f32 %v2943, %v2116
        %v2960 = vmul.f32 %v2944, %v2117
        %v2961 = vmul.f32 %v2945, %v2118
        %v2962 = vmul.f32 %v2946, %v2119
        %v2963 = vadd.f32 %v2803, %v2947
        %v2964 = vadd.f32 %v2804, %v2948
        %v2965 = vadd.f32 %v2805, %v2949
        %v2966 = vadd.f32 %v2806, %v2950
        %v2967 = vadd.f32 %v2807, %v2951
        %v2968 = vadd.f32 %v2808, %v2952
        %v2969 = vadd.f32 %v2809, %v2953
        %v2970 = vadd.f32 %v2810, %v2954
        %v2971 = vadd.f32 %v2811, %v2955
        %v2972 = vadd.f32 %v2812, %v2956
        %v2973 = vadd.f32 %v2813, %v2957
        %v2974 = vadd.f32 %v2814, %v2958
        %v2975 = vadd.f32 %v2815, %v2959
        %v2976 = vadd.f32 %v2816, %v2960
        %v2977 = vadd.f32 %v2817, %v2961
        %v2978 = vadd.f32 %v2818, %v2962
        %v2979 = vmul.f32 %v1957, %v2314
        %v2980 = vmul.f32 %v1961, %v2316
        %v2981 = vmul.f32 %v1967, %v2318
        %v2982 = vmul.f32 %v1971, %v2320
        %v2983 = vmul.f32 %v1977, %v2322
        %v2984 = vmul.f32 %v1981, %v2324
        %v2985 = vmul.f32 %v1987, %v2326
        %v2986 = vmul.f32 %v1991, %v2328
        %v2987 = vmul.f32 %v1997, %v2330
        %v2988 = vmul.f32 %v2001, %v2332
        %v2989 = vmul.f32 %v2007, %v2334
        %v2990 = vmul.f32 %v2011, %v2336
        %v2991 = vmul.f32 %v2017, %v2338
        %v2992 = vmul.f32 %v2021, %v2340
        %v2993 = vmul.f32 %v2027, %v2342
        %v2994 = vmul.f32 %v2031, %v2344
        %v2995 = vsel %vm2248, %v2884, %v2836
        %v2996 = vsel %vm2248, %v2886, %v2838
        %v2997 = vsel %vm2248, %v2888, %v2840
        %v2998 = vsel %vm2248, %v2890, %v2842
        %v2999 = vsel %vm2248, %v2892, %v2844
        %v3000 = vsel %vm2248, %v2894, %v2846
        %v3001 = vsel %vm2248, %v2896, %v2848
        %v3002 = vsel %vm2248, %v2898, %v2850
        %v3003 = vsel %vm2248, %v2900, %v2852
        %v3004 = vsel %vm2248, %v2902, %v2854
        %v3005 = vsel %vm2248, %v2904, %v2856
        %v3006 = vsel %vm2248, %v2906, %v2858
        %v3007 = vsel %vm2248, %v2908, %v2860
        %v3008 = vsel %vm2248, %v2910, %v2862
        %v3009 = vsel %vm2248, %v2912, %v2864
        %v3010 = vsel %vm2248, %v2914, %v2866
        %v3011 = vmul.f32 %v2995, %v2104
        %v3012 = vmul.f32 %v2996, %v2105
        %v3013 = vmul.f32 %v2997, %v2106
        %v3014 = vmul.f32 %v2998, %v2107
        %v3015 = vmul.f32 %v2999, %v2108
        %v3016 = vmul.f32 %v3000, %v2109
        %v3017 = vmul.f32 %v3001, %v2110
        %v3018 = vmul.f32 %v3002, %v2111
        %v3019 = vmul.f32 %v3003, %v2112
        %v3020 = vmul.f32 %v3004, %v2113
        %v3021 = vmul.f32 %v3005, %v2114
        %v3022 = vmul.f32 %v3006, %v2115
        %v3023 = vmul.f32 %v3007, %v2116
        %v3024 = vmul.f32 %v3008, %v2117
        %v3025 = vmul.f32 %v3009, %v2118
        %v3026 = vmul.f32 %v3010, %v2119
        %3043 = vrot.lane.b32.xlu0 %v3011, 64
        %v3044 = vpop.permute.xlu0 %3043
        %3045 = vrot.lane.b32.xlu0 %v3012, 64
        %v3046 = vpop.permute.xlu0 %3045
        %3047 = vrot.lane.b32.xlu0 %v3013, 64
        %v3048 = vpop.permute.xlu0 %3047
        %3049 = vrot.lane.b32.xlu0 %v3014, 64
        %v3050 = vpop.permute.xlu0 %3049
        %3051 = vrot.lane.b32.xlu0 %v3015, 64
        %v3052 = vpop.permute.xlu0 %3051
        %3053 = vrot.lane.b32.xlu0 %v3016, 64
        %v3054 = vpop.permute.xlu0 %3053
        %3055 = vrot.lane.b32.xlu0 %v3017, 64
        %v3056 = vpop.permute.xlu0 %3055
        %3057 = vrot.lane.b32.xlu0 %v3018, 64
        %v3058 = vpop.permute.xlu0 %3057
        %3059 = vrot.lane.b32.xlu0 %v3019, 64
        %v3060 = vpop.permute.xlu0 %3059
        %3061 = vrot.lane.b32.xlu0 %v3020, 64
        %v3062 = vpop.permute.xlu0 %3061
        %3063 = vrot.lane.b32.xlu0 %v3021, 64
        %v3064 = vpop.permute.xlu0 %3063
        %3065 = vrot.lane.b32.xlu0 %v3022, 64
        %v3066 = vpop.permute.xlu0 %3065
        %3067 = vrot.lane.b32.xlu0 %v3023, 64
        %v3068 = vpop.permute.xlu0 %3067
        %3069 = vrot.lane.b32.xlu0 %v3024, 64
        %v3070 = vpop.permute.xlu0 %3069
        %3071 = vrot.lane.b32.xlu0 %v3025, 64
        %v3072 = vpop.permute.xlu0 %3071
        %3073 = vrot.lane.b32.xlu0 %v3026, 64
        %v3074 = vpop.permute.xlu0 %3073
        %v3091 = vadd.f32 %v2979, %v3044
        %v3092 = vadd.f32 %v2980, %v3046
        %v3093 = vadd.f32 %v2981, %v3048
        %v3094 = vadd.f32 %v2982, %v3050
        %v3095 = vadd.f32 %v2983, %v3052
        %v3096 = vadd.f32 %v2984, %v3054
        %v3097 = vadd.f32 %v2985, %v3056
        %v3098 = vadd.f32 %v2986, %v3058
        %v3099 = vadd.f32 %v2987, %v3060
        %v3100 = vadd.f32 %v2988, %v3062
        %v3101 = vadd.f32 %v2989, %v3064
        %v3102 = vadd.f32 %v2990, %v3066
        %v3103 = vadd.f32 %v2991, %v3068
        %v3104 = vadd.f32 %v2992, %v3070
        %v3105 = vadd.f32 %v2993, %v3072
        %v3106 = vadd.f32 %v2994, %v3074
        %v3107 = vmul.f32 %v3091, %v2492
        %v3108 = vmul.f32 %v3092, %v2497
        %v3109 = vmul.f32 %v3093, %v2502
        %v3110 = vmul.f32 %v3094, %v2507
        %v3111 = vmul.f32 %v3095, %v2512
        %v3112 = vmul.f32 %v3096, %v2517
        %v3113 = vmul.f32 %v3097, %v2522
        %v3114 = vmul.f32 %v3098, %v2527
        %v3115 = vmul.f32 %v3099, %v2532
        %v3116 = vmul.f32 %v3100, %v2537
        %v3117 = vmul.f32 %v3101, %v2542
        %v3118 = vmul.f32 %v3102, %v2547
        %v3119 = vmul.f32 %v3103, %v2552
        %v3120 = vmul.f32 %v3104, %v2557
        %v3121 = vmul.f32 %v3105, %v2562
        %v3122 = vmul.f32 %v3106, %v2567
        %v3123 = vpack.c.bf16 %v2964, %v2963
        %v3124 = vpack.c.bf16 %v2966, %v2965
        %v3125 = vpack.c.bf16 %v2968, %v2967
        %v3126 = vpack.c.bf16 %v2970, %v2969
        %v3127 = vpack.c.bf16 %v2972, %v2971
        %v3128 = vpack.c.bf16 %v2974, %v2973
        %v3129 = vpack.c.bf16 %v2976, %v2975
        %v3130 = vpack.c.bf16 %v2978, %v2977
        %v3131 = vpack.c.bf16 %v3108, %v3107
        %v3132 = vpack.c.bf16 %v3110, %v3109
        %v3133 = vpack.c.bf16 %v3112, %v3111
        %v3134 = vpack.c.bf16 %v3114, %v3113
        %v3135 = vpack.c.bf16 %v3116, %v3115
        %v3136 = vpack.c.bf16 %v3118, %v3117
        %v3137 = vpack.c.bf16 %v3120, %v3119
        %v3138 = vpack.c.bf16 %v3122, %v3121
        %3147 = vrot.lane.b32.xlu0 %v3131, 64
        %v3148 = vpop.permute.xlu0 %3147
        %3149 = vrot.lane.b32.xlu0 %v3132, 64
        %v3150 = vpop.permute.xlu0 %3149
        %3151 = vrot.lane.b32.xlu0 %v3133, 64
        %v3152 = vpop.permute.xlu0 %3151
        %3153 = vrot.lane.b32.xlu0 %v3134, 64
        %v3154 = vpop.permute.xlu0 %3153
        %3155 = vrot.lane.b32.xlu0 %v3135, 64
        %v3156 = vpop.permute.xlu0 %3155
        %3157 = vrot.lane.b32.xlu0 %v3136, 64
        %v3158 = vpop.permute.xlu0 %3157
        %3159 = vrot.lane.b32.xlu0 %v3137, 64
        %v3160 = vpop.permute.xlu0 %3159
        %3161 = vrot.lane.b32.xlu0 %v3138, 64
        %v3162 = vpop.permute.xlu0 %3161
        %v3164 = vsel %vm2625, %v3123, 0
        %v3167 = vsel %vm2625, %v3124, 0
        %v3170 = vsel %vm2625, %v3125, 0
        %v3173 = vsel %vm2625, %v3126, 0
        %v3176 = vsel %vm2625, %v3127, 0
        %v3179 = vsel %vm2625, %v3128, 0
        %v3182 = vsel %vm2625, %v3129, 0
        %v3185 = vsel %vm2625, %v3130, 0
        %v3188 = vsel %vm2625, %v3148, 0
        %v3191 = vsel %vm2625, %v3150, 0
        %v3194 = vsel %vm2625, %v3152, 0
        %v3197 = vsel %vm2625, %v3154, 0
        %v3200 = vsel %vm2625, %v3156, 0
        %v3203 = vsel %vm2625, %v3158, 0
        %v3206 = vsel %vm2625, %v3160, 0
        %v3209 = vsel %vm2625, %v3162, 0
        %3211 = vmatprep.subr.bf16.mxu0 0
        %3212 = vmatpush1.bf16.xpose.msra.mxu0 %v3188
        %3213 = vmatprep.subr.bf16.mxu0 0
        %3214 = vmatpush1.bf16.xpose.msra.mxu0 %v3191
        %3215 = vmatprep.subr.bf16.mxu0 0
        %3216 = vmatpush1.bf16.xpose.msra.mxu0 %v3194
        %3217 = vmatprep.subr.bf16.mxu0 0
        %3218 = vmatpush1.bf16.xpose.msra.mxu0 %v3197
        %3219 = vmatprep.subr.bf16.mxu0 0
        %3220 = vmatpush1.bf16.xpose.msra.mxu0 %v3200
        %3221 = vmatprep.subr.bf16.mxu0 0
        %3222 = vmatpush1.bf16.xpose.msra.mxu0 %v3203
        %3223 = vmatprep.subr.bf16.mxu0 0
        %3224 = vmatpush1.bf16.xpose.msra.mxu0 %v3206
        %3225 = vmatprep.subr.bf16.mxu0 0
        %3226 = vmatpush1.bf16.xpose.msra.mxu0 %v3209
        %3227 = vmatprep.subr.bf16.mxu0 0
        %3228 = vmatpush1.bf16.xpose.msra.mxu0 0
        %3229 = vmatprep.subr.bf16.mxu0 0
        %3230 = vmatpush1.bf16.xpose.msra.mxu0 0
        %3231 = vmatprep.subr.bf16.mxu0 0
        %3232 = vmatpush1.bf16.xpose.msra.mxu0 0
        %3233 = vmatprep.subr.bf16.mxu0 0
        %3234 = vmatpush1.bf16.xpose.msra.mxu0 0
        %3235 = vmatprep.subr.bf16.mxu0 0
        %3236 = vmatpush1.bf16.xpose.msra.mxu0 0
        %3237 = vmatprep.subr.bf16.mxu0 0
        %3238 = vmatpush1.bf16.xpose.msra.mxu0 0
        %3239 = vmatprep.subr.bf16.mxu0 0
        %3240 = vmatpush1.bf16.xpose.msra.mxu0 0
        %3241 = vmatprep.subr.bf16.mxu0 0
        %3242 = vmatpush1.bf16.xpose.msra.mxu0 0
        %3243 = vmatprep.mubr.bf16.mxu0 0
        %3244 = vmatmul.mubr.bf16.gmra.mrb[0].mxu0 %v3164
        %v3245 = vpop.f32.mrb[0].mxu0
        %v3246 = vadd.f32 0.0, %v3245
        %v3247 = vpop.f32.mrb[0].mxu0
        %v3248 = vpop.f32.mrb[0].mxu0
        %v3249 = vadd.f32 0.0, %v3248
        %v3250 = vpop.f32.mrb[0].mxu0
        %3251 = vmatprep.mubr.bf16.mxu0 0
        %3252 = vmatmul.mubr.bf16.gmra.mrb[0].mxu0 %v3167
        %v3253 = vpop.f32.mrb[0].mxu0
        %v3254 = vadd.f32 0.0, %v3253
        %v3255 = vpop.f32.mrb[0].mxu0
        %v3256 = vpop.f32.mrb[0].mxu0
        %v3257 = vadd.f32 0.0, %v3256
        %v3258 = vpop.f32.mrb[0].mxu0
        %3259 = vmatprep.mubr.bf16.mxu0 0
        %3260 = vmatmul.mubr.bf16.gmra.mrb[0].mxu0 %v3170
        %v3261 = vpop.f32.mrb[0].mxu0
        %v3262 = vadd.f32 0.0, %v3261
        %v3263 = vpop.f32.mrb[0].mxu0
        %v3264 = vpop.f32.mrb[0].mxu0
        %v3265 = vadd.f32 0.0, %v3264
        %v3266 = vpop.f32.mrb[0].mxu0
        %3267 = vmatprep.mubr.bf16.mxu0 0
        %3268 = vmatmul.mubr.bf16.gmra.mrb[0].mxu0 %v3173
        %v3269 = vpop.f32.mrb[0].mxu0
        %v3270 = vadd.f32 0.0, %v3269
        %v3271 = vpop.f32.mrb[0].mxu0
        %v3272 = vpop.f32.mrb[0].mxu0
        %v3273 = vadd.f32 0.0, %v3272
        %v3274 = vpop.f32.mrb[0].mxu0
        %3275 = vmatprep.mubr.bf16.mxu0 0
        %3276 = vmatmul.mubr.bf16.gmra.mrb[0].mxu0 %v3176
        %v3277 = vpop.f32.mrb[0].mxu0
        %v3278 = vadd.f32 0.0, %v3277
        %v3279 = vpop.f32.mrb[0].mxu0
        %v3280 = vpop.f32.mrb[0].mxu0
        %v3281 = vadd.f32 0.0, %v3280
        %v3282 = vpop.f32.mrb[0].mxu0
        %3283 = vmatprep.mubr.bf16.mxu0 0
        %3284 = vmatmul.mubr.bf16.gmra.mrb[0].mxu0 %v3179
        %v3285 = vpop.f32.mrb[0].mxu0
        %v3286 = vadd.f32 0.0, %v3285
        %v3287 = vpop.f32.mrb[0].mxu0
        %v3288 = vpop.f32.mrb[0].mxu0
        %v3289 = vadd.f32 0.0, %v3288
        %v3290 = vpop.f32.mrb[0].mxu0
        %3291 = vmatprep.mubr.bf16.mxu0 0
        %3292 = vmatmul.mubr.bf16.gmra.mrb[0].mxu0 %v3182
        %v3293 = vpop.f32.mrb[0].mxu0
        %v3294 = vadd.f32 0.0, %v3293
        %v3295 = vpop.f32.mrb[0].mxu0
        %v3296 = vpop.f32.mrb[0].mxu0
        %v3297 = vadd.f32 0.0, %v3296
        %v3298 = vpop.f32.mrb[0].mxu0
        %3299 = vmatprep.mubr.bf16.mxu0 0
        %3300 = vmatmul.mubr.bf16.gmra.mrb[0].mxu0 %v3185
        %v3301 = vpop.f32.mrb[0].mxu0
        %v3302 = vadd.f32 0.0, %v3301
        %v3303 = vpop.f32.mrb[0].mxu0
        %v3304 = vpop.f32.mrb[0].mxu0
        %v3305 = vadd.f32 0.0, %v3304
        %v3306 = vpop.f32.mrb[0].mxu0
        %3307 = vdwg.mxu0
        %v3308 = vsub.f32 %v3246, %v2072
        %v3309 = vsub.f32 %v3249, %v2073
        %v3310 = vsub.f32 %v3254, %v2074
        %v3311 = vsub.f32 %v3257, %v2075
        %v3312 = vsub.f32 %v3262, %v2076
        %v3313 = vsub.f32 %v3265, %v2077
        %v3314 = vsub.f32 %v3270, %v2078
        %v3315 = vsub.f32 %v3273, %v2079
        %v3316 = vsub.f32 %v3278, %v2080
        %v3317 = vsub.f32 %v3281, %v2081
        %v3318 = vsub.f32 %v3286, %v2082
        %v3319 = vsub.f32 %v3289, %v2083
        %v3320 = vsub.f32 %v3294, %v2084
        %v3321 = vsub.f32 %v3297, %v2085
        %v3322 = vsub.f32 %v3302, %v2086
        %v3323 = vsub.f32 %v3305, %v2087
        %s3324 = scalar_lea.vmem %s400, 128 [#allocation7]
        %3325 = vst [vmem:[%s3324] sm:$0xff] %v3308
        %3326 = vst [vmem:[%s3324 + $0x8] sm:$0xff] %v3309
        %3327 = vst [vmem:[%s3324 + $0x10] sm:$0xff] %v3310
        %3328 = vst [vmem:[%s3324 + $0x18] sm:$0xff] %v3311
        %3329 = vst [vmem:[%s3324 + $0x20] sm:$0xff] %v3312
        %3330 = vst [vmem:[%s3324 + $0x28] sm:$0xff] %v3313
        %3331 = vst [vmem:[%s3324 + $0x30] sm:$0xff] %v3314
        %3332 = vst [vmem:[%s3324 + $0x38] sm:$0xff] %v3315
        %3333 = vst [vmem:[%s3324 + $0x40] sm:$0xff] %v3316
        %3334 = vst [vmem:[%s3324 + $0x48] sm:$0xff] %v3317
        %3335 = vst [vmem:[%s3324 + $0x50] sm:$0xff] %v3318
        %3336 = vst [vmem:[%s3324 + $0x58] sm:$0xff] %v3319
        %3337 = vst [vmem:[%s3324 + $0x60] sm:$0xff] %v3320
        %3338 = vst [vmem:[%s3324 + $0x68] sm:$0xff] %v3321
        %3339 = vst [vmem:[%s3324 + $0x70] sm:$0xff] %v3322
        %3340 = vst [vmem:[%s3324 + $0x78] sm:$0xff] %v3323
        %s3341 = sand.u32 %s241, 1
        %s3342 = scalar_lea.sflag [#allocation4], %s3341
        %s3343 = sand.u32 %s241, 1
        %s3344 = smul.addr %s3343, 256
        %s3345 = scalar_lea.vmem [#allocation7], %s3344
        // Predicated region
        $region61: #{tpu_custom_call.1} parent=51 // pred_check
          %p3346 = pneg %p251
        $region62: #{tpu_custom_call.1} parent=51 // pred_check_branch
          %3348 = sbr.rel (%p3346) target = $region64
        $region63: #{tpu_custom_call.1} parent=51 // pred_region
          %s3349 = smul.u32 2, %s31
          %s3351 = ssub.s32 4096, 4096
          %3352 = vsyncadd %s3342, %s3351
          %s3353 = smul.addr %s3349, 16
          %s3354 = smul.addr %s30, 32
          %s3355 = sadd.s32 %s3353, %s3354
          %s3356 = smul.addr %s3355, 128
          %s3357 = scalar_lea.hbm %s8, %s3356
          %s3358 = sshll.u32 %s3345, 4
          %s3359 = int_to_ptr.vmem [resolvable:$true] %s3358
          %3364 = dma.vmem_to_hbm [thread:$0]  %s3359, 4096, %s3357, %s3342, 128, 128, 8
        $region64: #{tpu_custom_call.1} parent=51 // pred_fallthru
          _
      $region52: #{tpu_custom_call.1} parent=5 // pred_fallthru
        _
      %p3365 = scmp.le.s32.totalorder 2, %s21
      // Predicated region
      $region65: #{tpu_custom_call.1} parent=5 // pred_check
        %p3366 = pneg %p3365
      $region66: #{tpu_custom_call.1} parent=5 // pred_check_branch
        %3368 = sbr.rel (%p3366) target = $region68
      $region67: #{tpu_custom_call.1} parent=5 // pred_region
        %s3369 = ssub.s32 %s21, 2
        // Predicated region
        $region69: #{tpu_custom_call.1} parent=67 // pred_check
          %p3370 = pneg %p257
        $region70: #{tpu_custom_call.1} parent=67 // pred_check_branch
          %3372 = sbr.rel (%p3370) target = $region72
        $region71: #{tpu_custom_call.1} parent=67 // pred_region
          %s3373 = sand.u32 %s242, 1
          %s3374 = scalar_lea.sflag [#allocation4], %s3373
          %s3375 = sand.u32 %s242, 1
          %s3376 = smul.addr %s3375, 256
          %s3377 = scalar_lea.vmem [#allocation7], %s3376
          %3378 = dma.done %s3374, 4096
        $region72: #{tpu_custom_call.1} parent=67 // pred_fallthru
          _
      $region68: #{tpu_custom_call.1} parent=5 // pred_fallthru
        _
    $region6: #{tpu_custom_call.1} parent=1 // loop_footer
      %s25 = sadd.s32 1, %s21
    $region7: #{tpu_custom_call.1} parent=1 // loop_footer_branch
      %20 = sbr.rel target = $region3
    $region8: #{tpu_custom_call.1} parent=1 // loop_exit
      _
    %3379 = vsyncpa [#allocation3], 1
    %s3380 = scalar_lea.sflag [#allocation3], 1
    %3381 = vsyncpa %s3380, 1
    %3382 = vsyncpa [#allocation6], 1
    %3383 = vsyncpa [#allocation4], 1
    %s3384 = scalar_lea.sflag [#allocation4], 1
    %3385 = vsyncpa %s3384, 1

</llo_original>
